<compile_context>
chip_gen: v7x
topology: tpu7x:2x2x1
jax: 0.10.0
libtpu: 0.0.40
codegen_flags: <defaults>
</compile_context>

<pallas_src>
import functools

import jax
import jax.numpy as jnp
from jax.experimental import pallas as pl
from jax.experimental.pallas import tpu as pltpu

EPS = 1e-6


# ----------------------------------------------------------------------------- kernels

def _conv3x3_stats_kernel(xw_ref, w1_ref, y1_ref, st_ref, *, cdt):
    """Pass 1: ReLU(x) -> 3x3 conv (9 shifted matmuls) ; emit y1 tile + partial BN1 stats.

    xw_ref: (TH+2, W+2, Cp)  halo window of channel-padded, spatially-padded input (f32)
    w1_ref: (9, Cp, Crp)     conv1 weights per tap (cdt)
    y1_ref: (TH, W, Crp)     conv1 output tile (f32)
    st_ref: (2, Crp)         [sum(y1), sum(y1^2)] over this tile
    """
    TH, W, Crp = y1_ref.shape
    Cp = xw_ref.shape[-1]
    # ReLU before the conv; zero padding (spatial + channel) stays zero under ReLU.
    xc = jnp.maximum(xw_ref[...], 0.0).astype(cdt)
    acc = jnp.zeros((TH * W, Crp), jnp.float32)
    for dy in range(3):
        for dx in range(3):
            patch = xc[dy:dy + TH, dx:dx + W, :].reshape(TH * W, Cp)
            acc = acc + jnp.dot(patch, w1_ref[dy * 3 + dx],
                                preferred_element_type=jnp.float32)
    y1_ref[...] = acc.reshape(TH, W, Crp)
    st_ref[...] = jnp.concatenate(
        [jnp.sum(acc, axis=0, keepdims=True),
         jnp.sum(acc * acc, axis=0, keepdims=True)], axis=0)


def _bn1_conv1x1_stats_kernel(y1_ref, s1_ref, t1_ref, w2_ref, st_ref, *, cdt):
    """Pass 2: BN1 (fused scale/shift) -> ReLU -> 1x1 conv ; emit partial BN2 stats.

    y1_ref: (TH, W, Crp) f32 ; s1/t1: (1, Crp) f32 ; w2_ref: (Crp, Cp) cdt
    st_ref: (2, Cp)  [sum(y2), sum(y2^2)] over this tile
    """
    TH, W, Crp = y1_ref.shape
    z = jnp.maximum(y1_ref[...] * s1_ref[...] + t1_ref[...], 0.0)   # BN1 + ReLU in f32
    h2 = z.reshape(TH * W, Crp).astype(cdt)
    y2 = jnp.dot(h2, w2_ref[...], preferred_element_type=jnp.float32)
    st_ref[...] = jnp.concatenate(
        [jnp.sum(y2, axis=0, keepdims=True),
         jnp.sum(y2 * y2, axis=0, keepdims=True)], axis=0)


def _finalize_kernel(y1_ref, x_ref, s1_ref, t1_ref, w2_ref, s2_ref, t2_ref, o_ref, *, cdt):
    """Pass 3: recompute y2 = conv1x1(ReLU(BN1(y1))), apply BN2, add residual x."""
    TH, W, Crp = y1_ref.shape
    Cp = o_ref.shape[-1]
    z = jnp.maximum(y1_ref[...] * s1_ref[...] + t1_ref[...], 0.0)
    h2 = z.reshape(TH * W, Crp).astype(cdt)
    y2 = jnp.dot(h2, w2_ref[...], preferred_element_type=jnp.float32)
    y2 = y2 * s2_ref[...] + t2_ref[...]                              # BN2 fused
    o_ref[...] = x_ref[...] + y2.reshape(TH, W, Cp)                  # residual add


# ----------------------------------------------------------------------------- wrapper

def _round_up(x, m):
    return (x + m - 1) // m * m


@functools.partial(jax.jit, static_argnames=("matmul_dtype", "tile_h"))
def resblock_forward(x_nchw, params, *, matmul_dtype=jnp.bfloat16, tile_h=None):
    """x_nchw: (N, Cin, H, W) float32. Returns (N, Cin, H, W) float32."""
    w1, b1, g1, bt1, w2, b2, g2, bt2 = params   # b1/b2 unused: cancelled by BN mean sub.
    del b1, b2
    N, Cin, H, W = x_nchw.shape
    Cres = w1.shape[-1]
    Cp = _round_up(Cin, 128)       # lane-dense channel padding
    Crp = _round_up(Cres, 128)
    M = N * H * W
    f32 = jnp.float32
    cdt = matmul_dtype

    # Row-tile size (TH divides H). Keep the per-tile activation footprint small so
    # double-buffered tiles stay far under the v7x 64 MiB VMEM (default budget ~2 MiB/tile).
    if tile_h is None:
        budget = 2 * 1024 * 1024
        tile_h = 1
        for th in range(H, 0, -1):
            if H % th == 0 and th * W * max(Cp, Crp) * 4 <= budget:
                tile_h = th
                break
    TH = tile_h
    assert H % TH == 0
    nH = H // TH

    # --- layout plumbing (plain JAX): NCHW -> NHWC, channel pad to 128 multiples,
    #     spatial pad=1 for the 3x3 conv, halo windows of TH+2 rows per tile (~2/TH extra,
    #     vs the 9x blow-up of im2col).
    x = jnp.transpose(x_nchw, (0, 2, 3, 1)).astype(f32)                 # (N,H,W,Cin)
    x_p = jnp.pad(x, ((0, 0), (0, 0), (0, 0), (0, Cp - Cin)))           # (N,H,W,Cp)
    xsp = jnp.pad(x_p, ((0, 0), (1, 1), (1, 1), (0, 0)))                # (N,H+2,W+2,Cp)
    x_win = jnp.stack([xsp[:, t * TH:t * TH + TH + 2] for t in range(nH)],
                      axis=1)                                           # (N,nH,TH+2,W+2,Cp)

    # Weights / affine params, zero-padded on both channel axes; weights in MXU dtype.
    w1_k = jnp.pad(w1.reshape(3, 3, Cin, Cres),
                   ((0, 0), (0, 0), (0, Cp - Cin), (0, Crp - Cres))
                   ).reshape(9, Cp, Crp).astype(cdt)
    w2_k = jnp.pad(w2, ((0, Crp - Cres), (0, Cp - Cin))).astype(cdt)
    g1p = jnp.pad(g1, ((0, 0), (0, Crp - Cres)))
    bt1p = jnp.pad(bt1, ((0, 0), (0, Crp - Cres)))
    g2p = jnp.pad(g2, ((0, 0), (0, Cp - Cin)))
    bt2p = jnp.pad(bt2, ((0, 0), (0, Cp - Cin)))

    grid = (N, nH)
    cparams = pltpu.CompilerParams(
        dimension_semantics=("parallel", "parallel"),   # v7x: shard over both TCs
        vmem_limit_bytes=48 * 1024 * 1024)              # explicit, below v7x 64 MiB

    # ---- pass 1: ReLU + conv3x3 + partial BN1 stats ------------------------------------
    y1, st1 = pl.pallas_call(
        functools.partial(_conv3x3_stats_kernel, cdt=cdt),
        grid=grid,
        in_specs=[
            pl.BlockSpec((None, None, TH + 2, W + 2, Cp), lambda n, t: (n, t, 0, 0, 0)),
            pl.BlockSpec((9, Cp, Crp), lambda n, t: (0, 0, 0)),
        ],
        out_specs=[
            pl.BlockSpec((None, TH, W, Crp), lambda n, t: (n, t, 0, 0)),
            pl.BlockSpec((None, None, 2, Crp), lambda n, t: (n, t, 0, 0)),
        ],
        out_shape=(jax.ShapeDtypeStruct((N, H, W, Crp), f32),
                   jax.ShapeDtypeStruct((N, nH, 2, Crp), f32)),
        compiler_params=cparams,
    )(x_win, w1_k)

    # Tiny glue: reduce per-tile stats, fold BN into one per-channel scale/shift.
    def fused_affine(st, g, bt):
        ssum = jnp.sum(st[:, :, 0, :], axis=(0, 1))
        ssq = jnp.sum(st[:, :, 1, :], axis=(0, 1))
        m = ssum / M
        v = jnp.maximum(ssq / M - m * m, 0.0)
        s = g[0] * jax.lax.rsqrt(v + EPS)
        t = bt[0] - m * s
        return s[None, :].astype(f32), t[None, :].astype(f32)

    s1, t1 = fused_affine(st1, g1p, bt1p)

    # ---- pass 2: BN1 + ReLU + conv1x1 -> partial BN2 stats -----------------------------
    st2 = pl.pallas_call(
        functools.partial(_bn1_conv1x1_stats_kernel, cdt=cdt),
        grid=grid,
        in_specs=[
            pl.BlockSpec((None, TH, W, Crp), lambda n, t: (n, t, 0, 0)),
            pl.BlockSpec((1, Crp), lambda n, t: (0, 0)),
            pl.BlockSpec((1, Crp), lambda n, t: (0, 0)),
            pl.BlockSpec((Crp, Cp), lambda n, t: (0, 0)),
        ],
        out_specs=pl.BlockSpec((None, None, 2, Cp), lambda n, t: (n, t, 0, 0)),
        out_shape=jax.ShapeDtypeStruct((N, nH, 2, Cp), f32),
        compiler_params=cparams,
    )(y1, s1, t1, w2_k)

    s2, t2 = fused_affine(st2, g2p, bt2p)

    # ---- pass 3: recompute y2, BN2, residual add (x tile aliased to output tile) -------
    out_p = pl.pallas_call(
        functools.partial(_finalize_kernel, cdt=cdt),
        grid=grid,
        in_specs=[
            pl.BlockSpec((None, TH, W, Crp), lambda n, t: (n, t, 0, 0)),
            pl.BlockSpec((None, TH, W, Cp), lambda n, t: (n, t, 0, 0)),
            pl.BlockSpec((1, Crp), lambda n, t: (0, 0)),
            pl.BlockSpec((1, Crp), lambda n, t: (0, 0)),
            pl.BlockSpec((Crp, Cp), lambda n, t: (0, 0)),
            pl.BlockSpec((1, Cp), lambda n, t: (0, 0)),
            pl.BlockSpec((1, Cp), lambda n, t: (0, 0)),
        ],
        out_specs=pl.BlockSpec((None, TH, W, Cp), lambda n, t: (n, t, 0, 0)),
        out_shape=jax.ShapeDtypeStruct((N, H, W, Cp), f32),
        input_output_aliases={1: 0},     # residual input x_p reuses the output buffer
        compiler_params=cparams,
    )(y1, x_p, s1, t1, w2_k, s2, t2)

    out = out_p[..., :Cin]                                  # drop channel padding
    return jnp.transpose(out, (0, 3, 1, 2))                 # NHWC -> NCHW


# ----------------------------------------------------------------------------- test utils

def init_params(key, in_dim, res_dim):
    """Deterministic synthetic parameters matching the module's shapes."""
    k1, k2, k3, k4, k5, k6, k7, k8 = jax.random.split(key, 8)
    fan1 = 9 * in_dim
    w1 = (jax.random.uniform(k1, (3, 3, in_dim, res_dim), jnp.float32, -1.0, 1.0)
          / jnp.sqrt(fan1)).reshape(9 * in_dim, res_dim)
    b1 = jax.random.uniform(k2, (1, res_dim), jnp.float32, -1.0, 1.0) / jnp.sqrt(fan1)
    g1 = 1.0 + 0.1 * jax.random.normal(k3, (1, res_dim), jnp.float32)
    bt1 = 0.1 * jax.random.normal(k4, (1, res_dim), jnp.float32)
    fan2 = res_dim
    w2 = jax.random.uniform(k5, (res_dim, in_dim), jnp.float32, -1.0, 1.0) / jnp.sqrt(fan2)
    b2 = jax.random.uniform(k6, (1, in_dim), jnp.float32, -1.0, 1.0) / jnp.sqrt(fan2)
    g2 = 1.0 + 0.1 * jax.random.normal(k7, (1, in_dim), jnp.float32)
    bt2 = 0.1 * jax.random.normal(k8, (1, in_dim), jnp.float32)
    return (w1, b1, g1, bt1, w2, b2, g2, bt2)


def ref_forward(x_nchw, params, in_dim, res_dim):
    """Independent pure-JAX reference (lax.conv, training-mode BN) for correctness."""
    w1, b1, g1, bt1, w2, b2, g2, bt2 = params
    w1_oihw = w1.reshape(3, 3, in_dim, res_dim).transpose(3, 2, 0, 1)
    w2_oihw = w2.reshape(1, 1, res_dim, in_dim).transpose(3, 2, 0, 1)

    def bn(y, g, bt, c):
        m = jnp.mean(y, axis=(0, 2, 3), keepdims=True)
        v = jnp.mean((y - m) ** 2, axis=(0, 2, 3), keepdims=True)
        return (y - m) * jax.lax.rsqrt(v + EPS) * g.reshape(1, c, 1, 1) + bt.reshape(1, c, 1, 1)

    h = jnp.maximum(x_nchw, 0.0)
    y = jax.lax.conv_general_dilated(h, w1_oihw, (1, 1), ((1, 1), (1, 1)),
                                     dimension_numbers=('NCHW', 'OIHW', 'NCHW'))
    y = bn(y + b1.reshape(1, res_dim, 1, 1), g1, bt1, res_dim)
    y = jnp.maximum(y, 0.0)
    y = jax.lax.conv_general_dilated(y, w2_oihw, (1, 1), ((0, 0), (0, 0)),
                                     dimension_numbers=('NCHW', 'OIHW', 'NCHW'))
    y = bn(y + b2.reshape(1, in_dim, 1, 1), g2, bt2, in_dim)
    return x_nchw + y


if __name__ == "__main__":
    key = jax.random.PRNGKey(0)
    kx, kp = jax.random.split(key)
    N, in_dim, res_dim, H, W = 2, 4, 8, 16, 16

    x = jax.random.normal(kx, (N, in_dim, H, W), jnp.float32)
    params = init_params(kp, in_dim, res_dim)

    ref = jax.block_until_ready(ref_forward(x, params, in_dim, res_dim))

    # Structural correctness: f32 MXU path, tight tolerance (tile_h=8 -> 2 row-tiles/image).
    out_f32 = jax.block_until_ready(
        resblock_forward(x, params, matmul_dtype=jnp.float32, tile_h=8))
    assert out_f32.shape == x.shape and out_f32.dtype == jnp.float32
    err32 = float(jnp.max(jnp.abs(out_f32 - ref)))
    assert err32 < 1e-4, f"f32 mismatch: max abs err {err32}"

    # Performance path (v6e/v7x): bf16 MXU inputs, f32 accumulation / BN math.
    out_bf16 = jax.block_until_ready(
        resblock_forward(x, params, matmul_dtype=jnp.bfloat16, tile_h=8))
    errbf = float(jnp.max(jnp.abs(out_bf16 - ref)))
    assert errbf < 1e-1, f"bf16 mismatch: max abs err {errbf}"

    print("KERNEL_OK")
</pallas_src>

<mosaic_0001>
module attributes {stable_mosaic.version = 11 : i64} {
  func.func @_conv3x3_stats_kernel(%arg0: i32, %arg1: i32, %arg2: memref<1x1x10x18x128xf32, #tpu.memory_space<vmem>>, %arg3: memref<9x128x128xf32, #tpu.memory_space<vmem>>, %arg4: memref<1x8x16x128xf32, #tpu.memory_space<vmem>>, %arg5: memref<1x1x2x128xf32, #tpu.memory_space<vmem>>) attributes {dimension_semantics = [#tpu.dimension_semantics<parallel>, #tpu.dimension_semantics<parallel>], iteration_bounds = array<i64: 2, 2>, scalar_prefetch = 0 : i64, scratch_operands = 0 : i64, tpu.core_type = #tpu.core_type<tc>, window_params = [{transform_indices = @transform_0, window_bounds = array<i64: 1, 1, 10, 18, 128>}, {pipeline_mode = #tpu.pipeline_mode<synchronous>, transform_indices = @transform_1, window_bounds = array<i64: 9, 128, 128>}, {transform_indices = @transform_2, window_bounds = array<i64: 1, 8, 16, 128>}, {transform_indices = @transform_3, window_bounds = array<i64: 1, 1, 2, 128>}]} {
    %c0 = arith.constant 0 : index
    %c0_0 = arith.constant 0 : index
    %c0_1 = arith.constant 0 : index
    %c0_2 = arith.constant 0 : index
    %c0_3 = arith.constant 0 : index
    %0 = vector.load %arg2[%c0, %c0_0, %c0_1, %c0_2, %c0_3] : memref<1x1x10x18x128xf32, #tpu.memory_space<vmem>>, vector<1x1x10x18x128xf32>
    %1 = vector.shape_cast %0 : vector<1x1x10x18x128xf32> to vector<10x18x128xf32>
    %cst = arith.constant 0.000000e+00 : f32
    %2 = vector.broadcast %cst : f32 to vector<10x18x128xf32>
    %3 = arith.maximumf %1, %2 : vector<10x18x128xf32>
    %cst_4 = arith.constant 0.000000e+00 : f32
    %4 = vector.broadcast %cst_4 : f32 to vector<128x128xf32>
    %5 = vector.extract_strided_slice %3 {offsets = [0, 0, 0], sizes = [8, 16, 128], strides = [1, 1, 1]} : vector<10x18x128xf32> to vector<8x16x128xf32>
    %6 = vector.shape_cast %5 : vector<8x16x128xf32> to vector<128x128xf32>
    %c0_5 = arith.constant 0 : index
    %c0_6 = arith.constant 0 : index
    %c0_7 = arith.constant 0 : index
    %7 = vector.load %arg3[%c0_5, %c0_6, %c0_7] : memref<9x128x128xf32, #tpu.memory_space<vmem>>, vector<1x128x128xf32>
    %8 = vector.shape_cast %7 : vector<1x128x128xf32> to vector<128x128xf32>
    %cst_8 = arith.constant dense<0.000000e+00> : vector<128x128xf32>
    %9 = tpu.matmul %6, %8, %cst_8 {dimension_numbers = #tpu.dot_dimension_numbers<[1], [0], [0], [1], [0, 0, 1, 1], [], []>} : vector<128x128xf32>, vector<128x128xf32>, vector<128x128xf32> -> vector<128x128xf32>
    %10 = arith.addf %4, %9 : vector<128x128xf32>
    %11 = vector.extract_strided_slice %3 {offsets = [0, 1, 0], sizes = [8, 16, 128], strides = [1, 1, 1]} : vector<10x18x128xf32> to vector<8x16x128xf32>
    %12 = vector.shape_cast %11 : vector<8x16x128xf32> to vector<128x128xf32>
    %c1 = arith.constant 1 : index
    %c0_9 = arith.constant 0 : index
    %c0_10 = arith.constant 0 : index
    %13 = vector.load %arg3[%c1, %c0_9, %c0_10] : memref<9x128x128xf32, #tpu.memory_space<vmem>>, vector<1x128x128xf32>
    %14 = vector.shape_cast %13 : vector<1x128x128xf32> to vector<128x128xf32>
    %cst_11 = arith.constant dense<0.000000e+00> : vector<128x128xf32>
    %15 = tpu.matmul %12, %14, %cst_11 {dimension_numbers = #tpu.dot_dimension_numbers<[1], [0], [0], [1], [0, 0, 1, 1], [], []>} : vector<128x128xf32>, vector<128x128xf32>, vector<128x128xf32> -> vector<128x128xf32>
    %16 = arith.addf %10, %15 : vector<128x128xf32>
    %17 = vector.extract_strided_slice %3 {offsets = [0, 2, 0], sizes = [8, 16, 128], strides = [1, 1, 1]} : vector<10x18x128xf32> to vector<8x16x128xf32>
    %18 = vector.shape_cast %17 : vector<8x16x128xf32> to vector<128x128xf32>
    %c2 = arith.constant 2 : index
    %c0_12 = arith.constant 0 : index
    %c0_13 = arith.constant 0 : index
    %19 = vector.load %arg3[%c2, %c0_12, %c0_13] : memref<9x128x128xf32, #tpu.memory_space<vmem>>, vector<1x128x128xf32>
    %20 = vector.shape_cast %19 : vector<1x128x128xf32> to vector<128x128xf32>
    %cst_14 = arith.constant dense<0.000000e+00> : vector<128x128xf32>
    %21 = tpu.matmul %18, %20, %cst_14 {dimension_numbers = #tpu.dot_dimension_numbers<[1], [0], [0], [1], [0, 0, 1, 1], [], []>} : vector<128x128xf32>, vector<128x128xf32>, vector<128x128xf32> -> vector<128x128xf32>
    %22 = arith.addf %16, %21 : vector<128x128xf32>
    %23 = vector.extract_strided_slice %3 {offsets = [1, 0, 0], sizes = [8, 16, 128], strides = [1, 1, 1]} : vector<10x18x128xf32> to vector<8x16x128xf32>
    %24 = vector.shape_cast %23 : vector<8x16x128xf32> to vector<128x128xf32>
    %c3 = arith.constant 3 : index
    %c0_15 = arith.constant 0 : index
    %c0_16 = arith.constant 0 : index
    %25 = vector.load %arg3[%c3, %c0_15, %c0_16] : memref<9x128x128xf32, #tpu.memory_space<vmem>>, vector<1x128x128xf32>
    %26 = vector.shape_cast %25 : vector<1x128x128xf32> to vector<128x128xf32>
    %cst_17 = arith.constant dense<0.000000e+00> : vector<128x128xf32>
    %27 = tpu.matmul %24, %26, %cst_17 {dimension_numbers = #tpu.dot_dimension_numbers<[1], [0], [0], [1], [0, 0, 1, 1], [], []>} : vector<128x128xf32>, vector<128x128xf32>, vector<128x128xf32> -> vector<128x128xf32>
    %28 = arith.addf %22, %27 : vector<128x128xf32>
    %29 = vector.extract_strided_slice %3 {offsets = [1, 1, 0], sizes = [8, 16, 128], strides = [1, 1, 1]} : vector<10x18x128xf32> to vector<8x16x128xf32>
    %30 = vector.shape_cast %29 : vector<8x16x128xf32> to vector<128x128xf32>
    %c4 = arith.constant 4 : index
    %c0_18 = arith.constant 0 : index
    %c0_19 = arith.constant 0 : index
    %31 = vector.load %arg3[%c4, %c0_18, %c0_19] : memref<9x128x128xf32, #tpu.memory_space<vmem>>, vector<1x128x128xf32>
    %32 = vector.shape_cast %31 : vector<1x128x128xf32> to vector<128x128xf32>
    %cst_20 = arith.constant dense<0.000000e+00> : vector<128x128xf32>
    %33 = tpu.matmul %30, %32, %cst_20 {dimension_numbers = #tpu.dot_dimension_numbers<[1], [0], [0], [1], [0, 0, 1, 1], [], []>} : vector<128x128xf32>, vector<128x128xf32>, vector<128x128xf32> -> vector<128x128xf32>
    %34 = arith.addf %28, %33 : vector<128x128xf32>
    %35 = vector.extract_strided_slice %3 {offsets = [1, 2, 0], sizes = [8, 16, 128], strides = [1, 1, 1]} : vector<10x18x128xf32> to vector<8x16x128xf32>
    %36 = vector.shape_cast %35 : vector<8x16x128xf32> to vector<128x128xf32>
    %c5 = arith.constant 5 : index
    %c0_21 = arith.constant 0 : index
    %c0_22 = arith.constant 0 : index
    %37 = vector.load %arg3[%c5, %c0_21, %c0_22] : memref<9x128x128xf32, #tpu.memory_space<vmem>>, vector<1x128x128xf32>
    %38 = vector.shape_cast %37 : vector<1x128x128xf32> to vector<128x128xf32>
    %cst_23 = arith.constant dense<0.000000e+00> : vector<128x128xf32>
    %39 = tpu.matmul %36, %38, %cst_23 {dimension_numbers = #tpu.dot_dimension_numbers<[1], [0], [0], [1], [0, 0, 1, 1], [], []>} : vector<128x128xf32>, vector<128x128xf32>, vector<128x128xf32> -> vector<128x128xf32>
    %40 = arith.addf %34, %39 : vector<128x128xf32>
    %41 = vector.extract_strided_slice %3 {offsets = [2, 0, 0], sizes = [8, 16, 128], strides = [1, 1, 1]} : vector<10x18x128xf32> to vector<8x16x128xf32>
    %42 = vector.shape_cast %41 : vector<8x16x128xf32> to vector<128x128xf32>
    %c6 = arith.constant 6 : index
    %c0_24 = arith.constant 0 : index
    %c0_25 = arith.constant 0 : index
    %43 = vector.load %arg3[%c6, %c0_24, %c0_25] : memref<9x128x128xf32, #tpu.memory_space<vmem>>, vector<1x128x128xf32>
    %44 = vector.shape_cast %43 : vector<1x128x128xf32> to vector<128x128xf32>
    %cst_26 = arith.constant dense<0.000000e+00> : vector<128x128xf32>
    %45 = tpu.matmul %42, %44, %cst_26 {dimension_numbers = #tpu.dot_dimension_numbers<[1], [0], [0], [1], [0, 0, 1, 1], [], []>} : vector<128x128xf32>, vector<128x128xf32>, vector<128x128xf32> -> vector<128x128xf32>
    %46 = arith.addf %40, %45 : vector<128x128xf32>
    %47 = vector.extract_strided_slice %3 {offsets = [2, 1, 0], sizes = [8, 16, 128], strides = [1, 1, 1]} : vector<10x18x128xf32> to vector<8x16x128xf32>
    %48 = vector.shape_cast %47 : vector<8x16x128xf32> to vector<128x128xf32>
    %c7 = arith.constant 7 : index
    %c0_27 = arith.constant 0 : index
    %c0_28 = arith.constant 0 : index
    %49 = vector.load %arg3[%c7, %c0_27, %c0_28] : memref<9x128x128xf32, #tpu.memory_space<vmem>>, vector<1x128x128xf32>
    %50 = vector.shape_cast %49 : vector<1x128x128xf32> to vector<128x128xf32>
    %cst_29 = arith.constant dense<0.000000e+00> : vector<128x128xf32>
    %51 = tpu.matmul %48, %50, %cst_29 {dimension_numbers = #tpu.dot_dimension_numbers<[1], [0], [0], [1], [0, 0, 1, 1], [], []>} : vector<128x128xf32>, vector<128x128xf32>, vector<128x128xf32> -> vector<128x128xf32>
    %52 = arith.addf %46, %51 : vector<128x128xf32>
    %53 = vector.extract_strided_slice %3 {offsets = [2, 2, 0], sizes = [8, 16, 128], strides = [1, 1, 1]} : vector<10x18x128xf32> to vector<8x16x128xf32>
    %54 = vector.shape_cast %53 : vector<8x16x128xf32> to vector<128x128xf32>
    %c8 = arith.constant 8 : index
    %c0_30 = arith.constant 0 : index
    %c0_31 = arith.constant 0 : index
    %55 = vector.load %arg3[%c8, %c0_30, %c0_31] : memref<9x128x128xf32, #tpu.memory_space<vmem>>, vector<1x128x128xf32>
    %56 = vector.shape_cast %55 : vector<1x128x128xf32> to vector<128x128xf32>
    %cst_32 = arith.constant dense<0.000000e+00> : vector<128x128xf32>
    %57 = tpu.matmul %54, %56, %cst_32 {dimension_numbers = #tpu.dot_dimension_numbers<[1], [0], [0], [1], [0, 0, 1, 1], [], []>} : vector<128x128xf32>, vector<128x128xf32>, vector<128x128xf32> -> vector<128x128xf32>
    %58 = arith.addf %52, %57 : vector<128x128xf32>
    %59 = vector.shape_cast %58 : vector<128x128xf32> to vector<8x16x128xf32>
    %c0_33 = arith.constant 0 : index
    %c0_34 = arith.constant 0 : index
    %c0_35 = arith.constant 0 : index
    %c0_36 = arith.constant 0 : index
    %60 = vector.load %arg4[%c0_33, %c0_34, %c0_35, %c0_36] : memref<1x8x16x128xf32, #tpu.memory_space<vmem>>, vector<1x8x16x128xf32>
    %61 = vector.shape_cast %60 : vector<1x8x16x128xf32> to vector<8x16x128xf32>
    %62 = vector.shape_cast %59 : vector<8x16x128xf32> to vector<1x8x16x128xf32>
    tpu.vector_store %arg4[%c0_33, %c0_34, %c0_35, %c0_36], %62 {strides = array<i32>} : memref<1x8x16x128xf32, #tpu.memory_space<vmem>>, vector<1x8x16x128xf32>,
    %cst_37 = arith.constant dense<0.000000e+00> : vector<128xf32>
    %63 = vector.multi_reduction <add>, %58, %cst_37 [0] : vector<128x128xf32> to vector<128xf32>
    %64 = vector.shape_cast %63 : vector<128xf32> to vector<1x128xf32>
    %65 = arith.mulf %58, %58 : vector<128x128xf32>
    %cst_38 = arith.constant dense<0.000000e+00> : vector<128xf32>
    %66 = vector.multi_reduction <add>, %65, %cst_38 [0] : vector<128x128xf32> to vector<128xf32>
    %67 = vector.shape_cast %66 : vector<128xf32> to vector<1x128xf32>
    %68 = tpu.concatenate %64, %67 in 0 : vector<1x128xf32>, vector<1x128xf32> -> vector<2x128xf32>
    %c0_39 = arith.constant 0 : index
    %c0_40 = arith.constant 0 : index
    %c0_41 = arith.constant 0 : index
    %c0_42 = arith.constant 0 : index
    %69 = vector.load %arg5[%c0_39, %c0_40, %c0_41, %c0_42] : memref<1x1x2x128xf32, #tpu.memory_space<vmem>>, vector<1x1x2x128xf32>
    %70 = vector.shape_cast %69 : vector<1x1x2x128xf32> to vector<2x128xf32>
    %71 = vector.shape_cast %68 : vector<2x128xf32> to vector<1x1x2x128xf32>
    tpu.vector_store %arg5[%c0_39, %c0_40, %c0_41, %c0_42], %71 {strides = array<i32>} : memref<1x1x2x128xf32, #tpu.memory_space<vmem>>, vector<1x1x2x128xf32>,
    return
  }
  func.func @transform_0(%arg0: i32, %arg1: i32) -> (i32, i32, i32, i32, i32) {
    %c0_i32 = arith.constant 0 : i32
    %c0_i32_0 = arith.constant 0 : i32
    %c0_i32_1 = arith.constant 0 : i32
    %c0_i32_2 = arith.constant 0 : i32
    return %arg0, %arg1, %c0_i32, %c0_i32_0, %c0_i32_1 : i32, i32, i32, i32, i32
  }
  func.func @transform_1(%arg0: i32, %arg1: i32) -> (i32, i32, i32) {
    %c0_i32 = arith.constant 0 : i32
    %c0_i32_0 = arith.constant 0 : i32
    %c0_i32_1 = arith.constant 0 : i32
    %c0_i32_2 = arith.constant 0 : i32
    return %c0_i32, %c0_i32_0, %c0_i32_1 : i32, i32, i32
  }
  func.func @transform_2(%arg0: i32, %arg1: i32) -> (i32, i32, i32, i32) {
    %c0_i32 = arith.constant 0 : i32
    %c0_i32_0 = arith.constant 0 : i32
    %c0_i32_1 = arith.constant 0 : i32
    return %arg0, %arg1, %c0_i32, %c0_i32_0 : i32, i32, i32, i32
  }
  func.func @transform_3(%arg0: i32, %arg1: i32) -> (i32, i32, i32, i32) {
    %c0_i32 = arith.constant 0 : i32
    %c0_i32_0 = arith.constant 0 : i32
    %c0_i32_1 = arith.constant 0 : i32
    return %arg0, %arg1, %c0_i32, %c0_i32_0 : i32, i32, i32, i32
  }
}

module attributes {stable_mosaic.version = 11 : i64} {
  func.func @_finalize_kernel(%arg0: i32, %arg1: i32, %arg2: memref<1x8x16x128xf32, #tpu.memory_space<vmem>>, %arg3: memref<1x8x16x128xf32, #tpu.memory_space<vmem>>, %arg4: memref<1x128xf32, #tpu.memory_space<vmem>>, %arg5: memref<1x128xf32, #tpu.memory_space<vmem>>, %arg6: memref<128x128xf32, #tpu.memory_space<vmem>>, %arg7: memref<1x128xf32, #tpu.memory_space<vmem>>, %arg8: memref<1x128xf32, #tpu.memory_space<vmem>>, %arg9: memref<1x8x16x128xf32, #tpu.memory_space<vmem>>) attributes {dimension_semantics = [#tpu.dimension_semantics<parallel>, #tpu.dimension_semantics<parallel>], iteration_bounds = array<i64: 2, 2>, scalar_prefetch = 0 : i64, scratch_operands = 0 : i64, tpu.core_type = #tpu.core_type<tc>, window_params = [{transform_indices = @transform_0, window_bounds = array<i64: 1, 8, 16, 128>}, {transform_indices = @transform_1, window_bounds = array<i64: 1, 8, 16, 128>}, {pipeline_mode = #tpu.pipeline_mode<synchronous>, transform_indices = @transform_2, window_bounds = array<i64: 1, 128>}, {pipeline_mode = #tpu.pipeline_mode<synchronous>, transform_indices = @transform_3, window_bounds = array<i64: 1, 128>}, {pipeline_mode = #tpu.pipeline_mode<synchronous>, transform_indices = @transform_4, window_bounds = array<i64: 128, 128>}, {pipeline_mode = #tpu.pipeline_mode<synchronous>, transform_indices = @transform_5, window_bounds = array<i64: 1, 128>}, {pipeline_mode = #tpu.pipeline_mode<synchronous>, transform_indices = @transform_6, window_bounds = array<i64: 1, 128>}, {transform_indices = @transform_7, window_bounds = array<i64: 1, 8, 16, 128>}]} {
    %c0 = arith.constant 0 : index
    %c0_0 = arith.constant 0 : index
    %c0_1 = arith.constant 0 : index
    %c0_2 = arith.constant 0 : index
    %0 = vector.load %arg2[%c0, %c0_0, %c0_1, %c0_2] : memref<1x8x16x128xf32, #tpu.memory_space<vmem>>, vector<1x8x16x128xf32>
    %1 = vector.shape_cast %0 : vector<1x8x16x128xf32> to vector<8x16x128xf32>
    %c0_3 = arith.constant 0 : index
    %c0_4 = arith.constant 0 : index
    %2 = vector.load %arg4[%c0_3, %c0_4] : memref<1x128xf32, #tpu.memory_space<vmem>>, vector<1x128xf32>
    %3 = vector.shape_cast %2 : vector<1x128xf32> to vector<1x1x128xf32>
    %4 = vector.broadcast %3 : vector<1x1x128xf32> to vector<8x16x128xf32>
    %5 = arith.mulf %1, %4 : vector<8x16x128xf32>
    %c0_5 = arith.constant 0 : index
    %c0_6 = arith.constant 0 : index
    %6 = vector.load %arg5[%c0_5, %c0_6] : memref<1x128xf32, #tpu.memory_space<vmem>>, vector<1x128xf32>
    %7 = vector.shape_cast %6 : vector<1x128xf32> to vector<1x1x128xf32>
    %8 = vector.broadcast %7 : vector<1x1x128xf32> to vector<8x16x128xf32>
    %9 = arith.addf %5, %8 : vector<8x16x128xf32>
    %cst = arith.constant 0.000000e+00 : f32
    %10 = vector.broadcast %cst : f32 to vector<8x16x128xf32>
    %11 = arith.maximumf %9, %10 : vector<8x16x128xf32>
    %12 = vector.shape_cast %11 : vector<8x16x128xf32> to vector<128x128xf32>
    %c0_7 = arith.constant 0 : index
    %c0_8 = arith.constant 0 : index
    %13 = vector.load %arg6[%c0_7, %c0_8] : memref<128x128xf32, #tpu.memory_space<vmem>>, vector<128x128xf32>
    %cst_9 = arith.constant dense<0.000000e+00> : vector<128x128xf32>
    %14 = tpu.matmul %12, %13, %cst_9 {dimension_numbers = #tpu.dot_dimension_numbers<[1], [0], [0], [1], [0, 0, 1, 1], [], []>} : vector<128x128xf32>, vector<128x128xf32>, vector<128x128xf32> -> vector<128x128xf32>
    %c0_10 = arith.constant 0 : index
    %c0_11 = arith.constant 0 : index
    %15 = vector.load %arg7[%c0_10, %c0_11] : memref<1x128xf32, #tpu.memory_space<vmem>>, vector<1x128xf32>
    %16 = vector.broadcast %15 : vector<1x128xf32> to vector<128x128xf32>
    %17 = arith.mulf %14, %16 : vector<128x128xf32>
    %c0_12 = arith.constant 0 : index
    %c0_13 = arith.constant 0 : index
    %18 = vector.load %arg8[%c0_12, %c0_13] : memref<1x128xf32, #tpu.memory_space<vmem>>, vector<1x128xf32>
    %19 = vector.broadcast %18 : vector<1x128xf32> to vector<128x128xf32>
    %20 = arith.addf %17, %19 : vector<128x128xf32>
    %c0_14 = arith.constant 0 : index
    %c0_15 = arith.constant 0 : index
    %c0_16 = arith.constant 0 : index
    %c0_17 = arith.constant 0 : index
    %21 = vector.load %arg3[%c0_14, %c0_15, %c0_16, %c0_17] : memref<1x8x16x128xf32, #tpu.memory_space<vmem>>, vector<1x8x16x128xf32>
    %22 = vector.shape_cast %21 : vector<1x8x16x128xf32> to vector<8x16x128xf32>
    %23 = vector.shape_cast %20 : vector<128x128xf32> to vector<8x16x128xf32>
    %24 = arith.addf %22, %23 : vector<8x16x128xf32>
    %c0_18 = arith.constant 0 : index
    %c0_19 = arith.constant 0 : index
    %c0_20 = arith.constant 0 : index
    %c0_21 = arith.constant 0 : index
    %25 = vector.load %arg9[%c0_18, %c0_19, %c0_20, %c0_21] : memref<1x8x16x128xf32, #tpu.memory_space<vmem>>, vector<1x8x16x128xf32>
    %26 = vector.shape_cast %25 : vector<1x8x16x128xf32> to vector<8x16x128xf32>
    %27 = vector.shape_cast %24 : vector<8x16x128xf32> to vector<1x8x16x128xf32>
    tpu.vector_store %arg9[%c0_18, %c0_19, %c0_20, %c0_21], %27 {strides = array<i32>} : memref<1x8x16x128xf32, #tpu.memory_space<vmem>>, vector<1x8x16x128xf32>,
    return
  }
  func.func @transform_0(%arg0: i32, %arg1: i32) -> (i32, i32, i32, i32) {
    %c0_i32 = arith.constant 0 : i32
    %c0_i32_0 = arith.constant 0 : i32
    %c0_i32_1 = arith.constant 0 : i32
    return %arg0, %arg1, %c0_i32, %c0_i32_0 : i32, i32, i32, i32
  }
  func.func @transform_1(%arg0: i32, %arg1: i32) -> (i32, i32, i32, i32) {
    %c0_i32 = arith.constant 0 : i32
    %c0_i32_0 = arith.constant 0 : i32
    %c0_i32_1 = arith.constant 0 : i32
    return %arg0, %arg1, %c0_i32, %c0_i32_0 : i32, i32, i32, i32
  }
  func.func @transform_2(%arg0: i32, %arg1: i32) -> (i32, i32) {
    %c0_i32 = arith.constant 0 : i32
    %c0_i32_0 = arith.constant 0 : i32
    %c0_i32_1 = arith.constant 0 : i32
    return %c0_i32, %c0_i32_0 : i32, i32
  }
  func.func @transform_3(%arg0: i32, %arg1: i32) -> (i32, i32) {
    %c0_i32 = arith.constant 0 : i32
    %c0_i32_0 = arith.constant 0 : i32
    %c0_i32_1 = arith.constant 0 : i32
    return %c0_i32, %c0_i32_0 : i32, i32
  }
  func.func @transform_4(%arg0: i32, %arg1: i32) -> (i32, i32) {
    %c0_i32 = arith.constant 0 : i32
    %c0_i32_0 = arith.constant 0 : i32
    %c0_i32_1 = arith.constant 0 : i32
    return %c0_i32, %c0_i32_0 : i32, i32
  }
  func.func @transform_5(%arg0: i32, %arg1: i32) -> (i32, i32) {
    %c0_i32 = arith.constant 0 : i32
    %c0_i32_0 = arith.constant 0 : i32
    %c0_i32_1 = arith.constant 0 : i32
    return %c0_i32, %c0_i32_0 : i32, i32
  }
  func.func @transform_6(%arg0: i32, %arg1: i32) -> (i32, i32) {
    %c0_i32 = arith.constant 0 : i32
    %c0_i32_0 = arith.constant 0 : i32
    %c0_i32_1 = arith.constant 0 : i32
    return %c0_i32, %c0_i32_0 : i32, i32
  }
  func.func @transform_7(%arg0: i32, %arg1: i32) -> (i32, i32, i32, i32) {
    %c0_i32 = arith.constant 0 : i32
    %c0_i32_0 = arith.constant 0 : i32
    %c0_i32_1 = arith.constant 0 : i32
    return %arg0, %arg1, %c0_i32, %c0_i32_0 : i32, i32, i32, i32
  }
}

module attributes {stable_mosaic.version = 11 : i64} {
  func.func @_bn1_conv1x1_stats_kernel(%arg0: i32, %arg1: i32, %arg2: memref<1x8x16x128xf32, #tpu.memory_space<vmem>>, %arg3: memref<1x128xf32, #tpu.memory_space<vmem>>, %arg4: memref<1x128xf32, #tpu.memory_space<vmem>>, %arg5: memref<128x128xf32, #tpu.memory_space<vmem>>, %arg6: memref<1x1x2x128xf32, #tpu.memory_space<vmem>>) attributes {dimension_semantics = [#tpu.dimension_semantics<parallel>, #tpu.dimension_semantics<parallel>], iteration_bounds = array<i64: 2, 2>, scalar_prefetch = 0 : i64, scratch_operands = 0 : i64, tpu.core_type = #tpu.core_type<tc>, window_params = [{transform_indices = @transform_0, window_bounds = array<i64: 1, 8, 16, 128>}, {pipeline_mode = #tpu.pipeline_mode<synchronous>, transform_indices = @transform_1, window_bounds = array<i64: 1, 128>}, {pipeline_mode = #tpu.pipeline_mode<synchronous>, transform_indices = @transform_2, window_bounds = array<i64: 1, 128>}, {pipeline_mode = #tpu.pipeline_mode<synchronous>, transform_indices = @transform_3, window_bounds = array<i64: 128, 128>}, {transform_indices = @transform_4, window_bounds = array<i64: 1, 1, 2, 128>}]} {
    %c0 = arith.constant 0 : index
    %c0_0 = arith.constant 0 : index
    %c0_1 = arith.constant 0 : index
    %c0_2 = arith.constant 0 : index
    %0 = vector.load %arg2[%c0, %c0_0, %c0_1, %c0_2] : memref<1x8x16x128xf32, #tpu.memory_space<vmem>>, vector<1x8x16x128xf32>
    %1 = vector.shape_cast %0 : vector<1x8x16x128xf32> to vector<8x16x128xf32>
    %c0_3 = arith.constant 0 : index
    %c0_4 = arith.constant 0 : index
    %2 = vector.load %arg3[%c0_3, %c0_4] : memref<1x128xf32, #tpu.memory_space<vmem>>, vector<1x128xf32>
    %3 = vector.shape_cast %2 : vector<1x128xf32> to vector<1x1x128xf32>
    %4 = vector.broadcast %3 : vector<1x1x128xf32> to vector<8x16x128xf32>
    %5 = arith.mulf %1, %4 : vector<8x16x128xf32>
    %c0_5 = arith.constant 0 : index
    %c0_6 = arith.constant 0 : index
    %6 = vector.load %arg4[%c0_5, %c0_6] : memref<1x128xf32, #tpu.memory_space<vmem>>, vector<1x128xf32>
    %7 = vector.shape_cast %6 : vector<1x128xf32> to vector<1x1x128xf32>
    %8 = vector.broadcast %7 : vector<1x1x128xf32> to vector<8x16x128xf32>
    %9 = arith.addf %5, %8 : vector<8x16x128xf32>
    %cst = arith.constant 0.000000e+00 : f32
    %10 = vector.broadcast %cst : f32 to vector<8x16x128xf32>
    %11 = arith.maximumf %9, %10 : vector<8x16x128xf32>
    %12 = vector.shape_cast %11 : vector<8x16x128xf32> to vector<128x128xf32>
    %c0_7 = arith.constant 0 : index
    %c0_8 = arith.constant 0 : index
    %13 = vector.load %arg5[%c0_7, %c0_8] : memref<128x128xf32, #tpu.memory_space<vmem>>, vector<128x128xf32>
    %cst_9 = arith.constant dense<0.000000e+00> : vector<128x128xf32>
    %14 = tpu.matmul %12, %13, %cst_9 {dimension_numbers = #tpu.dot_dimension_numbers<[1], [0], [0], [1], [0, 0, 1, 1], [], []>} : vector<128x128xf32>, vector<128x128xf32>, vector<128x128xf32> -> vector<128x128xf32>
    %cst_10 = arith.constant dense<0.000000e+00> : vector<128xf32>
    %15 = vector.multi_reduction <add>, %14, %cst_10 [0] : vector<128x128xf32> to vector<128xf32>
    %16 = vector.shape_cast %15 : vector<128xf32> to vector<1x128xf32>
    %17 = arith.mulf %14, %14 : vector<128x128xf32>
    %cst_11 = arith.constant dense<0.000000e+00> : vector<128xf32>
    %18 = vector.multi_reduction <add>, %17, %cst_11 [0] : vector<128x128xf32> to vector<128xf32>
    %19 = vector.shape_cast %18 : vector<128xf32> to vector<1x128xf32>
    %20 = tpu.concatenate %16, %19 in 0 : vector<1x128xf32>, vector<1x128xf32> -> vector<2x128xf32>
    %c0_12 = arith.constant 0 : index
    %c0_13 = arith.constant 0 : index
    %c0_14 = arith.constant 0 : index
    %c0_15 = arith.constant 0 : index
    %21 = vector.load %arg6[%c0_12, %c0_13, %c0_14, %c0_15] : memref<1x1x2x128xf32, #tpu.memory_space<vmem>>, vector<1x1x2x128xf32>
    %22 = vector.shape_cast %21 : vector<1x1x2x128xf32> to vector<2x128xf32>
    %23 = vector.shape_cast %20 : vector<2x128xf32> to vector<1x1x2x128xf32>
    tpu.vector_store %arg6[%c0_12, %c0_13, %c0_14, %c0_15], %23 {strides = array<i32>} : memref<1x1x2x128xf32, #tpu.memory_space<vmem>>, vector<1x1x2x128xf32>,
    return
  }
  func.func @transform_0(%arg0: i32, %arg1: i32) -> (i32, i32, i32, i32) {
    %c0_i32 = arith.constant 0 : i32
    %c0_i32_0 = arith.constant 0 : i32
    %c0_i32_1 = arith.constant 0 : i32
    return %arg0, %arg1, %c0_i32, %c0_i32_0 : i32, i32, i32, i32
  }
  func.func @transform_1(%arg0: i32, %arg1: i32) -> (i32, i32) {
    %c0_i32 = arith.constant 0 : i32
    %c0_i32_0 = arith.constant 0 : i32
    %c0_i32_1 = arith.constant 0 : i32
    return %c0_i32, %c0_i32_0 : i32, i32
  }
  func.func @transform_2(%arg0: i32, %arg1: i32) -> (i32, i32) {
    %c0_i32 = arith.constant 0 : i32
    %c0_i32_0 = arith.constant 0 : i32
    %c0_i32_1 = arith.constant 0 : i32
    return %c0_i32, %c0_i32_0 : i32, i32
  }
  func.func @transform_3(%arg0: i32, %arg1: i32) -> (i32, i32) {
    %c0_i32 = arith.constant 0 : i32
    %c0_i32_0 = arith.constant 0 : i32
    %c0_i32_1 = arith.constant 0 : i32
    return %c0_i32, %c0_i32_0 : i32, i32
  }
  func.func @transform_4(%arg0: i32, %arg1: i32) -> (i32, i32, i32, i32) {
    %c0_i32 = arith.constant 0 : i32
    %c0_i32_0 = arith.constant 0 : i32
    %c0_i32_1 = arith.constant 0 : i32
    return %arg0, %arg1, %c0_i32, %c0_i32_0 : i32, i32, i32, i32
  }
}

</mosaic_0001>

<llo_original>
// kernel: resblock_forward.5
$region0: #{resblock_forward.5}
  #allocation0 [shape = 'u32[]', space=smem, size = 0x4, offset = 0x4, fixed_abs, tag = 'smem constant byte address 0x4 - core index']
  #allocation1 [shape = 'u32[144,128]{1,0:T(1,128)}', space=vmem, size = 0x12000, scoped, tag = 'internal scratch']
  %s0 = inlined_call_operand.vmem [shape: f32[2,16,16,128], index: 0, kind: input, shape index: {}]
  %s1 = inlined_call_operand.vmem [shape: f32[2,16,16,128], index: 1, kind: input, shape index: {}, may-alias: {1,7}]
  %s2 = inlined_call_operand.vmem [shape: f32[1,128], index: 2, kind: input, shape index: {}]
  %s3 = inlined_call_operand.vmem [shape: f32[1,128], index: 3, kind: input, shape index: {}]
  %s4 = inlined_call_operand.vmem [shape: f32[128,128], index: 4, kind: input, shape index: {}]
  %s5 = inlined_call_operand.vmem [shape: f32[1,128], index: 5, kind: input, shape index: {}]
  %s6 = inlined_call_operand.vmem [shape: f32[1,128], index: 6, kind: input, shape index: {}]
  %s7 = inlined_call_operand.vmem [shape: f32[2,16,16,128], index: 7, kind: output, shape index: {}, may-alias: {1,7}]
  %s8 = sld [smem:[#allocation0]]
  $region61: #{resblock_forward.5} parent=0
    _
  %s10 = ssub.s32 1, %s8
  %s11 = scalar_select 0, %s10, %s8
  loop: start=0, step=1, limit=6
  $region2: #{resblock_forward.5} parent=0 // loop_pre_header
    _
  $region3: #{resblock_forward.5} parent=0 // loop_header
    %s13 = sphi 0, %s17
    %p14 = scmp.ge.s32.totalorder %s13, 6
    %s20 = sphi 0, %s32
    %s21 = sphi 0, %s28
    %s22 = sphi 0, %s20
    %s23 = sphi 0, %s21
    %s24 = sphi 0, %s22
    %s25 = sphi 0, %s23
    %s37 = sphi 0, %s39
    %s40 = sphi 0, %s37
    %s41 = sphi 0, %s40
    %s57 = sphi 0, %s41
    %s65 = sphi 0, %s67
    %s68 = sphi 0, %s65
    %s69 = sphi 0, %s68
    %s85 = sphi 0, %s69
    %s89 = sphi 0, %s89
    %s91 = sphi 0, %s89
    %s92 = sphi 0, %s91
    %s106 = sphi 0, %s92
    %s110 = sphi 0, %s110
    %s112 = sphi 0, %s110
    %s113 = sphi 0, %s112
    %s127 = sphi 0, %s113
    %s131 = sphi 0, %s131
    %s133 = sphi 0, %s131
    %s134 = sphi 0, %s133
    %s148 = sphi 0, %s134
    %s152 = sphi 0, %s152
    %s154 = sphi 0, %s152
    %s155 = sphi 0, %s154
    %s169 = sphi 0, %s155
    %s173 = sphi 0, %s173
    %s175 = sphi 0, %s173
    %s176 = sphi 0, %s175
    %s190 = sphi 0, %s176
    %s198 = sphi 0, %s200
    %s201 = sphi 0, %s198
    %s202 = sphi 0, %s201
    %s218 = sphi 0, %s202
  $region4: #{resblock_forward.5} parent=0 // loop_header_branch
    %16 = sbr.rel (%p14) target = $region8
  $region5: #{resblock_forward.5} parent=0 // loop_body
    %s18 = ssub.s32 %s13, 1
    %s19 = ssub.s32 %s13, 2
    %s26 = sadd.s32 1, %s21
    %p27 = scmp.ge.s32.totalorder %s26, 2
    %s28 = scalar_select %p27, 0, %s26
    %s29 = sadd.s32 1, %s20
    %s30 = scalar_select %p27, %s29, %s20
    %p31 = scmp.ge.s32.totalorder %s30, 2
    %s32 = scalar_select %p31, 0, %s30
    %s33 = ssub.s32 %s20, %s32
    %s34 = ssub.s32 %s21, %s28
    %s35 = sor.u32 %s33, %s34
    %p36 = scmp.eq.s32.totalorder %s35, 0
    %s38 = sadd.s32 %s37, 1
    %s39 = scalar_select %p36, %s37, %s38
    %p42 = pneg %p36
    %p43 = scmp.eq.s32.totalorder %s13, 3
    %p44 = por %p42, %p43
    %p45 = scmp.ne.s32.totalorder %s37, %s40
    %p46 = scmp.eq.s32.totalorder %s13, 0
    %p47 = por %p45, %p46
    %p48 = scmp.ne.s32.totalorder %s37, %s40
    %p49 = scmp.eq.s32.totalorder %s18, 3
    %p50 = por %p48, %p49
    %p51 = scmp.ne.s32.totalorder %s40, %s41
    %p52 = scmp.eq.s32.totalorder %s18, 0
    %p53 = por %p51, %p52
    %p54 = scmp.ne.s32.totalorder %s40, %s41
    %p55 = scmp.eq.s32.totalorder %s19, 3
    %p56 = por %p54, %p55
    %p58 = scmp.ne.s32.totalorder %s41, %s57
    %p59 = scmp.eq.s32.totalorder %s19, 0
    %p60 = por %p58, %p59
    %s61 = ssub.s32 %s20, %s32
    %s62 = ssub.s32 %s21, %s28
    %s63 = sor.u32 %s61, %s62
    %p64 = scmp.eq.s32.totalorder %s63, 0
    %s66 = sadd.s32 %s65, 1
    %s67 = scalar_select %p64, %s65, %s66
    %p70 = pneg %p64
    %p71 = scmp.eq.s32.totalorder %s13, 3
    %p72 = por %p70, %p71
    %p73 = scmp.ne.s32.totalorder %s65, %s68
    %p74 = scmp.eq.s32.totalorder %s13, 0
    %p75 = por %p73, %p74
    %p76 = scmp.ne.s32.totalorder %s65, %s68
    %p77 = scmp.eq.s32.totalorder %s18, 3
    %p78 = por %p76, %p77
    %p79 = scmp.ne.s32.totalorder %s68, %s69
    %p80 = scmp.eq.s32.totalorder %s18, 0
    %p81 = por %p79, %p80
    %p82 = scmp.ne.s32.totalorder %s68, %s69
    %p83 = scmp.eq.s32.totalorder %s19, 3
    %p84 = por %p82, %p83
    %p86 = scmp.ne.s32.totalorder %s69, %s85
    %p87 = scmp.eq.s32.totalorder %s19, 0
    %p88 = por %p86, %p87
    %s90 = sadd.s32 %s89, 1
    %p93 = scmp.eq.s32.totalorder %s13, 3
    %p94 = scmp.ne.s32.totalorder %s89, %s91
    %p95 = scmp.eq.s32.totalorder %s13, 0
    %p96 = por %p94, %p95
    %p97 = scmp.ne.s32.totalorder %s89, %s91
    %p98 = scmp.eq.s32.totalorder %s18, 3
    %p99 = por %p97, %p98
    %p100 = scmp.ne.s32.totalorder %s91, %s92
    %p101 = scmp.eq.s32.totalorder %s18, 0
    %p102 = por %p100, %p101
    %p103 = scmp.ne.s32.totalorder %s91, %s92
    %p104 = scmp.eq.s32.totalorder %s19, 3
    %p105 = por %p103, %p104
    %p107 = scmp.ne.s32.totalorder %s92, %s106
    %p108 = scmp.eq.s32.totalorder %s19, 0
    %p109 = por %p107, %p108
    %s111 = sadd.s32 %s110, 1
    %p114 = scmp.eq.s32.totalorder %s13, 3
    %p115 = scmp.ne.s32.totalorder %s110, %s112
    %p116 = scmp.eq.s32.totalorder %s13, 0
    %p117 = por %p115, %p116
    %p118 = scmp.ne.s32.totalorder %s110, %s112
    %p119 = scmp.eq.s32.totalorder %s18, 3
    %p120 = por %p118, %p119
    %p121 = scmp.ne.s32.totalorder %s112, %s113
    %p122 = scmp.eq.s32.totalorder %s18, 0
    %p123 = por %p121, %p122
    %p124 = scmp.ne.s32.totalorder %s112, %s113
    %p125 = scmp.eq.s32.totalorder %s19, 3
    %p126 = por %p124, %p125
    %p128 = scmp.ne.s32.totalorder %s113, %s127
    %p129 = scmp.eq.s32.totalorder %s19, 0
    %p130 = por %p128, %p129
    %s132 = sadd.s32 %s131, 1
    %p135 = scmp.eq.s32.totalorder %s13, 3
    %p136 = scmp.ne.s32.totalorder %s131, %s133
    %p137 = scmp.eq.s32.totalorder %s13, 0
    %p138 = por %p136, %p137
    %p139 = scmp.ne.s32.totalorder %s131, %s133
    %p140 = scmp.eq.s32.totalorder %s18, 3
    %p141 = por %p139, %p140
    %p142 = scmp.ne.s32.totalorder %s133, %s134
    %p143 = scmp.eq.s32.totalorder %s18, 0
    %p144 = por %p142, %p143
    %p145 = scmp.ne.s32.totalorder %s133, %s134
    %p146 = scmp.eq.s32.totalorder %s19, 3
    %p147 = por %p145, %p146
    %p149 = scmp.ne.s32.totalorder %s134, %s148
    %p150 = scmp.eq.s32.totalorder %s19, 0
    %p151 = por %p149, %p150
    %s153 = sadd.s32 %s152, 1
    %p156 = scmp.eq.s32.totalorder %s13, 3
    %p157 = scmp.ne.s32.totalorder %s152, %s154
    %p158 = scmp.eq.s32.totalorder %s13, 0
    %p159 = por %p157, %p158
    %p160 = scmp.ne.s32.totalorder %s152, %s154
    %p161 = scmp.eq.s32.totalorder %s18, 3
    %p162 = por %p160, %p161
    %p163 = scmp.ne.s32.totalorder %s154, %s155
    %p164 = scmp.eq.s32.totalorder %s18, 0
    %p165 = por %p163, %p164
    %p166 = scmp.ne.s32.totalorder %s154, %s155
    %p167 = scmp.eq.s32.totalorder %s19, 3
    %p168 = por %p166, %p167
    %p170 = scmp.ne.s32.totalorder %s155, %s169
    %p171 = scmp.eq.s32.totalorder %s19, 0
    %p172 = por %p170, %p171
    %s174 = sadd.s32 %s173, 1
    %p177 = scmp.eq.s32.totalorder %s13, 3
    %p178 = scmp.ne.s32.totalorder %s173, %s175
    %p179 = scmp.eq.s32.totalorder %s13, 0
    %p180 = por %p178, %p179
    %p181 = scmp.ne.s32.totalorder %s173, %s175
    %p182 = scmp.eq.s32.totalorder %s18, 3
    %p183 = por %p181, %p182
    %p184 = scmp.ne.s32.totalorder %s175, %s176
    %p185 = scmp.eq.s32.totalorder %s18, 0
    %p186 = por %p184, %p185
    %p187 = scmp.ne.s32.totalorder %s175, %s176
    %p188 = scmp.eq.s32.totalorder %s19, 3
    %p189 = por %p187, %p188
    %p191 = scmp.ne.s32.totalorder %s176, %s190
    %p192 = scmp.eq.s32.totalorder %s19, 0
    %p193 = por %p191, %p192
    %s194 = ssub.s32 %s20, %s32
    %s195 = ssub.s32 %s21, %s28
    %s196 = sor.u32 %s194, %s195
    %p197 = scmp.eq.s32.totalorder %s196, 0
    %s199 = sadd.s32 %s198, 1
    %s200 = scalar_select %p197, %s198, %s199
    %p203 = pneg %p197
    %p204 = scmp.eq.s32.totalorder %s13, 3
    %p205 = por %p203, %p204
    %p206 = scmp.ne.s32.totalorder %s198, %s201
    %p207 = scmp.eq.s32.totalorder %s13, 0
    %p208 = por %p206, %p207
    %p209 = scmp.ne.s32.totalorder %s198, %s201
    %p210 = scmp.eq.s32.totalorder %s18, 3
    %p211 = por %p209, %p210
    %p212 = scmp.ne.s32.totalorder %s201, %s202
    %p213 = scmp.eq.s32.totalorder %s18, 0
    %p214 = por %p212, %p213
    %p215 = scmp.ne.s32.totalorder %s201, %s202
    %p216 = scmp.eq.s32.totalorder %s19, 3
    %p217 = por %p215, %p216
    %p219 = scmp.ne.s32.totalorder %s202, %s218
    %p220 = scmp.eq.s32.totalorder %s19, 0
    %p221 = por %p219, %p220
    %p222 = scmp.le.s32.totalorder 1, %s13
    %p223 = scmp.lt.s32.totalorder %s13, 5
    %p224 = pnand %p222, %p223
    %p225 = pneg %p224
    // Predicated region
    $region9: #{resblock_forward.5} parent=5 // pred_check
      _
    $region10: #{resblock_forward.5} parent=5 // pred_check_branch
      %227 = sbr.rel (%p224) target = $region12
    $region11: #{resblock_forward.5} parent=5 // pred_region
      %s228 = ssub.s32 %s13, 1
      // Predicated region
      $region13: #{resblock_forward.5} parent=11 // pred_check
        %p229 = pneg %p102
      $region14: #{resblock_forward.5} parent=11 // pred_check_branch
        %231 = sbr.rel (%p229) target = $region16
      $region15: #{resblock_forward.5} parent=11 // pred_region
        _
      $region16: #{resblock_forward.5} parent=11 // pred_fallthru
        _
      // Predicated region
      $region17: #{resblock_forward.5} parent=11 // pred_check
        %p232 = pneg %p123
      $region18: #{resblock_forward.5} parent=11 // pred_check_branch
        %234 = sbr.rel (%p232) target = $region20
      $region19: #{resblock_forward.5} parent=11 // pred_region
        _
      $region20: #{resblock_forward.5} parent=11 // pred_fallthru
        _
      // Predicated region
      $region21: #{resblock_forward.5} parent=11 // pred_check
        %p235 = pneg %p144
      $region22: #{resblock_forward.5} parent=11 // pred_check_branch
        %237 = sbr.rel (%p235) target = $region24
      $region23: #{resblock_forward.5} parent=11 // pred_region
        _
      $region24: #{resblock_forward.5} parent=11 // pred_fallthru
        _
      // Predicated region
      $region25: #{resblock_forward.5} parent=11 // pred_check
        %p238 = pneg %p165
      $region26: #{resblock_forward.5} parent=11 // pred_check_branch
        %240 = sbr.rel (%p238) target = $region28
      $region27: #{resblock_forward.5} parent=11 // pred_region
        _
      $region28: #{resblock_forward.5} parent=11 // pred_fallthru
        _
      // Predicated region
      $region29: #{resblock_forward.5} parent=11 // pred_check
        %p241 = pneg %p186
      $region30: #{resblock_forward.5} parent=11 // pred_check_branch
        %243 = sbr.rel (%p241) target = $region32
      $region31: #{resblock_forward.5} parent=11 // pred_region
        _
      $region32: #{resblock_forward.5} parent=11 // pred_fallthru
        _
    $region12: #{resblock_forward.5} parent=5 // pred_fallthru
      _
    %p244 = scmp.lt.s32.totalorder %s13, 4
    // Predicated region
    $region33: #{resblock_forward.5} parent=5 // pred_check
      %p245 = pneg %p244
    $region34: #{resblock_forward.5} parent=5 // pred_check_branch
      %247 = sbr.rel (%p245) target = $region36
    $region35: #{resblock_forward.5} parent=5 // pred_region
      // Predicated region
      $region37: #{resblock_forward.5} parent=35 // pred_check
        %p248 = pneg %p47
      $region38: #{resblock_forward.5} parent=35 // pred_check_branch
        %250 = sbr.rel (%p248) target = $region40
      $region39: #{resblock_forward.5} parent=35 // pred_region
        %s251 = smul.u32 8, %s21
        %p252 = scmp.lt.s32.totalorder %s20, 1
        %s253 = scalar_select %p252, %s20, 1
        %p254 = scmp.lt.s32.totalorder %s251, 15
        %s255 = scalar_select %p254, %s251, 15
        %s256 = smul.addr %s255, 2
        %s257 = smul.addr %s253, 32
        %s258 = sadd.s32 %s256, %s257
        %s259 = smul.addr %s258, 8
        %s260 = scalar_lea.vmem %s0, %s259
        %s261 = smul.u32 8, %s21
      $region40: #{resblock_forward.5} parent=35 // pred_fallthru
        _
      // Predicated region
      $region41: #{resblock_forward.5} parent=35 // pred_check
        %p262 = pneg %p75
      $region42: #{resblock_forward.5} parent=35 // pred_check_branch
        %264 = sbr.rel (%p262) target = $region44
      $region43: #{resblock_forward.5} parent=35 // pred_region
        %s265 = smul.u32 8, %s21
        %p266 = scmp.lt.s32.totalorder %s20, 1
        %s267 = scalar_select %p266, %s20, 1
        %p268 = scmp.lt.s32.totalorder %s265, 15
        %s269 = scalar_select %p268, %s265, 15
        %s270 = smul.addr %s269, 2
        %s271 = smul.addr %s267, 32
        %s272 = sadd.s32 %s270, %s271
        %s273 = smul.addr %s272, 8
        %s274 = scalar_lea.vmem %s1, %s273
        %s275 = smul.u32 8, %s21
      $region44: #{resblock_forward.5} parent=35 // pred_fallthru
        _
    $region36: #{resblock_forward.5} parent=5 // pred_fallthru
      _
    %p276 = scmp.le.s32.totalorder 1, %s13
    %p277 = scmp.lt.s32.totalorder %s13, 5
    %p278 = pnand %p276, %p277
    %p279 = pneg %p278
    // Predicated region
    $region45: #{resblock_forward.5} parent=5 // pred_check
      _
    $region46: #{resblock_forward.5} parent=5 // pred_check_branch
      %281 = sbr.rel (%p278) target = $region48
    $region47: #{resblock_forward.5} parent=5 // pred_region
      %s282 = ssub.s32 %s13, 1
      %s283 = smul.u32 8, %s23
      %p284 = scmp.lt.s32.totalorder %s22, 1
      %s285 = scalar_select %p284, %s22, 1
      %p286 = scmp.lt.s32.totalorder %s283, 15
      %s287 = scalar_select %p286, %s283, 15
      %s288 = smul.addr %s287, 2
      %s289 = smul.addr %s285, 32
      %s290 = sadd.s32 %s288, %s289
      %s291 = smul.addr %s290, 8
      %s292 = scalar_lea.vmem %s0, %s291
      %p293 = pneg %p53
      %p294 = pneg %p50
      %s295 = smul.u32 8, %s23
      %p296 = scmp.lt.s32.totalorder %s22, 1
      %s297 = scalar_select %p296, %s22, 1
      %p298 = scmp.lt.s32.totalorder %s295, 15
      %s299 = scalar_select %p298, %s295, 15
      %s300 = smul.addr %s299, 2
      %s301 = smul.addr %s297, 32
      %s302 = sadd.s32 %s300, %s301
      %s303 = smul.addr %s302, 8
      %s304 = scalar_lea.vmem %s1, %s303
      %p305 = pneg %p81
      %p306 = pneg %p78
      %p307 = pneg %p102
      %p308 = pneg %p99
      %p309 = pneg %p123
      %p310 = pneg %p120
      %p311 = pneg %p144
      %p312 = pneg %p141
      %p313 = pneg %p165
      %p314 = pneg %p162
      %p315 = pneg %p186
      %p316 = pneg %p183
      %p317 = pneg %p214
      %p318 = pneg %p211
      %s319 = smul.u32 8, %s23
      %p320 = scmp.lt.s32.totalorder %s22, 1
      %s321 = scalar_select %p320, %s22, 1
      %p322 = scmp.lt.s32.totalorder %s319, 15
      %s323 = scalar_select %p322, %s319, 15
      %s324 = smul.addr %s323, 2
      %s325 = smul.addr %s321, 32
      %s326 = sadd.s32 %s324, %s325
      %s327 = smul.addr %s326, 8
      %s328 = scalar_lea.vmem %s7, %s327
      %s329 = smul.u32 8, %s23
      %p330 = scmp.lt.s32.totalorder %s22, 1
      %s331 = scalar_select %p330, %s22, 1
      %p332 = scmp.lt.s32.totalorder %s329, 15
      %s333 = scalar_select %p332, %s329, 15
      %s334 = smul.addr %s333, 2
      %s335 = smul.addr %s331, 32
      %s336 = sadd.s32 %s334, %s335
      %s337 = smul.addr %s336, 8
      %s338 = scalar_lea.vmem %s0, %s337
      %s339 = smul.u32 8, %s23
      %s340 = smul.u32 8, %s23
      %p341 = scmp.lt.s32.totalorder %s22, 1
      %s342 = scalar_select %p341, %s22, 1
      %p343 = scmp.lt.s32.totalorder %s340, 15
      %s344 = scalar_select %p343, %s340, 15
      %s345 = smul.addr %s344, 2
      %s346 = smul.addr %s342, 32
      %s347 = sadd.s32 %s345, %s346
      %s348 = smul.addr %s347, 8
      %s349 = scalar_lea.vmem %s1, %s348
      %s350 = smul.u32 8, %s23
      %s351 = smul.u32 8, %s23
      %p352 = scmp.lt.s32.totalorder %s22, 1
      %s353 = scalar_select %p352, %s22, 1
      %p354 = scmp.lt.s32.totalorder %s351, 15
      %s355 = scalar_select %p354, %s351, 15
      %s356 = smul.addr %s355, 2
      %s357 = smul.addr %s353, 32
      %s358 = sadd.s32 %s356, %s357
      %s359 = smul.addr %s358, 8
      %s360 = scalar_lea.vmem %s7, %s359
      %s361 = smul.u32 8, %s23
      %v362 = vld [vmem:[%s338] sm:$0xff]
      %v363 = vld [vmem:[%s338 + $0x8] sm:$0xff]
      %v364 = vld [vmem:[%s338 + $0x10] sm:$0xff]
      %v365 = vld [vmem:[%s338 + $0x18] sm:$0xff]
      %v366 = vld [vmem:[%s338 + $0x20] sm:$0xff]
      %v367 = vld [vmem:[%s338 + $0x28] sm:$0xff]
      %v368 = vld [vmem:[%s338 + $0x30] sm:$0xff]
      %v369 = vld [vmem:[%s338 + $0x38] sm:$0xff]
      %v370 = vld [vmem:[%s338 + $0x40] sm:$0xff]
      %v371 = vld [vmem:[%s338 + $0x48] sm:$0xff]
      %v372 = vld [vmem:[%s338 + $0x50] sm:$0xff]
      %v373 = vld [vmem:[%s338 + $0x58] sm:$0xff]
      %v374 = vld [vmem:[%s338 + $0x60] sm:$0xff]
      %v375 = vld [vmem:[%s338 + $0x68] sm:$0xff]
      %v376 = vld [vmem:[%s338 + $0x70] sm:$0xff]
      %v377 = vld [vmem:[%s338 + $0x78] sm:$0xff]
      %v378 = vld [vmem:[%s2] sm:$0x1]
      %v380 = vlaneseq
      %v381 = vshrl.u32 %v380, 7
      %v382 = vsub.s32 0, %v381
      %v383 = vrot.slane %v378, %v382
      %v385 = vmul.f32 %v362, %v383
      %v386 = vmul.f32 %v363, %v383
      %v387 = vmul.f32 %v364, %v383
      %v388 = vmul.f32 %v365, %v383
      %v389 = vmul.f32 %v366, %v383
      %v390 = vmul.f32 %v367, %v383
      %v391 = vmul.f32 %v368, %v383
      %v392 = vmul.f32 %v369, %v383
      %v393 = vmul.f32 %v370, %v383
      %v394 = vmul.f32 %v371, %v383
      %v395 = vmul.f32 %v372, %v383
      %v396 = vmul.f32 %v373, %v383
      %v397 = vmul.f32 %v374, %v383
      %v398 = vmul.f32 %v375, %v383
      %v399 = vmul.f32 %v376, %v383
      %v400 = vmul.f32 %v377, %v383
      %v401 = vld [vmem:[%s3] sm:$0x1]
      %v403 = vlaneseq
      %v404 = vshrl.u32 %v403, 7
      %v405 = vsub.s32 0, %v404
      %v406 = vrot.slane %v401, %v405
      %v408 = vadd.f32 %v385, %v406
      %v409 = vadd.f32 %v386, %v406
      %v410 = vadd.f32 %v387, %v406
      %v411 = vadd.f32 %v388, %v406
      %v412 = vadd.f32 %v389, %v406
      %v413 = vadd.f32 %v390, %v406
      %v414 = vadd.f32 %v391, %v406
      %v415 = vadd.f32 %v392, %v406
      %v416 = vadd.f32 %v393, %v406
      %v417 = vadd.f32 %v394, %v406
      %v418 = vadd.f32 %v395, %v406
      %v419 = vadd.f32 %v396, %v406
      %v420 = vadd.f32 %v397, %v406
      %v421 = vadd.f32 %v398, %v406
      %v422 = vadd.f32 %v399, %v406
      %v423 = vadd.f32 %v400, %v406
      %v424 = vmax.f32 %v408, 0.0
      %v425 = vmax.f32 %v409, 0.0
      %v426 = vmax.f32 %v410, 0.0
      %v427 = vmax.f32 %v411, 0.0
      %v428 = vmax.f32 %v412, 0.0
      %v429 = vmax.f32 %v413, 0.0
      %v430 = vmax.f32 %v414, 0.0
      %v431 = vmax.f32 %v415, 0.0
      %v432 = vmax.f32 %v416, 0.0
      %v433 = vmax.f32 %v417, 0.0
      %v434 = vmax.f32 %v418, 0.0
      %v435 = vmax.f32 %v419, 0.0
      %v436 = vmax.f32 %v420, 0.0
      %v437 = vmax.f32 %v421, 0.0
      %v438 = vmax.f32 %v422, 0.0
      %v439 = vmax.f32 %v423, 0.0
      %v440 = vld [vmem:[%s4] sm:$0xff]
      %v441 = vld [vmem:[%s4 + $0x8] sm:$0xff]
      %v442 = vld [vmem:[%s4 + $0x10] sm:$0xff]
      %v443 = vld [vmem:[%s4 + $0x18] sm:$0xff]
      %v444 = vld [vmem:[%s4 + $0x20] sm:$0xff]
      %v445 = vld [vmem:[%s4 + $0x28] sm:$0xff]
      %v446 = vld [vmem:[%s4 + $0x30] sm:$0xff]
      %v447 = vld [vmem:[%s4 + $0x38] sm:$0xff]
      %v448 = vld [vmem:[%s4 + $0x40] sm:$0xff]
      %v449 = vld [vmem:[%s4 + $0x48] sm:$0xff]
      %v450 = vld [vmem:[%s4 + $0x50] sm:$0xff]
      %v451 = vld [vmem:[%s4 + $0x58] sm:$0xff]
      %v452 = vld [vmem:[%s4 + $0x60] sm:$0xff]
      %v453 = vld [vmem:[%s4 + $0x68] sm:$0xff]
      %v454 = vld [vmem:[%s4 + $0x70] sm:$0xff]
      %v455 = vld [vmem:[%s4 + $0x78] sm:$0xff]
      %456 = vmatprep.subr.mxu0 0.0
      %457 = vmatpush1.msra.mxu0 %v440
      %458 = vmatprep.subr.mxu0 0.0
      %459 = vmatpush1.msra.mxu0 %v441
      %460 = vmatprep.subr.mxu0 0.0
      %461 = vmatpush1.msra.mxu0 %v442
      %462 = vmatprep.subr.mxu0 0.0
      %463 = vmatpush1.msra.mxu0 %v443
      %464 = vmatprep.subr.mxu0 0.0
      %465 = vmatpush1.msra.mxu0 %v444
      %466 = vmatprep.subr.mxu0 0.0
      %467 = vmatpush1.msra.mxu0 %v445
      %468 = vmatprep.subr.mxu0 0.0
      %469 = vmatpush1.msra.mxu0 %v446
      %470 = vmatprep.subr.mxu0 0.0
      %471 = vmatpush1.msra.mxu0 %v447
      %472 = vmatprep.subr.mxu0 0.0
      %473 = vmatpush1.msra.mxu0 %v448
      %474 = vmatprep.subr.mxu0 0.0
      %475 = vmatpush1.msra.mxu0 %v449
      %476 = vmatprep.subr.mxu0 0.0
      %477 = vmatpush1.msra.mxu0 %v450
      %478 = vmatprep.subr.mxu0 0.0
      %479 = vmatpush1.msra.mxu0 %v451
      %480 = vmatprep.subr.mxu0 0.0
      %481 = vmatpush1.msra.mxu0 %v452
      %482 = vmatprep.subr.mxu0 0.0
      %483 = vmatpush1.msra.mxu0 %v453
      %484 = vmatprep.subr.mxu0 0.0
      %485 = vmatpush1.msra.mxu0 %v454
      %486 = vmatprep.subr.mxu0 0.0
      %487 = vmatpush1.msra.mxu0 %v455
      %488 = vmatprep.subr.mxu0 0.0
      %489 = vmatpush1.msra.mxu0 0.0
      %490 = vmatprep.subr.mxu0 0.0
      %491 = vmatpush1.msra.mxu0 0.0
      %492 = vmatprep.subr.mxu0 0.0
      %493 = vmatpush1.msra.mxu0 0.0
      %494 = vmatprep.subr.mxu0 0.0
      %495 = vmatpush1.msra.mxu0 0.0
      %496 = vmatprep.subr.mxu0 0.0
      %497 = vmatpush1.msra.mxu0 0.0
      %498 = vmatprep.subr.mxu0 0.0
      %499 = vmatpush1.msra.mxu0 0.0
      %500 = vmatprep.subr.mxu0 0.0
      %501 = vmatpush1.msra.mxu0 0.0
      %502 = vmatprep.subr.mxu0 0.0
      %503 = vmatpush1.msra.mxu0 0.0
      %504 = vmatprep.subr.mxu0 0.0
      %505 = vmatpush1.msra.mxu0 0.0
      %506 = vmatprep.subr.mxu0 0.0
      %507 = vmatpush1.msra.mxu0 0.0
      %508 = vmatprep.subr.mxu0 0.0
      %509 = vmatpush1.msra.mxu0 0.0
      %510 = vmatprep.subr.mxu0 0.0
      %511 = vmatpush1.msra.mxu0 0.0
      %512 = vmatprep.subr.mxu0 0.0
      %513 = vmatpush1.msra.mxu0 0.0
      %514 = vmatprep.subr.mxu0 0.0
      %515 = vmatpush1.msra.mxu0 0.0
      %516 = vmatprep.subr.mxu0 0.0
      %517 = vmatpush1.msra.mxu0 0.0
      %518 = vmatprep.subr.mxu0 0.0
      %519 = vmatpush1.msra.mxu0 0.0
      %520 = vmatprep.mubr.f32.mxu0 0.0
      %521 = vmatmul.mubr.f32.gmra.mrb[0].mxu0 %v424
      %v522 = vpop.f32.mrb[0].mxu0
      %v523 = vadd.f32 0.0, %v522
      %v524 = vpop.f32.mrb[0].mxu0
      %525 = vmatprep.mubr.f32.mxu0 0.0
      %526 = vmatmul.mubr.f32.gmra.mrb[0].mxu0 %v425
      %v527 = vpop.f32.mrb[0].mxu0
      %v528 = vadd.f32 0.0, %v527
      %v529 = vpop.f32.mrb[0].mxu0
      %530 = vmatprep.mubr.f32.mxu0 0.0
      %531 = vmatmul.mubr.f32.gmra.mrb[0].mxu0 %v426
      %v532 = vpop.f32.mrb[0].mxu0
      %v533 = vadd.f32 0.0, %v532
      %v534 = vpop.f32.mrb[0].mxu0
      %535 = vmatprep.mubr.f32.mxu0 0.0
      %536 = vmatmul.mubr.f32.gmra.mrb[0].mxu0 %v427
      %v537 = vpop.f32.mrb[0].mxu0
      %v538 = vadd.f32 0.0, %v537
      %v539 = vpop.f32.mrb[0].mxu0
      %540 = vmatprep.mubr.f32.mxu0 0.0
      %541 = vmatmul.mubr.f32.gmra.mrb[0].mxu0 %v428
      %v542 = vpop.f32.mrb[0].mxu0
      %v543 = vadd.f32 0.0, %v542
      %v544 = vpop.f32.mrb[0].mxu0
      %545 = vmatprep.mubr.f32.mxu0 0.0
      %546 = vmatmul.mubr.f32.gmra.mrb[0].mxu0 %v429
      %v547 = vpop.f32.mrb[0].mxu0
      %v548 = vadd.f32 0.0, %v547
      %v549 = vpop.f32.mrb[0].mxu0
      %550 = vmatprep.mubr.f32.mxu0 0.0
      %551 = vmatmul.mubr.f32.gmra.mrb[0].mxu0 %v430
      %v552 = vpop.f32.mrb[0].mxu0
      %v553 = vadd.f32 0.0, %v552
      %v554 = vpop.f32.mrb[0].mxu0
      %555 = vmatprep.mubr.f32.mxu0 0.0
      %556 = vmatmul.mubr.f32.gmra.mrb[0].mxu0 %v431
      %v557 = vpop.f32.mrb[0].mxu0
      %v558 = vadd.f32 0.0, %v557
      %v559 = vpop.f32.mrb[0].mxu0
      %560 = vmatprep.mubr.f32.mxu0 0.0
      %561 = vmatmul.mubr.f32.gmra.mrb[0].mxu0 %v432
      %v562 = vpop.f32.mrb[0].mxu0
      %v563 = vadd.f32 0.0, %v562
      %v564 = vpop.f32.mrb[0].mxu0
      %565 = vmatprep.mubr.f32.mxu0 0.0
      %566 = vmatmul.mubr.f32.gmra.mrb[0].mxu0 %v433
      %v567 = vpop.f32.mrb[0].mxu0
      %v568 = vadd.f32 0.0, %v567
      %v569 = vpop.f32.mrb[0].mxu0
      %570 = vmatprep.mubr.f32.mxu0 0.0
      %571 = vmatmul.mubr.f32.gmra.mrb[0].mxu0 %v434
      %v572 = vpop.f32.mrb[0].mxu0
      %v573 = vadd.f32 0.0, %v572
      %v574 = vpop.f32.mrb[0].mxu0
      %575 = vmatprep.mubr.f32.mxu0 0.0
      %576 = vmatmul.mubr.f32.gmra.mrb[0].mxu0 %v435
      %v577 = vpop.f32.mrb[0].mxu0
      %v578 = vadd.f32 0.0, %v577
      %v579 = vpop.f32.mrb[0].mxu0
      %580 = vmatprep.mubr.f32.mxu0 0.0
      %581 = vmatmul.mubr.f32.gmra.mrb[0].mxu0 %v436
      %v582 = vpop.f32.mrb[0].mxu0
      %v583 = vadd.f32 0.0, %v582
      %v584 = vpop.f32.mrb[0].mxu0
      %585 = vmatprep.mubr.f32.mxu0 0.0
      %586 = vmatmul.mubr.f32.gmra.mrb[0].mxu0 %v437
      %v587 = vpop.f32.mrb[0].mxu0
      %v588 = vadd.f32 0.0, %v587
      %v589 = vpop.f32.mrb[0].mxu0
      %590 = vmatprep.mubr.f32.mxu0 0.0
      %591 = vmatmul.mubr.f32.gmra.mrb[0].mxu0 %v438
      %v592 = vpop.f32.mrb[0].mxu0
      %v593 = vadd.f32 0.0, %v592
      %v594 = vpop.f32.mrb[0].mxu0
      %595 = vmatprep.mubr.f32.mxu0 0.0
      %596 = vmatmul.mubr.f32.gmra.mrb[0].mxu0 %v439
      %v597 = vpop.f32.mrb[0].mxu0
      %v598 = vadd.f32 0.0, %v597
      %v599 = vpop.f32.mrb[0].mxu0
      %600 = vdwg.mxu0
      %v601 = vld [vmem:[%s5] sm:$0x1]
      %v603 = vlaneseq
      %v604 = vshrl.u32 %v603, 7
      %v605 = vsub.s32 0, %v604
      %v606 = vrot.slane %v601, %v605
      %v608 = vmul.f32 %v523, %v606
      %v609 = vmul.f32 %v528, %v606
      %v610 = vmul.f32 %v533, %v606
      %v611 = vmul.f32 %v538, %v606
      %v612 = vmul.f32 %v543, %v606
      %v613 = vmul.f32 %v548, %v606
      %v614 = vmul.f32 %v553, %v606
      %v615 = vmul.f32 %v558, %v606
      %v616 = vmul.f32 %v563, %v606
      %v617 = vmul.f32 %v568, %v606
      %v618 = vmul.f32 %v573, %v606
      %v619 = vmul.f32 %v578, %v606
      %v620 = vmul.f32 %v583, %v606
      %v621 = vmul.f32 %v588, %v606
      %v622 = vmul.f32 %v593, %v606
      %v623 = vmul.f32 %v598, %v606
      %v624 = vld [vmem:[%s6] sm:$0x1]
      %v626 = vlaneseq
      %v627 = vshrl.u32 %v626, 7
      %v628 = vsub.s32 0, %v627
      %v629 = vrot.slane %v624, %v628
      %v631 = vadd.f32 %v608, %v629
      %v632 = vadd.f32 %v609, %v629
      %v633 = vadd.f32 %v610, %v629
      %v634 = vadd.f32 %v611, %v629
      %v635 = vadd.f32 %v612, %v629
      %v636 = vadd.f32 %v613, %v629
      %v637 = vadd.f32 %v614, %v629
      %v638 = vadd.f32 %v615, %v629
      %v639 = vadd.f32 %v616, %v629
      %v640 = vadd.f32 %v617, %v629
      %v641 = vadd.f32 %v618, %v629
      %v642 = vadd.f32 %v619, %v629
      %v643 = vadd.f32 %v620, %v629
      %v644 = vadd.f32 %v621, %v629
      %v645 = vadd.f32 %v622, %v629
      %v646 = vadd.f32 %v623, %v629
      %v647 = vld [vmem:[%s349] sm:$0xff]
      %v648 = vld [vmem:[%s349 + $0x8] sm:$0xff]
      %v649 = vld [vmem:[%s349 + $0x10] sm:$0xff]
      %v650 = vld [vmem:[%s349 + $0x18] sm:$0xff]
      %v651 = vld [vmem:[%s349 + $0x20] sm:$0xff]
      %v652 = vld [vmem:[%s349 + $0x28] sm:$0xff]
      %v653 = vld [vmem:[%s349 + $0x30] sm:$0xff]
      %v654 = vld [vmem:[%s349 + $0x38] sm:$0xff]
      %v655 = vld [vmem:[%s349 + $0x40] sm:$0xff]
      %v656 = vld [vmem:[%s349 + $0x48] sm:$0xff]
      %v657 = vld [vmem:[%s349 + $0x50] sm:$0xff]
      %v658 = vld [vmem:[%s349 + $0x58] sm:$0xff]
      %v659 = vld [vmem:[%s349 + $0x60] sm:$0xff]
      %v660 = vld [vmem:[%s349 + $0x68] sm:$0xff]
      %v661 = vld [vmem:[%s349 + $0x70] sm:$0xff]
      %v662 = vld [vmem:[%s349 + $0x78] sm:$0xff]
      %v663 = vadd.f32 %v647, %v631
      %v664 = vadd.f32 %v648, %v632
      %v665 = vadd.f32 %v649, %v633
      %v666 = vadd.f32 %v650, %v634
      %v667 = vadd.f32 %v651, %v635
      %v668 = vadd.f32 %v652, %v636
      %v669 = vadd.f32 %v653, %v637
      %v670 = vadd.f32 %v654, %v638
      %v671 = vadd.f32 %v655, %v639
      %v672 = vadd.f32 %v656, %v640
      %v673 = vadd.f32 %v657, %v641
      %v674 = vadd.f32 %v658, %v642
      %v675 = vadd.f32 %v659, %v643
      %v676 = vadd.f32 %v660, %v644
      %v677 = vadd.f32 %v661, %v645
      %v678 = vadd.f32 %v662, %v646
      %679 = vst [vmem:[%s360] sm:$0xff] %v663
      %680 = vst [vmem:[%s360 + $0x8] sm:$0xff] %v664
      %681 = vst [vmem:[%s360 + $0x10] sm:$0xff] %v665
      %682 = vst [vmem:[%s360 + $0x18] sm:$0xff] %v666
      %683 = vst [vmem:[%s360 + $0x20] sm:$0xff] %v667
      %684 = vst [vmem:[%s360 + $0x28] sm:$0xff] %v668
      %685 = vst [vmem:[%s360 + $0x30] sm:$0xff] %v669
      %686 = vst [vmem:[%s360 + $0x38] sm:$0xff] %v670
      %687 = vst [vmem:[%s360 + $0x40] sm:$0xff] %v671
      %688 = vst [vmem:[%s360 + $0x48] sm:$0xff] %v672
      %689 = vst [vmem:[%s360 + $0x50] sm:$0xff] %v673
      %690 = vst [vmem:[%s360 + $0x58] sm:$0xff] %v674
      %691 = vst [vmem:[%s360 + $0x60] sm:$0xff] %v675
      %692 = vst [vmem:[%s360 + $0x68] sm:$0xff] %v676
      %693 = vst [vmem:[%s360 + $0x70] sm:$0xff] %v677
      %694 = vst [vmem:[%s360 + $0x78] sm:$0xff] %v678
      %s695 = smul.u32 8, %s23
      %p696 = scmp.lt.s32.totalorder %s22, 1
      %s697 = scalar_select %p696, %s22, 1
      %p698 = scmp.lt.s32.totalorder %s695, 15
      %s699 = scalar_select %p698, %s695, 15
      %s700 = smul.addr %s699, 2
      %s701 = smul.addr %s697, 32
      %s702 = sadd.s32 %s700, %s701
      %s703 = smul.addr %s702, 8
      %s704 = scalar_lea.vmem %s7, %s703
      // Predicated region
      $region49: #{resblock_forward.5} parent=47 // pred_check
        %p705 = pneg %p211
      $region50: #{resblock_forward.5} parent=47 // pred_check_branch
        %707 = sbr.rel (%p705) target = $region52
      $region51: #{resblock_forward.5} parent=47 // pred_region
        %s708 = smul.u32 8, %s23
      $region52: #{resblock_forward.5} parent=47 // pred_fallthru
        _
    $region48: #{resblock_forward.5} parent=5 // pred_fallthru
      _
    %p709 = scmp.le.s32.totalorder 2, %s13
    // Predicated region
    $region53: #{resblock_forward.5} parent=5 // pred_check
      %p710 = pneg %p709
    $region54: #{resblock_forward.5} parent=5 // pred_check_branch
      %712 = sbr.rel (%p710) target = $region56
    $region55: #{resblock_forward.5} parent=5 // pred_region
      %s713 = ssub.s32 %s13, 2
      // Predicated region
      $region57: #{resblock_forward.5} parent=55 // pred_check
        %p714 = pneg %p217
      $region58: #{resblock_forward.5} parent=55 // pred_check_branch
        %716 = sbr.rel (%p714) target = $region60
      $region59: #{resblock_forward.5} parent=55 // pred_region
        %s717 = smul.u32 8, %s25
        %p718 = scmp.lt.s32.totalorder %s24, 1
        %s719 = scalar_select %p718, %s24, 1
        %p720 = scmp.lt.s32.totalorder %s717, 15
        %s721 = scalar_select %p720, %s717, 15
        %s722 = smul.addr %s721, 2
        %s723 = smul.addr %s719, 32
        %s724 = sadd.s32 %s722, %s723
        %s725 = smul.addr %s724, 8
        %s726 = scalar_lea.vmem %s7, %s725
      $region60: #{resblock_forward.5} parent=55 // pred_fallthru
        _
    $region56: #{resblock_forward.5} parent=5 // pred_fallthru
      _
  $region6: #{resblock_forward.5} parent=0 // loop_footer
    %s17 = sadd.s32 1, %s13
  $region7: #{resblock_forward.5} parent=0 // loop_footer_branch
    %12 = sbr.rel target = $region3
  $region8: #{resblock_forward.5} parent=0 // loop_exit
    _

// kernel: resblock_forward.4
$region0: #{resblock_forward.4}
  #allocation0 [shape = 'u32[]', space=smem, size = 0x4, offset = 0x4, fixed_abs, tag = 'smem constant byte address 0x4 - core index']
  #allocation1 [shape = 'u32[144,128]{1,0:T(1,128)}', space=vmem, size = 0x12000, scoped, tag = 'internal scratch']
  %s0 = inlined_call_operand.vmem [shape: f32[2,16,16,128], index: 0, kind: input, shape index: {}]
  %s1 = inlined_call_operand.vmem [shape: f32[1,128], index: 1, kind: input, shape index: {}]
  %s2 = inlined_call_operand.vmem [shape: f32[1,128], index: 2, kind: input, shape index: {}]
  %s3 = inlined_call_operand.vmem [shape: f32[128,128], index: 3, kind: input, shape index: {}]
  %s4 = inlined_call_operand.vmem [shape: f32[2,2,2,128], index: 4, kind: output, shape index: {}]
  %s5 = sld [smem:[#allocation0]]
  $region49: #{resblock_forward.4} parent=0
    _
  %s7 = ssub.s32 1, %s5
  %s8 = scalar_select 0, %s7, %s5
  loop: start=0, step=1, limit=6
  $region2: #{resblock_forward.4} parent=0 // loop_pre_header
    _
  $region3: #{resblock_forward.4} parent=0 // loop_header
    %s10 = sphi 0, %s14
    %p11 = scmp.ge.s32.totalorder %s10, 6
    %s17 = sphi 0, %s29
    %s18 = sphi 0, %s25
    %s19 = sphi 0, %s17
    %s20 = sphi 0, %s18
    %s21 = sphi 0, %s19
    %s22 = sphi 0, %s20
    %s34 = sphi 0, %s36
    %s37 = sphi 0, %s34
    %s38 = sphi 0, %s37
    %s54 = sphi 0, %s38
    %s58 = sphi 0, %s58
    %s60 = sphi 0, %s58
    %s61 = sphi 0, %s60
    %s75 = sphi 0, %s61
    %s79 = sphi 0, %s79
    %s81 = sphi 0, %s79
    %s82 = sphi 0, %s81
    %s96 = sphi 0, %s82
    %s100 = sphi 0, %s100
    %s102 = sphi 0, %s100
    %s103 = sphi 0, %s102
    %s117 = sphi 0, %s103
    %s125 = sphi 0, %s127
    %s128 = sphi 0, %s125
    %s129 = sphi 0, %s128
    %s145 = sphi 0, %s129
  $region4: #{resblock_forward.4} parent=0 // loop_header_branch
    %13 = sbr.rel (%p11) target = $region8
  $region5: #{resblock_forward.4} parent=0 // loop_body
    %s15 = ssub.s32 %s10, 1
    %s16 = ssub.s32 %s10, 2
    %s23 = sadd.s32 1, %s18
    %p24 = scmp.ge.s32.totalorder %s23, 2
    %s25 = scalar_select %p24, 0, %s23
    %s26 = sadd.s32 1, %s17
    %s27 = scalar_select %p24, %s26, %s17
    %p28 = scmp.ge.s32.totalorder %s27, 2
    %s29 = scalar_select %p28, 0, %s27
    %s30 = ssub.s32 %s17, %s29
    %s31 = ssub.s32 %s18, %s25
    %s32 = sor.u32 %s30, %s31
    %p33 = scmp.eq.s32.totalorder %s32, 0
    %s35 = sadd.s32 %s34, 1
    %s36 = scalar_select %p33, %s34, %s35
    %p39 = pneg %p33
    %p40 = scmp.eq.s32.totalorder %s10, 3
    %p41 = por %p39, %p40
    %p42 = scmp.ne.s32.totalorder %s34, %s37
    %p43 = scmp.eq.s32.totalorder %s10, 0
    %p44 = por %p42, %p43
    %p45 = scmp.ne.s32.totalorder %s34, %s37
    %p46 = scmp.eq.s32.totalorder %s15, 3
    %p47 = por %p45, %p46
    %p48 = scmp.ne.s32.totalorder %s37, %s38
    %p49 = scmp.eq.s32.totalorder %s15, 0
    %p50 = por %p48, %p49
    %p51 = scmp.ne.s32.totalorder %s37, %s38
    %p52 = scmp.eq.s32.totalorder %s16, 3
    %p53 = por %p51, %p52
    %p55 = scmp.ne.s32.totalorder %s38, %s54
    %p56 = scmp.eq.s32.totalorder %s16, 0
    %p57 = por %p55, %p56
    %s59 = sadd.s32 %s58, 1
    %p62 = scmp.eq.s32.totalorder %s10, 3
    %p63 = scmp.ne.s32.totalorder %s58, %s60
    %p64 = scmp.eq.s32.totalorder %s10, 0
    %p65 = por %p63, %p64
    %p66 = scmp.ne.s32.totalorder %s58, %s60
    %p67 = scmp.eq.s32.totalorder %s15, 3
    %p68 = por %p66, %p67
    %p69 = scmp.ne.s32.totalorder %s60, %s61
    %p70 = scmp.eq.s32.totalorder %s15, 0
    %p71 = por %p69, %p70
    %p72 = scmp.ne.s32.totalorder %s60, %s61
    %p73 = scmp.eq.s32.totalorder %s16, 3
    %p74 = por %p72, %p73
    %p76 = scmp.ne.s32.totalorder %s61, %s75
    %p77 = scmp.eq.s32.totalorder %s16, 0
    %p78 = por %p76, %p77
    %s80 = sadd.s32 %s79, 1
    %p83 = scmp.eq.s32.totalorder %s10, 3
    %p84 = scmp.ne.s32.totalorder %s79, %s81
    %p85 = scmp.eq.s32.totalorder %s10, 0
    %p86 = por %p84, %p85
    %p87 = scmp.ne.s32.totalorder %s79, %s81
    %p88 = scmp.eq.s32.totalorder %s15, 3
    %p89 = por %p87, %p88
    %p90 = scmp.ne.s32.totalorder %s81, %s82
    %p91 = scmp.eq.s32.totalorder %s15, 0
    %p92 = por %p90, %p91
    %p93 = scmp.ne.s32.totalorder %s81, %s82
    %p94 = scmp.eq.s32.totalorder %s16, 3
    %p95 = por %p93, %p94
    %p97 = scmp.ne.s32.totalorder %s82, %s96
    %p98 = scmp.eq.s32.totalorder %s16, 0
    %p99 = por %p97, %p98
    %s101 = sadd.s32 %s100, 1
    %p104 = scmp.eq.s32.totalorder %s10, 3
    %p105 = scmp.ne.s32.totalorder %s100, %s102
    %p106 = scmp.eq.s32.totalorder %s10, 0
    %p107 = por %p105, %p106
    %p108 = scmp.ne.s32.totalorder %s100, %s102
    %p109 = scmp.eq.s32.totalorder %s15, 3
    %p110 = por %p108, %p109
    %p111 = scmp.ne.s32.totalorder %s102, %s103
    %p112 = scmp.eq.s32.totalorder %s15, 0
    %p113 = por %p111, %p112
    %p114 = scmp.ne.s32.totalorder %s102, %s103
    %p115 = scmp.eq.s32.totalorder %s16, 3
    %p116 = por %p114, %p115
    %p118 = scmp.ne.s32.totalorder %s103, %s117
    %p119 = scmp.eq.s32.totalorder %s16, 0
    %p120 = por %p118, %p119
    %s121 = ssub.s32 %s17, %s29
    %s122 = ssub.s32 %s18, %s25
    %s123 = sor.u32 %s121, %s122
    %p124 = scmp.eq.s32.totalorder %s123, 0
    %s126 = sadd.s32 %s125, 1
    %s127 = scalar_select %p124, %s125, %s126
    %p130 = pneg %p124
    %p131 = scmp.eq.s32.totalorder %s10, 3
    %p132 = por %p130, %p131
    %p133 = scmp.ne.s32.totalorder %s125, %s128
    %p134 = scmp.eq.s32.totalorder %s10, 0
    %p135 = por %p133, %p134
    %p136 = scmp.ne.s32.totalorder %s125, %s128
    %p137 = scmp.eq.s32.totalorder %s15, 3
    %p138 = por %p136, %p137
    %p139 = scmp.ne.s32.totalorder %s128, %s129
    %p140 = scmp.eq.s32.totalorder %s15, 0
    %p141 = por %p139, %p140
    %p142 = scmp.ne.s32.totalorder %s128, %s129
    %p143 = scmp.eq.s32.totalorder %s16, 3
    %p144 = por %p142, %p143
    %p146 = scmp.ne.s32.totalorder %s129, %s145
    %p147 = scmp.eq.s32.totalorder %s16, 0
    %p148 = por %p146, %p147
    %p149 = scmp.le.s32.totalorder 1, %s10
    %p150 = scmp.lt.s32.totalorder %s10, 5
    %p151 = pnand %p149, %p150
    %p152 = pneg %p151
    // Predicated region
    $region9: #{resblock_forward.4} parent=5 // pred_check
      _
    $region10: #{resblock_forward.4} parent=5 // pred_check_branch
      %154 = sbr.rel (%p151) target = $region12
    $region11: #{resblock_forward.4} parent=5 // pred_region
      %s155 = ssub.s32 %s10, 1
      // Predicated region
      $region13: #{resblock_forward.4} parent=11 // pred_check
        %p156 = pneg %p71
      $region14: #{resblock_forward.4} parent=11 // pred_check_branch
        %158 = sbr.rel (%p156) target = $region16
      $region15: #{resblock_forward.4} parent=11 // pred_region
        _
      $region16: #{resblock_forward.4} parent=11 // pred_fallthru
        _
      // Predicated region
      $region17: #{resblock_forward.4} parent=11 // pred_check
        %p159 = pneg %p92
      $region18: #{resblock_forward.4} parent=11 // pred_check_branch
        %161 = sbr.rel (%p159) target = $region20
      $region19: #{resblock_forward.4} parent=11 // pred_region
        _
      $region20: #{resblock_forward.4} parent=11 // pred_fallthru
        _
      // Predicated region
      $region21: #{resblock_forward.4} parent=11 // pred_check
        %p162 = pneg %p113
      $region22: #{resblock_forward.4} parent=11 // pred_check_branch
        %164 = sbr.rel (%p162) target = $region24
      $region23: #{resblock_forward.4} parent=11 // pred_region
        _
      $region24: #{resblock_forward.4} parent=11 // pred_fallthru
        _
    $region12: #{resblock_forward.4} parent=5 // pred_fallthru
      _
    %p165 = scmp.lt.s32.totalorder %s10, 4
    // Predicated region
    $region25: #{resblock_forward.4} parent=5 // pred_check
      %p166 = pneg %p165
    $region26: #{resblock_forward.4} parent=5 // pred_check_branch
      %168 = sbr.rel (%p166) target = $region28
    $region27: #{resblock_forward.4} parent=5 // pred_region
      // Predicated region
      $region29: #{resblock_forward.4} parent=27 // pred_check
        %p169 = pneg %p44
      $region30: #{resblock_forward.4} parent=27 // pred_check_branch
        %171 = sbr.rel (%p169) target = $region32
      $region31: #{resblock_forward.4} parent=27 // pred_region
        %s172 = smul.u32 8, %s18
        %p173 = scmp.lt.s32.totalorder %s17, 1
        %s174 = scalar_select %p173, %s17, 1
        %p175 = scmp.lt.s32.totalorder %s172, 15
        %s176 = scalar_select %p175, %s172, 15
        %s177 = smul.addr %s176, 2
        %s178 = smul.addr %s174, 32
        %s179 = sadd.s32 %s177, %s178
        %s180 = smul.addr %s179, 8
        %s181 = scalar_lea.vmem %s0, %s180
        %s182 = smul.u32 8, %s18
      $region32: #{resblock_forward.4} parent=27 // pred_fallthru
        _
    $region28: #{resblock_forward.4} parent=5 // pred_fallthru
      _
    %p183 = scmp.le.s32.totalorder 1, %s10
    %p184 = scmp.lt.s32.totalorder %s10, 5
    %p185 = pnand %p183, %p184
    %p186 = pneg %p185
    // Predicated region
    $region33: #{resblock_forward.4} parent=5 // pred_check
      _
    $region34: #{resblock_forward.4} parent=5 // pred_check_branch
      %188 = sbr.rel (%p185) target = $region36
    $region35: #{resblock_forward.4} parent=5 // pred_region
      %s189 = ssub.s32 %s10, 1
      %s190 = smul.u32 8, %s20
      %p191 = scmp.lt.s32.totalorder %s19, 1
      %s192 = scalar_select %p191, %s19, 1
      %p193 = scmp.lt.s32.totalorder %s190, 15
      %s194 = scalar_select %p193, %s190, 15
      %s195 = smul.addr %s194, 2
      %s196 = smul.addr %s192, 32
      %s197 = sadd.s32 %s195, %s196
      %s198 = smul.addr %s197, 8
      %s199 = scalar_lea.vmem %s0, %s198
      %p200 = pneg %p50
      %p201 = pneg %p47
      %p202 = pneg %p71
      %p203 = pneg %p68
      %p204 = pneg %p92
      %p205 = pneg %p89
      %p206 = pneg %p113
      %p207 = pneg %p110
      %p208 = pneg %p141
      %p209 = pneg %p138
      %p210 = scmp.lt.s32.totalorder %s19, 1
      %s211 = scalar_select %p210, %s19, 1
      %p212 = scmp.lt.s32.totalorder %s20, 1
      %s213 = scalar_select %p212, %s20, 1
      %s214 = smul.addr %s211, 2
      %s215 = sadd.s32 %s213, %s214
      %s216 = smul.addr %s215, 2
      %s217 = scalar_lea.vmem %s4, %s216
      %s218 = smul.u32 8, %s20
      %p219 = scmp.lt.s32.totalorder %s19, 1
      %s220 = scalar_select %p219, %s19, 1
      %p221 = scmp.lt.s32.totalorder %s218, 15
      %s222 = scalar_select %p221, %s218, 15
      %s223 = smul.addr %s222, 2
      %s224 = smul.addr %s220, 32
      %s225 = sadd.s32 %s223, %s224
      %s226 = smul.addr %s225, 8
      %s227 = scalar_lea.vmem %s0, %s226
      %s228 = smul.u32 8, %s20
      %p229 = scmp.lt.s32.totalorder %s19, 1
      %s230 = scalar_select %p229, %s19, 1
      %p231 = scmp.lt.s32.totalorder %s20, 1
      %s232 = scalar_select %p231, %s20, 1
      %s233 = smul.addr %s230, 2
      %s234 = sadd.s32 %s232, %s233
      %s235 = smul.addr %s234, 2
      %s236 = scalar_lea.vmem %s4, %s235
      %v237 = vld [vmem:[%s227] sm:$0xff]
      %v238 = vld [vmem:[%s227 + $0x8] sm:$0xff]
      %v239 = vld [vmem:[%s227 + $0x10] sm:$0xff]
      %v240 = vld [vmem:[%s227 + $0x18] sm:$0xff]
      %v241 = vld [vmem:[%s227 + $0x20] sm:$0xff]
      %v242 = vld [vmem:[%s227 + $0x28] sm:$0xff]
      %v243 = vld [vmem:[%s227 + $0x30] sm:$0xff]
      %v244 = vld [vmem:[%s227 + $0x38] sm:$0xff]
      %v245 = vld [vmem:[%s227 + $0x40] sm:$0xff]
      %v246 = vld [vmem:[%s227 + $0x48] sm:$0xff]
      %v247 = vld [vmem:[%s227 + $0x50] sm:$0xff]
      %v248 = vld [vmem:[%s227 + $0x58] sm:$0xff]
      %v249 = vld [vmem:[%s227 + $0x60] sm:$0xff]
      %v250 = vld [vmem:[%s227 + $0x68] sm:$0xff]
      %v251 = vld [vmem:[%s227 + $0x70] sm:$0xff]
      %v252 = vld [vmem:[%s227 + $0x78] sm:$0xff]
      %v253 = vld [vmem:[%s1] sm:$0x1]
      %v255 = vlaneseq
      %v256 = vshrl.u32 %v255, 7
      %v257 = vsub.s32 0, %v256
      %v258 = vrot.slane %v253, %v257
      %v260 = vmul.f32 %v237, %v258
      %v261 = vmul.f32 %v238, %v258
      %v262 = vmul.f32 %v239, %v258
      %v263 = vmul.f32 %v240, %v258
      %v264 = vmul.f32 %v241, %v258
      %v265 = vmul.f32 %v242, %v258
      %v266 = vmul.f32 %v243, %v258
      %v267 = vmul.f32 %v244, %v258
      %v268 = vmul.f32 %v245, %v258
      %v269 = vmul.f32 %v246, %v258
      %v270 = vmul.f32 %v247, %v258
      %v271 = vmul.f32 %v248, %v258
      %v272 = vmul.f32 %v249, %v258
      %v273 = vmul.f32 %v250, %v258
      %v274 = vmul.f32 %v251, %v258
      %v275 = vmul.f32 %v252, %v258
      %v276 = vld [vmem:[%s2] sm:$0x1]
      %v278 = vlaneseq
      %v279 = vshrl.u32 %v278, 7
      %v280 = vsub.s32 0, %v279
      %v281 = vrot.slane %v276, %v280
      %v283 = vadd.f32 %v260, %v281
      %v284 = vadd.f32 %v261, %v281
      %v285 = vadd.f32 %v262, %v281
      %v286 = vadd.f32 %v263, %v281
      %v287 = vadd.f32 %v264, %v281
      %v288 = vadd.f32 %v265, %v281
      %v289 = vadd.f32 %v266, %v281
      %v290 = vadd.f32 %v267, %v281
      %v291 = vadd.f32 %v268, %v281
      %v292 = vadd.f32 %v269, %v281
      %v293 = vadd.f32 %v270, %v281
      %v294 = vadd.f32 %v271, %v281
      %v295 = vadd.f32 %v272, %v281
      %v296 = vadd.f32 %v273, %v281
      %v297 = vadd.f32 %v274, %v281
      %v298 = vadd.f32 %v275, %v281
      %v299 = vmax.f32 %v283, 0.0
      %v300 = vmax.f32 %v284, 0.0
      %v301 = vmax.f32 %v285, 0.0
      %v302 = vmax.f32 %v286, 0.0
      %v303 = vmax.f32 %v287, 0.0
      %v304 = vmax.f32 %v288, 0.0
      %v305 = vmax.f32 %v289, 0.0
      %v306 = vmax.f32 %v290, 0.0
      %v307 = vmax.f32 %v291, 0.0
      %v308 = vmax.f32 %v292, 0.0
      %v309 = vmax.f32 %v293, 0.0
      %v310 = vmax.f32 %v294, 0.0
      %v311 = vmax.f32 %v295, 0.0
      %v312 = vmax.f32 %v296, 0.0
      %v313 = vmax.f32 %v297, 0.0
      %v314 = vmax.f32 %v298, 0.0
      %v315 = vld [vmem:[%s3] sm:$0xff]
      %v316 = vld [vmem:[%s3 + $0x8] sm:$0xff]
      %v317 = vld [vmem:[%s3 + $0x10] sm:$0xff]
      %v318 = vld [vmem:[%s3 + $0x18] sm:$0xff]
      %v319 = vld [vmem:[%s3 + $0x20] sm:$0xff]
      %v320 = vld [vmem:[%s3 + $0x28] sm:$0xff]
      %v321 = vld [vmem:[%s3 + $0x30] sm:$0xff]
      %v322 = vld [vmem:[%s3 + $0x38] sm:$0xff]
      %v323 = vld [vmem:[%s3 + $0x40] sm:$0xff]
      %v324 = vld [vmem:[%s3 + $0x48] sm:$0xff]
      %v325 = vld [vmem:[%s3 + $0x50] sm:$0xff]
      %v326 = vld [vmem:[%s3 + $0x58] sm:$0xff]
      %v327 = vld [vmem:[%s3 + $0x60] sm:$0xff]
      %v328 = vld [vmem:[%s3 + $0x68] sm:$0xff]
      %v329 = vld [vmem:[%s3 + $0x70] sm:$0xff]
      %v330 = vld [vmem:[%s3 + $0x78] sm:$0xff]
      %331 = vmatprep.subr.mxu0 0.0
      %332 = vmatpush1.msra.mxu0 %v315
      %333 = vmatprep.subr.mxu0 0.0
      %334 = vmatpush1.msra.mxu0 %v316
      %335 = vmatprep.subr.mxu0 0.0
      %336 = vmatpush1.msra.mxu0 %v317
      %337 = vmatprep.subr.mxu0 0.0
      %338 = vmatpush1.msra.mxu0 %v318
      %339 = vmatprep.subr.mxu0 0.0
      %340 = vmatpush1.msra.mxu0 %v319
      %341 = vmatprep.subr.mxu0 0.0
      %342 = vmatpush1.msra.mxu0 %v320
      %343 = vmatprep.subr.mxu0 0.0
      %344 = vmatpush1.msra.mxu0 %v321
      %345 = vmatprep.subr.mxu0 0.0
      %346 = vmatpush1.msra.mxu0 %v322
      %347 = vmatprep.subr.mxu0 0.0
      %348 = vmatpush1.msra.mxu0 %v323
      %349 = vmatprep.subr.mxu0 0.0
      %350 = vmatpush1.msra.mxu0 %v324
      %351 = vmatprep.subr.mxu0 0.0
      %352 = vmatpush1.msra.mxu0 %v325
      %353 = vmatprep.subr.mxu0 0.0
      %354 = vmatpush1.msra.mxu0 %v326
      %355 = vmatprep.subr.mxu0 0.0
      %356 = vmatpush1.msra.mxu0 %v327
      %357 = vmatprep.subr.mxu0 0.0
      %358 = vmatpush1.msra.mxu0 %v328
      %359 = vmatprep.subr.mxu0 0.0
      %360 = vmatpush1.msra.mxu0 %v329
      %361 = vmatprep.subr.mxu0 0.0
      %362 = vmatpush1.msra.mxu0 %v330
      %363 = vmatprep.subr.mxu0 0.0
      %364 = vmatpush1.msra.mxu0 0.0
      %365 = vmatprep.subr.mxu0 0.0
      %366 = vmatpush1.msra.mxu0 0.0
      %367 = vmatprep.subr.mxu0 0.0
      %368 = vmatpush1.msra.mxu0 0.0
      %369 = vmatprep.subr.mxu0 0.0
      %370 = vmatpush1.msra.mxu0 0.0
      %371 = vmatprep.subr.mxu0 0.0
      %372 = vmatpush1.msra.mxu0 0.0
      %373 = vmatprep.subr.mxu0 0.0
      %374 = vmatpush1.msra.mxu0 0.0
      %375 = vmatprep.subr.mxu0 0.0
      %376 = vmatpush1.msra.mxu0 0.0
      %377 = vmatprep.subr.mxu0 0.0
      %378 = vmatpush1.msra.mxu0 0.0
      %379 = vmatprep.subr.mxu0 0.0
      %380 = vmatpush1.msra.mxu0 0.0
      %381 = vmatprep.subr.mxu0 0.0
      %382 = vmatpush1.msra.mxu0 0.0
      %383 = vmatprep.subr.mxu0 0.0
      %384 = vmatpush1.msra.mxu0 0.0
      %385 = vmatprep.subr.mxu0 0.0
      %386 = vmatpush1.msra.mxu0 0.0
      %387 = vmatprep.subr.mxu0 0.0
      %388 = vmatpush1.msra.mxu0 0.0
      %389 = vmatprep.subr.mxu0 0.0
      %390 = vmatpush1.msra.mxu0 0.0
      %391 = vmatprep.subr.mxu0 0.0
      %392 = vmatpush1.msra.mxu0 0.0
      %393 = vmatprep.subr.mxu0 0.0
      %394 = vmatpush1.msra.mxu0 0.0
      %395 = vmatprep.mubr.f32.mxu0 0.0
      %396 = vmatmul.mubr.f32.gmra.mrb[0].mxu0 %v299
      %v397 = vpop.f32.mrb[0].mxu0
      %v398 = vadd.f32 0.0, %v397
      %v399 = vpop.f32.mrb[0].mxu0
      %400 = vmatprep.mubr.f32.mxu0 0.0
      %401 = vmatmul.mubr.f32.gmra.mrb[0].mxu0 %v300
      %v402 = vpop.f32.mrb[0].mxu0
      %v403 = vadd.f32 0.0, %v402
      %v404 = vpop.f32.mrb[0].mxu0
      %405 = vmatprep.mubr.f32.mxu0 0.0
      %406 = vmatmul.mubr.f32.gmra.mrb[0].mxu0 %v301
      %v407 = vpop.f32.mrb[0].mxu0
      %v408 = vadd.f32 0.0, %v407
      %v409 = vpop.f32.mrb[0].mxu0
      %410 = vmatprep.mubr.f32.mxu0 0.0
      %411 = vmatmul.mubr.f32.gmra.mrb[0].mxu0 %v302
      %v412 = vpop.f32.mrb[0].mxu0
      %v413 = vadd.f32 0.0, %v412
      %v414 = vpop.f32.mrb[0].mxu0
      %415 = vmatprep.mubr.f32.mxu0 0.0
      %416 = vmatmul.mubr.f32.gmra.mrb[0].mxu0 %v303
      %v417 = vpop.f32.mrb[0].mxu0
      %v418 = vadd.f32 0.0, %v417
      %v419 = vpop.f32.mrb[0].mxu0
      %420 = vmatprep.mubr.f32.mxu0 0.0
      %421 = vmatmul.mubr.f32.gmra.mrb[0].mxu0 %v304
      %v422 = vpop.f32.mrb[0].mxu0
      %v423 = vadd.f32 0.0, %v422
      %v424 = vpop.f32.mrb[0].mxu0
      %425 = vmatprep.mubr.f32.mxu0 0.0
      %426 = vmatmul.mubr.f32.gmra.mrb[0].mxu0 %v305
      %v427 = vpop.f32.mrb[0].mxu0
      %v428 = vadd.f32 0.0, %v427
      %v429 = vpop.f32.mrb[0].mxu0
      %430 = vmatprep.mubr.f32.mxu0 0.0
      %431 = vmatmul.mubr.f32.gmra.mrb[0].mxu0 %v306
      %v432 = vpop.f32.mrb[0].mxu0
      %v433 = vadd.f32 0.0, %v432
      %v434 = vpop.f32.mrb[0].mxu0
      %435 = vmatprep.mubr.f32.mxu0 0.0
      %436 = vmatmul.mubr.f32.gmra.mrb[0].mxu0 %v307
      %v437 = vpop.f32.mrb[0].mxu0
      %v438 = vadd.f32 0.0, %v437
      %v439 = vpop.f32.mrb[0].mxu0
      %440 = vmatprep.mubr.f32.mxu0 0.0
      %441 = vmatmul.mubr.f32.gmra.mrb[0].mxu0 %v308
      %v442 = vpop.f32.mrb[0].mxu0
      %v443 = vadd.f32 0.0, %v442
      %v444 = vpop.f32.mrb[0].mxu0
      %445 = vmatprep.mubr.f32.mxu0 0.0
      %446 = vmatmul.mubr.f32.gmra.mrb[0].mxu0 %v309
      %v447 = vpop.f32.mrb[0].mxu0
      %v448 = vadd.f32 0.0, %v447
      %v449 = vpop.f32.mrb[0].mxu0
      %450 = vmatprep.mubr.f32.mxu0 0.0
      %451 = vmatmul.mubr.f32.gmra.mrb[0].mxu0 %v310
      %v452 = vpop.f32.mrb[0].mxu0
      %v453 = vadd.f32 0.0, %v452
      %v454 = vpop.f32.mrb[0].mxu0
      %455 = vmatprep.mubr.f32.mxu0 0.0
      %456 = vmatmul.mubr.f32.gmra.mrb[0].mxu0 %v311
      %v457 = vpop.f32.mrb[0].mxu0
      %v458 = vadd.f32 0.0, %v457
      %v459 = vpop.f32.mrb[0].mxu0
      %460 = vmatprep.mubr.f32.mxu0 0.0
      %461 = vmatmul.mubr.f32.gmra.mrb[0].mxu0 %v312
      %v462 = vpop.f32.mrb[0].mxu0
      %v463 = vadd.f32 0.0, %v462
      %v464 = vpop.f32.mrb[0].mxu0
      %465 = vmatprep.mubr.f32.mxu0 0.0
      %466 = vmatmul.mubr.f32.gmra.mrb[0].mxu0 %v313
      %v467 = vpop.f32.mrb[0].mxu0
      %v468 = vadd.f32 0.0, %v467
      %v469 = vpop.f32.mrb[0].mxu0
      %470 = vmatprep.mubr.f32.mxu0 0.0
      %471 = vmatmul.mubr.f32.gmra.mrb[0].mxu0 %v314
      %v472 = vpop.f32.mrb[0].mxu0
      %v473 = vadd.f32 0.0, %v472
      %v474 = vpop.f32.mrb[0].mxu0
      %475 = vdwg.mxu0
      %v476 = vadd.f32 %v398, %v403
      %v477 = vadd.f32 %v476, %v408
      %v478 = vadd.f32 %v477, %v413
      %v479 = vadd.f32 %v478, %v418
      %v480 = vadd.f32 %v479, %v423
      %v481 = vadd.f32 %v480, %v428
      %v482 = vadd.f32 %v481, %v433
      %v483 = vadd.f32 %v482, %v438
      %v484 = vadd.f32 %v483, %v443
      %v485 = vadd.f32 %v484, %v448
      %v486 = vadd.f32 %v485, %v453
      %v487 = vadd.f32 %v486, %v458
      %v488 = vadd.f32 %v487, %v463
      %v489 = vadd.f32 %v488, %v468
      %v490 = vadd.f32 %v489, %v473
      %v491 = vrot.slane %v490, 4
      %v492 = vadd.f32 %v490, %v491
      %v493 = vrot.slane %v492, 2
      %v494 = vadd.f32 %v492, %v493
      %v495 = vrot.slane %v494, 1
      %v496 = vadd.f32 %v494, %v495
      %v497 = vmul.f32 %v398, %v398
      %v498 = vmul.f32 %v403, %v403
      %v499 = vmul.f32 %v408, %v408
      %v500 = vmul.f32 %v413, %v413
      %v501 = vmul.f32 %v418, %v418
      %v502 = vmul.f32 %v423, %v423
      %v503 = vmul.f32 %v428, %v428
      %v504 = vmul.f32 %v433, %v433
      %v505 = vmul.f32 %v438, %v438
      %v506 = vmul.f32 %v443, %v443
      %v507 = vmul.f32 %v448, %v448
      %v508 = vmul.f32 %v453, %v453
      %v509 = vmul.f32 %v458, %v458
      %v510 = vmul.f32 %v463, %v463
      %v511 = vmul.f32 %v468, %v468
      %v512 = vmul.f32 %v473, %v473
      %v513 = vadd.f32 %v497, %v498
      %v514 = vadd.f32 %v513, %v499
      %v515 = vadd.f32 %v514, %v500
      %v516 = vadd.f32 %v515, %v501
      %v517 = vadd.f32 %v516, %v502
      %v518 = vadd.f32 %v517, %v503
      %v519 = vadd.f32 %v518, %v504
      %v520 = vadd.f32 %v519, %v505
      %v521 = vadd.f32 %v520, %v506
      %v522 = vadd.f32 %v521, %v507
      %v523 = vadd.f32 %v522, %v508
      %v524 = vadd.f32 %v523, %v509
      %v525 = vadd.f32 %v524, %v510
      %v526 = vadd.f32 %v525, %v511
      %v527 = vadd.f32 %v526, %v512
      %v528 = vrot.slane %v527, 4
      %v529 = vadd.f32 %v527, %v528
      %v530 = vrot.slane %v529, 2
      %v531 = vadd.f32 %v529, %v530
      %v532 = vrot.slane %v531, 1
      %v533 = vadd.f32 %v531, %v532
      %vm534 = vcmask 1040384
      %v535 = vsel %vm534, %v496, %v533
      %536 = vst [vmem:[%s236] sm:$0x3] %v535
      %p537 = scmp.lt.s32.totalorder %s19, 1
      %s538 = scalar_select %p537, %s19, 1
      %p539 = scmp.lt.s32.totalorder %s20, 1
      %s540 = scalar_select %p539, %s20, 1
      %s541 = smul.addr %s538, 2
      %s542 = sadd.s32 %s540, %s541
      %s543 = smul.addr %s542, 2
      %s544 = scalar_lea.vmem %s4, %s543
      // Predicated region
      $region37: #{resblock_forward.4} parent=35 // pred_check
        %p545 = pneg %p138
      $region38: #{resblock_forward.4} parent=35 // pred_check_branch
        %547 = sbr.rel (%p545) target = $region40
      $region39: #{resblock_forward.4} parent=35 // pred_region
        _
      $region40: #{resblock_forward.4} parent=35 // pred_fallthru
        _
    $region36: #{resblock_forward.4} parent=5 // pred_fallthru
      _
    %p548 = scmp.le.s32.totalorder 2, %s10
    // Predicated region
    $region41: #{resblock_forward.4} parent=5 // pred_check
      %p549 = pneg %p548
    $region42: #{resblock_forward.4} parent=5 // pred_check_branch
      %551 = sbr.rel (%p549) target = $region44
    $region43: #{resblock_forward.4} parent=5 // pred_region
      %s552 = ssub.s32 %s10, 2
      // Predicated region
      $region45: #{resblock_forward.4} parent=43 // pred_check
        %p553 = pneg %p144
      $region46: #{resblock_forward.4} parent=43 // pred_check_branch
        %555 = sbr.rel (%p553) target = $region48
      $region47: #{resblock_forward.4} parent=43 // pred_region
        %p556 = scmp.lt.s32.totalorder %s21, 1
        %s557 = scalar_select %p556, %s21, 1
        %p558 = scmp.lt.s32.totalorder %s22, 1
        %s559 = scalar_select %p558, %s22, 1
        %s560 = smul.addr %s557, 2
        %s561 = sadd.s32 %s559, %s560
        %s562 = smul.addr %s561, 2
        %s563 = scalar_lea.vmem %s4, %s562
      $region48: #{resblock_forward.4} parent=43 // pred_fallthru
        _
    $region44: #{resblock_forward.4} parent=5 // pred_fallthru
      _
  $region6: #{resblock_forward.4} parent=0 // loop_footer
    %s14 = sadd.s32 1, %s10
  $region7: #{resblock_forward.4} parent=0 // loop_footer_branch
    %9 = sbr.rel target = $region3
  $region8: #{resblock_forward.4} parent=0 // loop_exit
    _

// kernel: resblock_forward.3
$region0: #{resblock_forward.3}
  #allocation0 [shape = 'u32[]', space=smem, size = 0x4, offset = 0x4, fixed_abs, tag = 'smem constant byte address 0x4 - core index']
  #allocation1 [shape = 'u32[144,128]{1,0:T(1,128)}', space=vmem, size = 0x12000, scoped, tag = 'internal scratch']
  %s0 = inlined_call_operand.vmem [shape: f32[2,2,10,18,128], index: 0, kind: input, shape index: {}]
  %s1 = inlined_call_operand.vmem [shape: f32[9,128,128], index: 1, kind: input, shape index: {}]
  %s2 = inlined_call_operand.vmem [shape: f32[2,16,16,128], index: 2, kind: output, shape index: {0}]
  %s3 = inlined_call_operand.vmem [shape: f32[2,2,2,128], index: 3, kind: output, shape index: {1}]
  %4 = xla_tuple %s2, %s3
  %s5 = sld [smem:[#allocation0]]
  $region49: #{resblock_forward.3} parent=0
    _
  %s7 = ssub.s32 1, %s5
  %s8 = scalar_select 0, %s7, %s5
  loop: start=0, step=1, limit=6
  $region2: #{resblock_forward.3} parent=0 // loop_pre_header
    _
  $region3: #{resblock_forward.3} parent=0 // loop_header
    %s10 = sphi 0, %s14
    %p11 = scmp.ge.s32.totalorder %s10, 6
    %s17 = sphi 0, %s29
    %s18 = sphi 0, %s25
    %s19 = sphi 0, %s17
    %s20 = sphi 0, %s18
    %s21 = sphi 0, %s19
    %s22 = sphi 0, %s20
    %s34 = sphi 0, %s36
    %s37 = sphi 0, %s34
    %s38 = sphi 0, %s37
    %s54 = sphi 0, %s38
    %s58 = sphi 0, %s58
    %s60 = sphi 0, %s58
    %s61 = sphi 0, %s60
    %s75 = sphi 0, %s61
    %s83 = sphi 0, %s85
    %s86 = sphi 0, %s83
    %s87 = sphi 0, %s86
    %s103 = sphi 0, %s87
    %s111 = sphi 0, %s113
    %s114 = sphi 0, %s111
    %s115 = sphi 0, %s114
    %s131 = sphi 0, %s115
  $region4: #{resblock_forward.3} parent=0 // loop_header_branch
    %13 = sbr.rel (%p11) target = $region8
  $region5: #{resblock_forward.3} parent=0 // loop_body
    %s15 = ssub.s32 %s10, 1
    %s16 = ssub.s32 %s10, 2
    %s23 = sadd.s32 1, %s18
    %p24 = scmp.ge.s32.totalorder %s23, 2
    %s25 = scalar_select %p24, 0, %s23
    %s26 = sadd.s32 1, %s17
    %s27 = scalar_select %p24, %s26, %s17
    %p28 = scmp.ge.s32.totalorder %s27, 2
    %s29 = scalar_select %p28, 0, %s27
    %s30 = ssub.s32 %s17, %s29
    %s31 = ssub.s32 %s18, %s25
    %s32 = sor.u32 %s30, %s31
    %p33 = scmp.eq.s32.totalorder %s32, 0
    %s35 = sadd.s32 %s34, 1
    %s36 = scalar_select %p33, %s34, %s35
    %p39 = pneg %p33
    %p40 = scmp.eq.s32.totalorder %s10, 3
    %p41 = por %p39, %p40
    %p42 = scmp.ne.s32.totalorder %s34, %s37
    %p43 = scmp.eq.s32.totalorder %s10, 0
    %p44 = por %p42, %p43
    %p45 = scmp.ne.s32.totalorder %s34, %s37
    %p46 = scmp.eq.s32.totalorder %s15, 3
    %p47 = por %p45, %p46
    %p48 = scmp.ne.s32.totalorder %s37, %s38
    %p49 = scmp.eq.s32.totalorder %s15, 0
    %p50 = por %p48, %p49
    %p51 = scmp.ne.s32.totalorder %s37, %s38
    %p52 = scmp.eq.s32.totalorder %s16, 3
    %p53 = por %p51, %p52
    %p55 = scmp.ne.s32.totalorder %s38, %s54
    %p56 = scmp.eq.s32.totalorder %s16, 0
    %p57 = por %p55, %p56
    %s59 = sadd.s32 %s58, 1
    %p62 = scmp.eq.s32.totalorder %s10, 3
    %p63 = scmp.ne.s32.totalorder %s58, %s60
    %p64 = scmp.eq.s32.totalorder %s10, 0
    %p65 = por %p63, %p64
    %p66 = scmp.ne.s32.totalorder %s58, %s60
    %p67 = scmp.eq.s32.totalorder %s15, 3
    %p68 = por %p66, %p67
    %p69 = scmp.ne.s32.totalorder %s60, %s61
    %p70 = scmp.eq.s32.totalorder %s15, 0
    %p71 = por %p69, %p70
    %p72 = scmp.ne.s32.totalorder %s60, %s61
    %p73 = scmp.eq.s32.totalorder %s16, 3
    %p74 = por %p72, %p73
    %p76 = scmp.ne.s32.totalorder %s61, %s75
    %p77 = scmp.eq.s32.totalorder %s16, 0
    %p78 = por %p76, %p77
    %s79 = ssub.s32 %s17, %s29
    %s80 = ssub.s32 %s18, %s25
    %s81 = sor.u32 %s79, %s80
    %p82 = scmp.eq.s32.totalorder %s81, 0
    %s84 = sadd.s32 %s83, 1
    %s85 = scalar_select %p82, %s83, %s84
    %p88 = pneg %p82
    %p89 = scmp.eq.s32.totalorder %s10, 3
    %p90 = por %p88, %p89
    %p91 = scmp.ne.s32.totalorder %s83, %s86
    %p92 = scmp.eq.s32.totalorder %s10, 0
    %p93 = por %p91, %p92
    %p94 = scmp.ne.s32.totalorder %s83, %s86
    %p95 = scmp.eq.s32.totalorder %s15, 3
    %p96 = por %p94, %p95
    %p97 = scmp.ne.s32.totalorder %s86, %s87
    %p98 = scmp.eq.s32.totalorder %s15, 0
    %p99 = por %p97, %p98
    %p100 = scmp.ne.s32.totalorder %s86, %s87
    %p101 = scmp.eq.s32.totalorder %s16, 3
    %p102 = por %p100, %p101
    %p104 = scmp.ne.s32.totalorder %s87, %s103
    %p105 = scmp.eq.s32.totalorder %s16, 0
    %p106 = por %p104, %p105
    %s107 = ssub.s32 %s17, %s29
    %s108 = ssub.s32 %s18, %s25
    %s109 = sor.u32 %s107, %s108
    %p110 = scmp.eq.s32.totalorder %s109, 0
    %s112 = sadd.s32 %s111, 1
    %s113 = scalar_select %p110, %s111, %s112
    %p116 = pneg %p110
    %p117 = scmp.eq.s32.totalorder %s10, 3
    %p118 = por %p116, %p117
    %p119 = scmp.ne.s32.totalorder %s111, %s114
    %p120 = scmp.eq.s32.totalorder %s10, 0
    %p121 = por %p119, %p120
    %p122 = scmp.ne.s32.totalorder %s111, %s114
    %p123 = scmp.eq.s32.totalorder %s15, 3
    %p124 = por %p122, %p123
    %p125 = scmp.ne.s32.totalorder %s114, %s115
    %p126 = scmp.eq.s32.totalorder %s15, 0
    %p127 = por %p125, %p126
    %p128 = scmp.ne.s32.totalorder %s114, %s115
    %p129 = scmp.eq.s32.totalorder %s16, 3
    %p130 = por %p128, %p129
    %p132 = scmp.ne.s32.totalorder %s115, %s131
    %p133 = scmp.eq.s32.totalorder %s16, 0
    %p134 = por %p132, %p133
    %p135 = scmp.le.s32.totalorder 1, %s10
    %p136 = scmp.lt.s32.totalorder %s10, 5
    %p137 = pnand %p135, %p136
    %p138 = pneg %p137
    // Predicated region
    $region9: #{resblock_forward.3} parent=5 // pred_check
      _
    $region10: #{resblock_forward.3} parent=5 // pred_check_branch
      %140 = sbr.rel (%p137) target = $region12
    $region11: #{resblock_forward.3} parent=5 // pred_region
      %s141 = ssub.s32 %s10, 1
      // Predicated region
      $region13: #{resblock_forward.3} parent=11 // pred_check
        %p142 = pneg %p71
      $region14: #{resblock_forward.3} parent=11 // pred_check_branch
        %144 = sbr.rel (%p142) target = $region16
      $region15: #{resblock_forward.3} parent=11 // pred_region
        _
      $region16: #{resblock_forward.3} parent=11 // pred_fallthru
        _
    $region12: #{resblock_forward.3} parent=5 // pred_fallthru
      _
    %p145 = scmp.lt.s32.totalorder %s10, 4
    // Predicated region
    $region17: #{resblock_forward.3} parent=5 // pred_check
      %p146 = pneg %p145
    $region18: #{resblock_forward.3} parent=5 // pred_check_branch
      %148 = sbr.rel (%p146) target = $region20
    $region19: #{resblock_forward.3} parent=5 // pred_region
      // Predicated region
      $region21: #{resblock_forward.3} parent=19 // pred_check
        %p149 = pneg %p44
      $region22: #{resblock_forward.3} parent=19 // pred_check_branch
        %151 = sbr.rel (%p149) target = $region24
      $region23: #{resblock_forward.3} parent=19 // pred_region
        %p152 = scmp.lt.s32.totalorder %s17, 1
        %s153 = scalar_select %p152, %s17, 1
        %p154 = scmp.lt.s32.totalorder %s18, 1
        %s155 = scalar_select %p154, %s18, 1
        %s156 = smul.addr %s155, 30
        %s157 = smul.addr %s153, 60
        %s158 = sadd.s32 %s156, %s157
        %s159 = smul.addr %s158, 8
        %s160 = scalar_lea.vmem %s0, %s159
      $region24: #{resblock_forward.3} parent=19 // pred_fallthru
        _
    $region20: #{resblock_forward.3} parent=5 // pred_fallthru
      _
    %p161 = scmp.le.s32.totalorder 1, %s10
    %p162 = scmp.lt.s32.totalorder %s10, 5
    %p163 = pnand %p161, %p162
    %p164 = pneg %p163
    // Predicated region
    $region25: #{resblock_forward.3} parent=5 // pred_check
      _
    $region26: #{resblock_forward.3} parent=5 // pred_check_branch
      %166 = sbr.rel (%p163) target = $region28
    $region27: #{resblock_forward.3} parent=5 // pred_region
      %s167 = ssub.s32 %s10, 1
      %p168 = scmp.lt.s32.totalorder %s19, 1
      %s169 = scalar_select %p168, %s19, 1
      %p170 = scmp.lt.s32.totalorder %s20, 1
      %s171 = scalar_select %p170, %s20, 1
      %s172 = smul.addr %s171, 30
      %s173 = smul.addr %s169, 60
      %s174 = sadd.s32 %s172, %s173
      %s175 = smul.addr %s174, 8
      %s176 = scalar_lea.vmem %s0, %s175
      %p177 = pneg %p50
      %p178 = pneg %p47
      %p179 = pneg %p71
      %p180 = pneg %p68
      %p181 = pneg %p99
      %p182 = pneg %p96
      %s183 = smul.u32 8, %s20
      %p184 = scmp.lt.s32.totalorder %s19, 1
      %s185 = scalar_select %p184, %s19, 1
      %p186 = scmp.lt.s32.totalorder %s183, 15
      %s187 = scalar_select %p186, %s183, 15
      %s188 = smul.addr %s187, 2
      %s189 = smul.addr %s185, 32
      %s190 = sadd.s32 %s188, %s189
      %s191 = smul.addr %s190, 8
      %s192 = scalar_lea.vmem %s2, %s191
      %p193 = pneg %p127
      %p194 = pneg %p124
      %p195 = scmp.lt.s32.totalorder %s19, 1
      %s196 = scalar_select %p195, %s19, 1
      %p197 = scmp.lt.s32.totalorder %s20, 1
      %s198 = scalar_select %p197, %s20, 1
      %s199 = smul.addr %s196, 2
      %s200 = sadd.s32 %s198, %s199
      %s201 = smul.addr %s200, 2
      %s202 = scalar_lea.vmem %s3, %s201
      %p203 = scmp.lt.s32.totalorder %s19, 1
      %s204 = scalar_select %p203, %s19, 1
      %p205 = scmp.lt.s32.totalorder %s20, 1
      %s206 = scalar_select %p205, %s20, 1
      %s207 = smul.addr %s206, 30
      %s208 = smul.addr %s204, 60
      %s209 = sadd.s32 %s207, %s208
      %s210 = smul.addr %s209, 8
      %s211 = scalar_lea.vmem %s0, %s210
      %s212 = smul.u32 8, %s20
      %p213 = scmp.lt.s32.totalorder %s19, 1
      %s214 = scalar_select %p213, %s19, 1
      %p215 = scmp.lt.s32.totalorder %s212, 15
      %s216 = scalar_select %p215, %s212, 15
      %s217 = smul.addr %s216, 2
      %s218 = smul.addr %s214, 32
      %s219 = sadd.s32 %s217, %s218
      %s220 = smul.addr %s219, 8
      %s221 = scalar_lea.vmem %s2, %s220
      %s222 = smul.u32 8, %s20
      %p223 = scmp.lt.s32.totalorder %s19, 1
      %s224 = scalar_select %p223, %s19, 1
      %p225 = scmp.lt.s32.totalorder %s20, 1
      %s226 = scalar_select %p225, %s20, 1
      %s227 = smul.addr %s224, 2
      %s228 = sadd.s32 %s226, %s227
      %s229 = smul.addr %s228, 2
      %s230 = scalar_lea.vmem %s3, %s229
      %v231 = vld [vmem:[%s211] sm:$0xff]
      %v232 = vld [vmem:[%s211 + $0x8] sm:$0xff]
      %v233 = vld [vmem:[%s211 + $0x10] sm:$0x3]
      %v234 = vld [vmem:[%s211 + $0x18] sm:$0xff]
      %v235 = vld [vmem:[%s211 + $0x20] sm:$0xff]
      %v236 = vld [vmem:[%s211 + $0x28] sm:$0x3]
      %v237 = vld [vmem:[%s211 + $0x30] sm:$0xff]
      %v238 = vld [vmem:[%s211 + $0x38] sm:$0xff]
      %v239 = vld [vmem:[%s211 + $0x40] sm:$0x3]
      %v240 = vld [vmem:[%s211 + $0x48] sm:$0xff]
      %v241 = vld [vmem:[%s211 + $0x50] sm:$0xff]
      %v242 = vld [vmem:[%s211 + $0x58] sm:$0x3]
      %v243 = vld [vmem:[%s211 + $0x60] sm:$0xff]
      %v244 = vld [vmem:[%s211 + $0x68] sm:$0xff]
      %v245 = vld [vmem:[%s211 + $0x70] sm:$0x3]
      %v246 = vld [vmem:[%s211 + $0x78] sm:$0xff]
      %v247 = vld [vmem:[%s211 + $0x80] sm:$0xff]
      %v248 = vld [vmem:[%s211 + $0x88] sm:$0x3]
      %v249 = vld [vmem:[%s211 + $0x90] sm:$0xff]
      %v250 = vld [vmem:[%s211 + $0x98] sm:$0xff]
      %v251 = vld [vmem:[%s211 + $0xa0] sm:$0x3]
      %v252 = vld [vmem:[%s211 + $0xa8] sm:$0xff]
      %v253 = vld [vmem:[%s211 + $0xb0] sm:$0xff]
      %v254 = vld [vmem:[%s211 + $0xb8] sm:$0x3]
      %v255 = vld [vmem:[%s211 + $0xc0] sm:$0xff]
      %v256 = vld [vmem:[%s211 + $0xc8] sm:$0xff]
      %v257 = vld [vmem:[%s211 + $0xd0] sm:$0x3]
      %v258 = vld [vmem:[%s211 + $0xd8] sm:$0xff]
      %v259 = vld [vmem:[%s211 + $0xe0] sm:$0xff]
      %v260 = vld [vmem:[%s211 + $0xe8] sm:$0x3]
      %v261 = vmax.f32 %v231, 0.0
      %v262 = vmax.f32 %v232, 0.0
      %v263 = vmax.f32 %v233, 0.0
      %v264 = vmax.f32 %v234, 0.0
      %v265 = vmax.f32 %v235, 0.0
      %v266 = vmax.f32 %v236, 0.0
      %v267 = vmax.f32 %v237, 0.0
      %v268 = vmax.f32 %v238, 0.0
      %v269 = vmax.f32 %v239, 0.0
      %v270 = vmax.f32 %v240, 0.0
      %v271 = vmax.f32 %v241, 0.0
      %v272 = vmax.f32 %v242, 0.0
      %v273 = vmax.f32 %v243, 0.0
      %v274 = vmax.f32 %v244, 0.0
      %v275 = vmax.f32 %v245, 0.0
      %v276 = vmax.f32 %v246, 0.0
      %v277 = vmax.f32 %v247, 0.0
      %v278 = vmax.f32 %v248, 0.0
      %v279 = vmax.f32 %v249, 0.0
      %v280 = vmax.f32 %v250, 0.0
      %v281 = vmax.f32 %v251, 0.0
      %v282 = vmax.f32 %v252, 0.0
      %v283 = vmax.f32 %v253, 0.0
      %v284 = vmax.f32 %v254, 0.0
      %v285 = vmax.f32 %v255, 0.0
      %v286 = vmax.f32 %v256, 0.0
      %v287 = vmax.f32 %v257, 0.0
      %v288 = vmax.f32 %v258, 0.0
      %v289 = vmax.f32 %v259, 0.0
      %v290 = vmax.f32 %v260, 0.0
      %v291 = vld [vmem:[%s1] sm:$0xff]
      %v292 = vld [vmem:[%s1 + $0x8] sm:$0xff]
      %v293 = vld [vmem:[%s1 + $0x10] sm:$0xff]
      %v294 = vld [vmem:[%s1 + $0x18] sm:$0xff]
      %v295 = vld [vmem:[%s1 + $0x20] sm:$0xff]
      %v296 = vld [vmem:[%s1 + $0x28] sm:$0xff]
      %v297 = vld [vmem:[%s1 + $0x30] sm:$0xff]
      %v298 = vld [vmem:[%s1 + $0x38] sm:$0xff]
      %v299 = vld [vmem:[%s1 + $0x40] sm:$0xff]
      %v300 = vld [vmem:[%s1 + $0x48] sm:$0xff]
      %v301 = vld [vmem:[%s1 + $0x50] sm:$0xff]
      %v302 = vld [vmem:[%s1 + $0x58] sm:$0xff]
      %v303 = vld [vmem:[%s1 + $0x60] sm:$0xff]
      %v304 = vld [vmem:[%s1 + $0x68] sm:$0xff]
      %v305 = vld [vmem:[%s1 + $0x70] sm:$0xff]
      %v306 = vld [vmem:[%s1 + $0x78] sm:$0xff]
      %vm331 = vcmask 1046528
      %v332 = vrot.slane %v261, 1
      %v333 = vrot.slane %v262, 1
      %v334 = vsel %vm331, %v332, %v333
      %v335 = vrot.slane %v263, 1
      %v336 = vsel %vm331, %v333, %v335
      %v337 = vrot.slane %v264, 1
      %v338 = vrot.slane %v265, 1
      %v339 = vsel %vm331, %v337, %v338
      %v340 = vrot.slane %v266, 1
      %v341 = vsel %vm331, %v338, %v340
      %v342 = vrot.slane %v267, 1
      %v343 = vrot.slane %v268, 1
      %v344 = vsel %vm331, %v342, %v343
      %v345 = vrot.slane %v269, 1
      %v346 = vsel %vm331, %v343, %v345
      %v347 = vrot.slane %v270, 1
      %v348 = vrot.slane %v271, 1
      %v349 = vsel %vm331, %v347, %v348
      %v350 = vrot.slane %v272, 1
      %v351 = vsel %vm331, %v348, %v350
      %v352 = vrot.slane %v273, 1
      %v353 = vrot.slane %v274, 1
      %v354 = vsel %vm331, %v352, %v353
      %v355 = vrot.slane %v275, 1
      %v356 = vsel %vm331, %v353, %v355
      %v357 = vrot.slane %v276, 1
      %v358 = vrot.slane %v277, 1
      %v359 = vsel %vm331, %v357, %v358
      %v360 = vrot.slane %v278, 1
      %v361 = vsel %vm331, %v358, %v360
      %v362 = vrot.slane %v279, 1
      %v363 = vrot.slane %v280, 1
      %v364 = vsel %vm331, %v362, %v363
      %v365 = vrot.slane %v281, 1
      %v366 = vsel %vm331, %v363, %v365
      %v367 = vrot.slane %v282, 1
      %v368 = vrot.slane %v283, 1
      %v369 = vsel %vm331, %v367, %v368
      %v370 = vrot.slane %v284, 1
      %v371 = vsel %vm331, %v368, %v370
      %s388 = scalar_lea.vmem %s1, 128
      %v389 = vld [vmem:[%s388] sm:$0xff]
      %v390 = vld [vmem:[%s388 + $0x8] sm:$0xff]
      %v391 = vld [vmem:[%s388 + $0x10] sm:$0xff]
      %v392 = vld [vmem:[%s388 + $0x18] sm:$0xff]
      %v393 = vld [vmem:[%s388 + $0x20] sm:$0xff]
      %v394 = vld [vmem:[%s388 + $0x28] sm:$0xff]
      %v395 = vld [vmem:[%s388 + $0x30] sm:$0xff]
      %v396 = vld [vmem:[%s388 + $0x38] sm:$0xff]
      %v397 = vld [vmem:[%s388 + $0x40] sm:$0xff]
      %v398 = vld [vmem:[%s388 + $0x48] sm:$0xff]
      %v399 = vld [vmem:[%s388 + $0x50] sm:$0xff]
      %v400 = vld [vmem:[%s388 + $0x58] sm:$0xff]
      %v401 = vld [vmem:[%s388 + $0x60] sm:$0xff]
      %v402 = vld [vmem:[%s388 + $0x68] sm:$0xff]
      %v403 = vld [vmem:[%s388 + $0x70] sm:$0xff]
      %v404 = vld [vmem:[%s388 + $0x78] sm:$0xff]
      %405 = vmatprep.subr.mxu0 0.0
      %406 = vmatpush1.msra.mxu0 %v389
      %407 = vmatprep.subr.mxu0 0.0
      %408 = vmatpush1.msra.mxu0 %v390
      %409 = vmatprep.subr.mxu0 0.0
      %410 = vmatpush1.msra.mxu0 %v391
      %411 = vmatprep.subr.mxu0 0.0
      %412 = vmatpush1.msra.mxu0 %v392
      %413 = vmatprep.subr.mxu0 0.0
      %414 = vmatpush1.msra.mxu0 %v393
      %415 = vmatprep.subr.mxu0 0.0
      %416 = vmatpush1.msra.mxu0 %v394
      %417 = vmatprep.subr.mxu0 0.0
      %418 = vmatpush1.msra.mxu0 %v395
      %419 = vmatprep.subr.mxu0 0.0
      %420 = vmatpush1.msra.mxu0 %v396
      %421 = vmatprep.subr.mxu0 0.0
      %422 = vmatpush1.msra.mxu0 %v397
      %423 = vmatprep.subr.mxu0 0.0
      %424 = vmatpush1.msra.mxu0 %v398
      %425 = vmatprep.subr.mxu0 0.0
      %426 = vmatpush1.msra.mxu0 %v399
      %427 = vmatprep.subr.mxu0 0.0
      %428 = vmatpush1.msra.mxu0 %v400
      %429 = vmatprep.subr.mxu0 0.0
      %430 = vmatpush1.msra.mxu0 %v401
      %431 = vmatprep.subr.mxu0 0.0
      %432 = vmatpush1.msra.mxu0 %v402
      %433 = vmatprep.subr.mxu0 0.0
      %434 = vmatpush1.msra.mxu0 %v403
      %435 = vmatprep.subr.mxu0 0.0
      %436 = vmatpush1.msra.mxu0 %v404
      %437 = vmatprep.subr.mxu0 0.0
      %438 = vmatpush1.msra.mxu0 0.0
      %439 = vmatprep.subr.mxu0 0.0
      %440 = vmatpush1.msra.mxu0 0.0
      %441 = vmatprep.subr.mxu0 0.0
      %442 = vmatpush1.msra.mxu0 0.0
      %443 = vmatprep.subr.mxu0 0.0
      %444 = vmatpush1.msra.mxu0 0.0
      %445 = vmatprep.subr.mxu0 0.0
      %446 = vmatpush1.msra.mxu0 0.0
      %447 = vmatprep.subr.mxu0 0.0
      %448 = vmatpush1.msra.mxu0 0.0
      %449 = vmatprep.subr.mxu0 0.0
      %450 = vmatpush1.msra.mxu0 0.0
      %451 = vmatprep.subr.mxu0 0.0
      %452 = vmatpush1.msra.mxu0 0.0
      %453 = vmatprep.subr.mxu0 0.0
      %454 = vmatpush1.msra.mxu0 0.0
      %455 = vmatprep.subr.mxu0 0.0
      %456 = vmatpush1.msra.mxu0 0.0
      %457 = vmatprep.subr.mxu0 0.0
      %458 = vmatpush1.msra.mxu0 0.0
      %459 = vmatprep.subr.mxu0 0.0
      %460 = vmatpush1.msra.mxu0 0.0
      %461 = vmatprep.subr.mxu0 0.0
      %462 = vmatpush1.msra.mxu0 0.0
      %463 = vmatprep.subr.mxu0 0.0
      %464 = vmatpush1.msra.mxu0 0.0
      %465 = vmatprep.subr.mxu0 0.0
      %466 = vmatpush1.msra.mxu0 0.0
      %467 = vmatprep.subr.mxu0 0.0
      %468 = vmatpush1.msra.mxu0 0.0
      %469 = vmatprep.mubr.f32.mxu0 0.0
      %470 = vmatmul.mubr.f32.gmra.mrb[0].mxu0 %v334
      %v471 = vpop.f32.mrb[0].mxu0
      %v472 = vadd.f32 0.0, %v471
      %v473 = vpop.f32.mrb[0].mxu0
      %474 = vmatprep.mubr.f32.mxu0 0.0
      %475 = vmatmul.mubr.f32.gmra.mrb[0].mxu0 %v336
      %v476 = vpop.f32.mrb[0].mxu0
      %v477 = vadd.f32 0.0, %v476
      %v478 = vpop.f32.mrb[0].mxu0
      %479 = vmatprep.mubr.f32.mxu0 0.0
      %480 = vmatmul.mubr.f32.gmra.mrb[0].mxu0 %v339
      %v481 = vpop.f32.mrb[0].mxu0
      %v482 = vadd.f32 0.0, %v481
      %v483 = vpop.f32.mrb[0].mxu0
      %484 = vmatprep.mubr.f32.mxu0 0.0
      %485 = vmatmul.mubr.f32.gmra.mrb[0].mxu0 %v341
      %v486 = vpop.f32.mrb[0].mxu0
      %v487 = vadd.f32 0.0, %v486
      %v488 = vpop.f32.mrb[0].mxu0
      %489 = vmatprep.mubr.f32.mxu0 0.0
      %490 = vmatmul.mubr.f32.gmra.mrb[0].mxu0 %v344
      %v491 = vpop.f32.mrb[0].mxu0
      %v492 = vadd.f32 0.0, %v491
      %v493 = vpop.f32.mrb[0].mxu0
      %494 = vmatprep.mubr.f32.mxu0 0.0
      %495 = vmatmul.mubr.f32.gmra.mrb[0].mxu0 %v346
      %v496 = vpop.f32.mrb[0].mxu0
      %v497 = vadd.f32 0.0, %v496
      %v498 = vpop.f32.mrb[0].mxu0
      %499 = vmatprep.mubr.f32.mxu0 0.0
      %500 = vmatmul.mubr.f32.gmra.mrb[0].mxu0 %v349
      %v501 = vpop.f32.mrb[0].mxu0
      %v502 = vadd.f32 0.0, %v501
      %v503 = vpop.f32.mrb[0].mxu0
      %504 = vmatprep.mubr.f32.mxu0 0.0
      %505 = vmatmul.mubr.f32.gmra.mrb[0].mxu0 %v351
      %v506 = vpop.f32.mrb[0].mxu0
      %v507 = vadd.f32 0.0, %v506
      %v508 = vpop.f32.mrb[0].mxu0
      %509 = vmatprep.mubr.f32.mxu0 0.0
      %510 = vmatmul.mubr.f32.gmra.mrb[0].mxu0 %v354
      %v511 = vpop.f32.mrb[0].mxu0
      %v512 = vadd.f32 0.0, %v511
      %v513 = vpop.f32.mrb[0].mxu0
      %514 = vmatprep.mubr.f32.mxu0 0.0
      %515 = vmatmul.mubr.f32.gmra.mrb[0].mxu0 %v356
      %v516 = vpop.f32.mrb[0].mxu0
      %v517 = vadd.f32 0.0, %v516
      %v518 = vpop.f32.mrb[0].mxu0
      %519 = vmatprep.mubr.f32.mxu0 0.0
      %520 = vmatmul.mubr.f32.gmra.mrb[0].mxu0 %v359
      %v521 = vpop.f32.mrb[0].mxu0
      %v522 = vadd.f32 0.0, %v521
      %v523 = vpop.f32.mrb[0].mxu0
      %524 = vmatprep.mubr.f32.mxu0 0.0
      %525 = vmatmul.mubr.f32.gmra.mrb[0].mxu0 %v361
      %v526 = vpop.f32.mrb[0].mxu0
      %v527 = vadd.f32 0.0, %v526
      %v528 = vpop.f32.mrb[0].mxu0
      %529 = vmatprep.mubr.f32.mxu0 0.0
      %530 = vmatmul.mubr.f32.gmra.mrb[0].mxu0 %v364
      %v531 = vpop.f32.mrb[0].mxu0
      %v532 = vadd.f32 0.0, %v531
      %v533 = vpop.f32.mrb[0].mxu0
      %534 = vmatprep.mubr.f32.mxu0 0.0
      %535 = vmatmul.mubr.f32.gmra.mrb[0].mxu0 %v366
      %v536 = vpop.f32.mrb[0].mxu0
      %v537 = vadd.f32 0.0, %v536
      %v538 = vpop.f32.mrb[0].mxu0
      %539 = vmatprep.mubr.f32.mxu0 0.0
      %540 = vmatmul.mubr.f32.gmra.mrb[0].mxu0 %v369
      %v541 = vpop.f32.mrb[0].mxu0
      %v542 = vadd.f32 0.0, %v541
      %v543 = vpop.f32.mrb[0].mxu0
      %544 = vmatprep.mubr.f32.mxu0 0.0
      %545 = vmatmul.mubr.f32.gmra.mrb[0].mxu0 %v371
      %v546 = vpop.f32.mrb[0].mxu0
      %v547 = vadd.f32 0.0, %v546
      %v548 = vpop.f32.mrb[0].mxu0
      %549 = vdwg.mxu0
      %550 = vmatprep.subr.mxu0 0.0
      %551 = vmatpush1.msra.mxu0 %v291
      %552 = vmatprep.subr.mxu0 0.0
      %553 = vmatpush1.msra.mxu0 %v292
      %554 = vmatprep.subr.mxu0 0.0
      %555 = vmatpush1.msra.mxu0 %v293
      %556 = vmatprep.subr.mxu0 0.0
      %557 = vmatpush1.msra.mxu0 %v294
      %558 = vmatprep.subr.mxu0 0.0
      %559 = vmatpush1.msra.mxu0 %v295
      %560 = vmatprep.subr.mxu0 0.0
      %561 = vmatpush1.msra.mxu0 %v296
      %562 = vmatprep.subr.mxu0 0.0
      %563 = vmatpush1.msra.mxu0 %v297
      %564 = vmatprep.subr.mxu0 0.0
      %565 = vmatpush1.msra.mxu0 %v298
      %566 = vmatprep.subr.mxu0 0.0
      %567 = vmatpush1.msra.mxu0 %v299
      %568 = vmatprep.subr.mxu0 0.0
      %569 = vmatpush1.msra.mxu0 %v300
      %570 = vmatprep.subr.mxu0 0.0
      %571 = vmatpush1.msra.mxu0 %v301
      %572 = vmatprep.subr.mxu0 0.0
      %573 = vmatpush1.msra.mxu0 %v302
      %574 = vmatprep.subr.mxu0 0.0
      %575 = vmatpush1.msra.mxu0 %v303
      %576 = vmatprep.subr.mxu0 0.0
      %577 = vmatpush1.msra.mxu0 %v304
      %578 = vmatprep.subr.mxu0 0.0
      %579 = vmatpush1.msra.mxu0 %v305
      %580 = vmatprep.subr.mxu0 0.0
      %581 = vmatpush1.msra.mxu0 %v306
      %582 = vmatprep.subr.mxu0 0.0
      %583 = vmatpush1.msra.mxu0 0.0
      %584 = vmatprep.subr.mxu0 0.0
      %585 = vmatpush1.msra.mxu0 0.0
      %586 = vmatprep.subr.mxu0 0.0
      %587 = vmatpush1.msra.mxu0 0.0
      %588 = vmatprep.subr.mxu0 0.0
      %589 = vmatpush1.msra.mxu0 0.0
      %590 = vmatprep.subr.mxu0 0.0
      %591 = vmatpush1.msra.mxu0 0.0
      %592 = vmatprep.subr.mxu0 0.0
      %593 = vmatpush1.msra.mxu0 0.0
      %594 = vmatprep.subr.mxu0 0.0
      %595 = vmatpush1.msra.mxu0 0.0
      %596 = vmatprep.subr.mxu0 0.0
      %597 = vmatpush1.msra.mxu0 0.0
      %598 = vmatprep.subr.mxu0 0.0
      %599 = vmatpush1.msra.mxu0 0.0
      %600 = vmatprep.subr.mxu0 0.0
      %601 = vmatpush1.msra.mxu0 0.0
      %602 = vmatprep.subr.mxu0 0.0
      %603 = vmatpush1.msra.mxu0 0.0
      %604 = vmatprep.subr.mxu0 0.0
      %605 = vmatpush1.msra.mxu0 0.0
      %606 = vmatprep.subr.mxu0 0.0
      %607 = vmatpush1.msra.mxu0 0.0
      %608 = vmatprep.subr.mxu0 0.0
      %609 = vmatpush1.msra.mxu0 0.0
      %610 = vmatprep.subr.mxu0 0.0
      %611 = vmatpush1.msra.mxu0 0.0
      %612 = vmatprep.subr.mxu0 0.0
      %613 = vmatpush1.msra.mxu0 0.0
      %614 = vmatprep.mubr.f32.mxu0 0.0
      %615 = vmatmul.mubr.f32.gmra.mrb[0].mxu0 %v261
      %v616 = vpop.f32.mrb[0].mxu0
      %v617 = vadd.f32 %v472, %v616
      %v618 = vpop.f32.mrb[0].mxu0
      %619 = vmatprep.mubr.f32.mxu0 0.0
      %620 = vmatmul.mubr.f32.gmra.mrb[0].mxu0 %v262
      %v621 = vpop.f32.mrb[0].mxu0
      %v622 = vadd.f32 %v477, %v621
      %v623 = vpop.f32.mrb[0].mxu0
      %624 = vmatprep.mubr.f32.mxu0 0.0
      %625 = vmatmul.mubr.f32.gmra.mrb[0].mxu0 %v264
      %v626 = vpop.f32.mrb[0].mxu0
      %v627 = vadd.f32 %v482, %v626
      %v628 = vpop.f32.mrb[0].mxu0
      %629 = vmatprep.mubr.f32.mxu0 0.0
      %630 = vmatmul.mubr.f32.gmra.mrb[0].mxu0 %v265
      %v631 = vpop.f32.mrb[0].mxu0
      %v632 = vadd.f32 %v487, %v631
      %v633 = vpop.f32.mrb[0].mxu0
      %634 = vmatprep.mubr.f32.mxu0 0.0
      %635 = vmatmul.mubr.f32.gmra.mrb[0].mxu0 %v267
      %v636 = vpop.f32.mrb[0].mxu0
      %v637 = vadd.f32 %v492, %v636
      %v638 = vpop.f32.mrb[0].mxu0
      %639 = vmatprep.mubr.f32.mxu0 0.0
      %640 = vmatmul.mubr.f32.gmra.mrb[0].mxu0 %v268
      %v641 = vpop.f32.mrb[0].mxu0
      %v642 = vadd.f32 %v497, %v641
      %v643 = vpop.f32.mrb[0].mxu0
      %644 = vmatprep.mubr.f32.mxu0 0.0
      %645 = vmatmul.mubr.f32.gmra.mrb[0].mxu0 %v270
      %v646 = vpop.f32.mrb[0].mxu0
      %v647 = vadd.f32 %v502, %v646
      %v648 = vpop.f32.mrb[0].mxu0
      %649 = vmatprep.mubr.f32.mxu0 0.0
      %650 = vmatmul.mubr.f32.gmra.mrb[0].mxu0 %v271
      %v651 = vpop.f32.mrb[0].mxu0
      %v652 = vadd.f32 %v507, %v651
      %v653 = vpop.f32.mrb[0].mxu0
      %654 = vmatprep.mubr.f32.mxu0 0.0
      %655 = vmatmul.mubr.f32.gmra.mrb[0].mxu0 %v273
      %v656 = vpop.f32.mrb[0].mxu0
      %v657 = vadd.f32 %v512, %v656
      %v658 = vpop.f32.mrb[0].mxu0
      %659 = vmatprep.mubr.f32.mxu0 0.0
      %660 = vmatmul.mubr.f32.gmra.mrb[0].mxu0 %v274
      %v661 = vpop.f32.mrb[0].mxu0
      %v662 = vadd.f32 %v517, %v661
      %v663 = vpop.f32.mrb[0].mxu0
      %664 = vmatprep.mubr.f32.mxu0 0.0
      %665 = vmatmul.mubr.f32.gmra.mrb[0].mxu0 %v276
      %v666 = vpop.f32.mrb[0].mxu0
      %v667 = vadd.f32 %v522, %v666
      %v668 = vpop.f32.mrb[0].mxu0
      %669 = vmatprep.mubr.f32.mxu0 0.0
      %670 = vmatmul.mubr.f32.gmra.mrb[0].mxu0 %v277
      %v671 = vpop.f32.mrb[0].mxu0
      %v672 = vadd.f32 %v527, %v671
      %v673 = vpop.f32.mrb[0].mxu0
      %674 = vmatprep.mubr.f32.mxu0 0.0
      %675 = vmatmul.mubr.f32.gmra.mrb[0].mxu0 %v279
      %v676 = vpop.f32.mrb[0].mxu0
      %v677 = vadd.f32 %v532, %v676
      %v678 = vpop.f32.mrb[0].mxu0
      %679 = vmatprep.mubr.f32.mxu0 0.0
      %680 = vmatmul.mubr.f32.gmra.mrb[0].mxu0 %v280
      %v681 = vpop.f32.mrb[0].mxu0
      %v682 = vadd.f32 %v537, %v681
      %v683 = vpop.f32.mrb[0].mxu0
      %684 = vmatprep.mubr.f32.mxu0 0.0
      %685 = vmatmul.mubr.f32.gmra.mrb[0].mxu0 %v282
      %v686 = vpop.f32.mrb[0].mxu0
      %v687 = vadd.f32 %v542, %v686
      %v688 = vpop.f32.mrb[0].mxu0
      %689 = vmatprep.mubr.f32.mxu0 0.0
      %690 = vmatmul.mubr.f32.gmra.mrb[0].mxu0 %v283
      %v691 = vpop.f32.mrb[0].mxu0
      %v692 = vadd.f32 %v547, %v691
      %v693 = vpop.f32.mrb[0].mxu0
      %694 = vdwg.mxu0
      %vm695 = vcmask 1045504
      %v696 = vrot.slane %v261, 2
      %v697 = vrot.slane %v262, 2
      %v698 = vsel %vm695, %v696, %v697
      %v699 = vrot.slane %v263, 2
      %v700 = vsel %vm695, %v697, %v699
      %v701 = vrot.slane %v264, 2
      %v702 = vrot.slane %v265, 2
      %v703 = vsel %vm695, %v701, %v702
      %v704 = vrot.slane %v266, 2
      %v705 = vsel %vm695, %v702, %v704
      %v706 = vrot.slane %v267, 2
      %v707 = vrot.slane %v268, 2
      %v708 = vsel %vm695, %v706, %v707
      %v709 = vrot.slane %v269, 2
      %v710 = vsel %vm695, %v707, %v709
      %v711 = vrot.slane %v270, 2
      %v712 = vrot.slane %v271, 2
      %v713 = vsel %vm695, %v711, %v712
      %v714 = vrot.slane %v272, 2
      %v715 = vsel %vm695, %v712, %v714
      %v716 = vrot.slane %v273, 2
      %v717 = vrot.slane %v274, 2
      %v718 = vsel %vm695, %v716, %v717
      %v719 = vrot.slane %v275, 2
      %v720 = vsel %vm695, %v717, %v719
      %v721 = vrot.slane %v276, 2
      %v722 = vrot.slane %v277, 2
      %v723 = vsel %vm695, %v721, %v722
      %v724 = vrot.slane %v278, 2
      %v725 = vsel %vm695, %v722, %v724
      %v726 = vrot.slane %v279, 2
      %v727 = vrot.slane %v280, 2
      %v728 = vsel %vm695, %v726, %v727
      %v729 = vrot.slane %v281, 2
      %v730 = vsel %vm695, %v727, %v729
      %v731 = vrot.slane %v282, 2
      %v732 = vrot.slane %v283, 2
      %v733 = vsel %vm695, %v731, %v732
      %v734 = vrot.slane %v284, 2
      %v735 = vsel %vm695, %v732, %v734
      %s752 = scalar_lea.vmem %s1, 256
      %v753 = vld [vmem:[%s752] sm:$0xff]
      %v754 = vld [vmem:[%s752 + $0x8] sm:$0xff]
      %v755 = vld [vmem:[%s752 + $0x10] sm:$0xff]
      %v756 = vld [vmem:[%s752 + $0x18] sm:$0xff]
      %v757 = vld [vmem:[%s752 + $0x20] sm:$0xff]
      %v758 = vld [vmem:[%s752 + $0x28] sm:$0xff]
      %v759 = vld [vmem:[%s752 + $0x30] sm:$0xff]
      %v760 = vld [vmem:[%s752 + $0x38] sm:$0xff]
      %v761 = vld [vmem:[%s752 + $0x40] sm:$0xff]
      %v762 = vld [vmem:[%s752 + $0x48] sm:$0xff]
      %v763 = vld [vmem:[%s752 + $0x50] sm:$0xff]
      %v764 = vld [vmem:[%s752 + $0x58] sm:$0xff]
      %v765 = vld [vmem:[%s752 + $0x60] sm:$0xff]
      %v766 = vld [vmem:[%s752 + $0x68] sm:$0xff]
      %v767 = vld [vmem:[%s752 + $0x70] sm:$0xff]
      %v768 = vld [vmem:[%s752 + $0x78] sm:$0xff]
      %769 = vmatprep.subr.mxu0 0.0
      %770 = vmatpush1.msra.mxu0 %v753
      %771 = vmatprep.subr.mxu0 0.0
      %772 = vmatpush1.msra.mxu0 %v754
      %773 = vmatprep.subr.mxu0 0.0
      %774 = vmatpush1.msra.mxu0 %v755
      %775 = vmatprep.subr.mxu0 0.0
      %776 = vmatpush1.msra.mxu0 %v756
      %777 = vmatprep.subr.mxu0 0.0
      %778 = vmatpush1.msra.mxu0 %v757
      %779 = vmatprep.subr.mxu0 0.0
      %780 = vmatpush1.msra.mxu0 %v758
      %781 = vmatprep.subr.mxu0 0.0
      %782 = vmatpush1.msra.mxu0 %v759
      %783 = vmatprep.subr.mxu0 0.0
      %784 = vmatpush1.msra.mxu0 %v760
      %785 = vmatprep.subr.mxu0 0.0
      %786 = vmatpush1.msra.mxu0 %v761
      %787 = vmatprep.subr.mxu0 0.0
      %788 = vmatpush1.msra.mxu0 %v762
      %789 = vmatprep.subr.mxu0 0.0
      %790 = vmatpush1.msra.mxu0 %v763
      %791 = vmatprep.subr.mxu0 0.0
      %792 = vmatpush1.msra.mxu0 %v764
      %793 = vmatprep.subr.mxu0 0.0
      %794 = vmatpush1.msra.mxu0 %v765
      %795 = vmatprep.subr.mxu0 0.0
      %796 = vmatpush1.msra.mxu0 %v766
      %797 = vmatprep.subr.mxu0 0.0
      %798 = vmatpush1.msra.mxu0 %v767
      %799 = vmatprep.subr.mxu0 0.0
      %800 = vmatpush1.msra.mxu0 %v768
      %801 = vmatprep.subr.mxu0 0.0
      %802 = vmatpush1.msra.mxu0 0.0
      %803 = vmatprep.subr.mxu0 0.0
      %804 = vmatpush1.msra.mxu0 0.0
      %805 = vmatprep.subr.mxu0 0.0
      %806 = vmatpush1.msra.mxu0 0.0
      %807 = vmatprep.subr.mxu0 0.0
      %808 = vmatpush1.msra.mxu0 0.0
      %809 = vmatprep.subr.mxu0 0.0
      %810 = vmatpush1.msra.mxu0 0.0
      %811 = vmatprep.subr.mxu0 0.0
      %812 = vmatpush1.msra.mxu0 0.0
      %813 = vmatprep.subr.mxu0 0.0
      %814 = vmatpush1.msra.mxu0 0.0
      %815 = vmatprep.subr.mxu0 0.0
      %816 = vmatpush1.msra.mxu0 0.0
      %817 = vmatprep.subr.mxu0 0.0
      %818 = vmatpush1.msra.mxu0 0.0
      %819 = vmatprep.subr.mxu0 0.0
      %820 = vmatpush1.msra.mxu0 0.0
      %821 = vmatprep.subr.mxu0 0.0
      %822 = vmatpush1.msra.mxu0 0.0
      %823 = vmatprep.subr.mxu0 0.0
      %824 = vmatpush1.msra.mxu0 0.0
      %825 = vmatprep.subr.mxu0 0.0
      %826 = vmatpush1.msra.mxu0 0.0
      %827 = vmatprep.subr.mxu0 0.0
      %828 = vmatpush1.msra.mxu0 0.0
      %829 = vmatprep.subr.mxu0 0.0
      %830 = vmatpush1.msra.mxu0 0.0
      %831 = vmatprep.subr.mxu0 0.0
      %832 = vmatpush1.msra.mxu0 0.0
      %833 = vmatprep.mubr.f32.mxu0 0.0
      %834 = vmatmul.mubr.f32.gmra.mrb[0].mxu0 %v698
      %v835 = vpop.f32.mrb[0].mxu0
      %v836 = vadd.f32 0.0, %v835
      %v837 = vpop.f32.mrb[0].mxu0
      %838 = vmatprep.mubr.f32.mxu0 0.0
      %839 = vmatmul.mubr.f32.gmra.mrb[0].mxu0 %v700
      %v840 = vpop.f32.mrb[0].mxu0
      %v841 = vadd.f32 0.0, %v840
      %v842 = vpop.f32.mrb[0].mxu0
      %843 = vmatprep.mubr.f32.mxu0 0.0
      %844 = vmatmul.mubr.f32.gmra.mrb[0].mxu0 %v703
      %v845 = vpop.f32.mrb[0].mxu0
      %v846 = vadd.f32 0.0, %v845
      %v847 = vpop.f32.mrb[0].mxu0
      %848 = vmatprep.mubr.f32.mxu0 0.0
      %849 = vmatmul.mubr.f32.gmra.mrb[0].mxu0 %v705
      %v850 = vpop.f32.mrb[0].mxu0
      %v851 = vadd.f32 0.0, %v850
      %v852 = vpop.f32.mrb[0].mxu0
      %853 = vmatprep.mubr.f32.mxu0 0.0
      %854 = vmatmul.mubr.f32.gmra.mrb[0].mxu0 %v708
      %v855 = vpop.f32.mrb[0].mxu0
      %v856 = vadd.f32 0.0, %v855
      %v857 = vpop.f32.mrb[0].mxu0
      %858 = vmatprep.mubr.f32.mxu0 0.0
      %859 = vmatmul.mubr.f32.gmra.mrb[0].mxu0 %v710
      %v860 = vpop.f32.mrb[0].mxu0
      %v861 = vadd.f32 0.0, %v860
      %v862 = vpop.f32.mrb[0].mxu0
      %863 = vmatprep.mubr.f32.mxu0 0.0
      %864 = vmatmul.mubr.f32.gmra.mrb[0].mxu0 %v713
      %v865 = vpop.f32.mrb[0].mxu0
      %v866 = vadd.f32 0.0, %v865
      %v867 = vpop.f32.mrb[0].mxu0
      %868 = vmatprep.mubr.f32.mxu0 0.0
      %869 = vmatmul.mubr.f32.gmra.mrb[0].mxu0 %v715
      %v870 = vpop.f32.mrb[0].mxu0
      %v871 = vadd.f32 0.0, %v870
      %v872 = vpop.f32.mrb[0].mxu0
      %873 = vmatprep.mubr.f32.mxu0 0.0
      %874 = vmatmul.mubr.f32.gmra.mrb[0].mxu0 %v718
      %v875 = vpop.f32.mrb[0].mxu0
      %v876 = vadd.f32 0.0, %v875
      %v877 = vpop.f32.mrb[0].mxu0
      %878 = vmatprep.mubr.f32.mxu0 0.0
      %879 = vmatmul.mubr.f32.gmra.mrb[0].mxu0 %v720
      %v880 = vpop.f32.mrb[0].mxu0
      %v881 = vadd.f32 0.0, %v880
      %v882 = vpop.f32.mrb[0].mxu0
      %883 = vmatprep.mubr.f32.mxu0 0.0
      %884 = vmatmul.mubr.f32.gmra.mrb[0].mxu0 %v723
      %v885 = vpop.f32.mrb[0].mxu0
      %v886 = vadd.f32 0.0, %v885
      %v887 = vpop.f32.mrb[0].mxu0
      %888 = vmatprep.mubr.f32.mxu0 0.0
      %889 = vmatmul.mubr.f32.gmra.mrb[0].mxu0 %v725
      %v890 = vpop.f32.mrb[0].mxu0
      %v891 = vadd.f32 0.0, %v890
      %v892 = vpop.f32.mrb[0].mxu0
      %893 = vmatprep.mubr.f32.mxu0 0.0
      %894 = vmatmul.mubr.f32.gmra.mrb[0].mxu0 %v728
      %v895 = vpop.f32.mrb[0].mxu0
      %v896 = vadd.f32 0.0, %v895
      %v897 = vpop.f32.mrb[0].mxu0
      %898 = vmatprep.mubr.f32.mxu0 0.0
      %899 = vmatmul.mubr.f32.gmra.mrb[0].mxu0 %v730
      %v900 = vpop.f32.mrb[0].mxu0
      %v901 = vadd.f32 0.0, %v900
      %v902 = vpop.f32.mrb[0].mxu0
      %903 = vmatprep.mubr.f32.mxu0 0.0
      %904 = vmatmul.mubr.f32.gmra.mrb[0].mxu0 %v733
      %v905 = vpop.f32.mrb[0].mxu0
      %v906 = vadd.f32 0.0, %v905
      %v907 = vpop.f32.mrb[0].mxu0
      %908 = vmatprep.mubr.f32.mxu0 0.0
      %909 = vmatmul.mubr.f32.gmra.mrb[0].mxu0 %v735
      %v910 = vpop.f32.mrb[0].mxu0
      %v911 = vadd.f32 0.0, %v910
      %v912 = vpop.f32.mrb[0].mxu0
      %913 = vdwg.mxu0
      %v914 = vadd.f32 %v617, %v836
      %v915 = vadd.f32 %v622, %v841
      %v916 = vadd.f32 %v627, %v846
      %v917 = vadd.f32 %v632, %v851
      %v918 = vadd.f32 %v637, %v856
      %v919 = vadd.f32 %v642, %v861
      %v920 = vadd.f32 %v647, %v866
      %v921 = vadd.f32 %v652, %v871
      %v922 = vadd.f32 %v657, %v876
      %v923 = vadd.f32 %v662, %v881
      %v924 = vadd.f32 %v667, %v886
      %v925 = vadd.f32 %v672, %v891
      %v926 = vadd.f32 %v677, %v896
      %v927 = vadd.f32 %v682, %v901
      %v928 = vadd.f32 %v687, %v906
      %v929 = vadd.f32 %v692, %v911
      %s930 = scalar_lea.vmem %s1, 384
      %v931 = vld [vmem:[%s930] sm:$0xff]
      %v932 = vld [vmem:[%s930 + $0x8] sm:$0xff]
      %v933 = vld [vmem:[%s930 + $0x10] sm:$0xff]
      %v934 = vld [vmem:[%s930 + $0x18] sm:$0xff]
      %v935 = vld [vmem:[%s930 + $0x20] sm:$0xff]
      %v936 = vld [vmem:[%s930 + $0x28] sm:$0xff]
      %v937 = vld [vmem:[%s930 + $0x30] sm:$0xff]
      %v938 = vld [vmem:[%s930 + $0x38] sm:$0xff]
      %v939 = vld [vmem:[%s930 + $0x40] sm:$0xff]
      %v940 = vld [vmem:[%s930 + $0x48] sm:$0xff]
      %v941 = vld [vmem:[%s930 + $0x50] sm:$0xff]
      %v942 = vld [vmem:[%s930 + $0x58] sm:$0xff]
      %v943 = vld [vmem:[%s930 + $0x60] sm:$0xff]
      %v944 = vld [vmem:[%s930 + $0x68] sm:$0xff]
      %v945 = vld [vmem:[%s930 + $0x70] sm:$0xff]
      %v946 = vld [vmem:[%s930 + $0x78] sm:$0xff]
      %947 = vmatprep.subr.mxu0 0.0
      %948 = vmatpush1.msra.mxu0 %v931
      %949 = vmatprep.subr.mxu0 0.0
      %950 = vmatpush1.msra.mxu0 %v932
      %951 = vmatprep.subr.mxu0 0.0
      %952 = vmatpush1.msra.mxu0 %v933
      %953 = vmatprep.subr.mxu0 0.0
      %954 = vmatpush1.msra.mxu0 %v934
      %955 = vmatprep.subr.mxu0 0.0
      %956 = vmatpush1.msra.mxu0 %v935
      %957 = vmatprep.subr.mxu0 0.0
      %958 = vmatpush1.msra.mxu0 %v936
      %959 = vmatprep.subr.mxu0 0.0
      %960 = vmatpush1.msra.mxu0 %v937
      %961 = vmatprep.subr.mxu0 0.0
      %962 = vmatpush1.msra.mxu0 %v938
      %963 = vmatprep.subr.mxu0 0.0
      %964 = vmatpush1.msra.mxu0 %v939
      %965 = vmatprep.subr.mxu0 0.0
      %966 = vmatpush1.msra.mxu0 %v940
      %967 = vmatprep.subr.mxu0 0.0
      %968 = vmatpush1.msra.mxu0 %v941
      %969 = vmatprep.subr.mxu0 0.0
      %970 = vmatpush1.msra.mxu0 %v942
      %971 = vmatprep.subr.mxu0 0.0
      %972 = vmatpush1.msra.mxu0 %v943
      %973 = vmatprep.subr.mxu0 0.0
      %974 = vmatpush1.msra.mxu0 %v944
      %975 = vmatprep.subr.mxu0 0.0
      %976 = vmatpush1.msra.mxu0 %v945
      %977 = vmatprep.subr.mxu0 0.0
      %978 = vmatpush1.msra.mxu0 %v946
      %979 = vmatprep.subr.mxu0 0.0
      %980 = vmatpush1.msra.mxu0 0.0
      %981 = vmatprep.subr.mxu0 0.0
      %982 = vmatpush1.msra.mxu0 0.0
      %983 = vmatprep.subr.mxu0 0.0
      %984 = vmatpush1.msra.mxu0 0.0
      %985 = vmatprep.subr.mxu0 0.0
      %986 = vmatpush1.msra.mxu0 0.0
      %987 = vmatprep.subr.mxu0 0.0
      %988 = vmatpush1.msra.mxu0 0.0
      %989 = vmatprep.subr.mxu0 0.0
      %990 = vmatpush1.msra.mxu0 0.0
      %991 = vmatprep.subr.mxu0 0.0
      %992 = vmatpush1.msra.mxu0 0.0
      %993 = vmatprep.subr.mxu0 0.0
      %994 = vmatpush1.msra.mxu0 0.0
      %995 = vmatprep.subr.mxu0 0.0
      %996 = vmatpush1.msra.mxu0 0.0
      %997 = vmatprep.subr.mxu0 0.0
      %998 = vmatpush1.msra.mxu0 0.0
      %999 = vmatprep.subr.mxu0 0.0
      %1000 = vmatpush1.msra.mxu0 0.0
      %1001 = vmatprep.subr.mxu0 0.0
      %1002 = vmatpush1.msra.mxu0 0.0
      %1003 = vmatprep.subr.mxu0 0.0
      %1004 = vmatpush1.msra.mxu0 0.0
      %1005 = vmatprep.subr.mxu0 0.0
      %1006 = vmatpush1.msra.mxu0 0.0
      %1007 = vmatprep.subr.mxu0 0.0
      %1008 = vmatpush1.msra.mxu0 0.0
      %1009 = vmatprep.subr.mxu0 0.0
      %1010 = vmatpush1.msra.mxu0 0.0
      %1011 = vmatprep.mubr.f32.mxu0 0.0
      %1012 = vmatmul.mubr.f32.gmra.mrb[0].mxu0 %v264
      %v1013 = vpop.f32.mrb[0].mxu0
      %v1014 = vadd.f32 0.0, %v1013
      %v1015 = vpop.f32.mrb[0].mxu0
      %1016 = vmatprep.mubr.f32.mxu0 0.0
      %1017 = vmatmul.mubr.f32.gmra.mrb[0].mxu0 %v265
      %v1018 = vpop.f32.mrb[0].mxu0
      %v1019 = vadd.f32 0.0, %v1018
      %v1020 = vpop.f32.mrb[0].mxu0
      %1021 = vmatprep.mubr.f32.mxu0 0.0
      %1022 = vmatmul.mubr.f32.gmra.mrb[0].mxu0 %v267
      %v1023 = vpop.f32.mrb[0].mxu0
      %v1024 = vadd.f32 0.0, %v1023
      %v1025 = vpop.f32.mrb[0].mxu0
      %1026 = vmatprep.mubr.f32.mxu0 0.0
      %1027 = vmatmul.mubr.f32.gmra.mrb[0].mxu0 %v268
      %v1028 = vpop.f32.mrb[0].mxu0
      %v1029 = vadd.f32 0.0, %v1028
      %v1030 = vpop.f32.mrb[0].mxu0
      %1031 = vmatprep.mubr.f32.mxu0 0.0
      %1032 = vmatmul.mubr.f32.gmra.mrb[0].mxu0 %v270
      %v1033 = vpop.f32.mrb[0].mxu0
      %v1034 = vadd.f32 0.0, %v1033
      %v1035 = vpop.f32.mrb[0].mxu0
      %1036 = vmatprep.mubr.f32.mxu0 0.0
      %1037 = vmatmul.mubr.f32.gmra.mrb[0].mxu0 %v271
      %v1038 = vpop.f32.mrb[0].mxu0
      %v1039 = vadd.f32 0.0, %v1038
      %v1040 = vpop.f32.mrb[0].mxu0
      %1041 = vmatprep.mubr.f32.mxu0 0.0
      %1042 = vmatmul.mubr.f32.gmra.mrb[0].mxu0 %v273
      %v1043 = vpop.f32.mrb[0].mxu0
      %v1044 = vadd.f32 0.0, %v1043
      %v1045 = vpop.f32.mrb[0].mxu0
      %1046 = vmatprep.mubr.f32.mxu0 0.0
      %1047 = vmatmul.mubr.f32.gmra.mrb[0].mxu0 %v274
      %v1048 = vpop.f32.mrb[0].mxu0
      %v1049 = vadd.f32 0.0, %v1048
      %v1050 = vpop.f32.mrb[0].mxu0
      %1051 = vmatprep.mubr.f32.mxu0 0.0
      %1052 = vmatmul.mubr.f32.gmra.mrb[0].mxu0 %v276
      %v1053 = vpop.f32.mrb[0].mxu0
      %v1054 = vadd.f32 0.0, %v1053
      %v1055 = vpop.f32.mrb[0].mxu0
      %1056 = vmatprep.mubr.f32.mxu0 0.0
      %1057 = vmatmul.mubr.f32.gmra.mrb[0].mxu0 %v277
      %v1058 = vpop.f32.mrb[0].mxu0
      %v1059 = vadd.f32 0.0, %v1058
      %v1060 = vpop.f32.mrb[0].mxu0
      %1061 = vmatprep.mubr.f32.mxu0 0.0
      %1062 = vmatmul.mubr.f32.gmra.mrb[0].mxu0 %v279
      %v1063 = vpop.f32.mrb[0].mxu0
      %v1064 = vadd.f32 0.0, %v1063
      %v1065 = vpop.f32.mrb[0].mxu0
      %1066 = vmatprep.mubr.f32.mxu0 0.0
      %1067 = vmatmul.mubr.f32.gmra.mrb[0].mxu0 %v280
      %v1068 = vpop.f32.mrb[0].mxu0
      %v1069 = vadd.f32 0.0, %v1068
      %v1070 = vpop.f32.mrb[0].mxu0
      %1071 = vmatprep.mubr.f32.mxu0 0.0
      %1072 = vmatmul.mubr.f32.gmra.mrb[0].mxu0 %v282
      %v1073 = vpop.f32.mrb[0].mxu0
      %v1074 = vadd.f32 0.0, %v1073
      %v1075 = vpop.f32.mrb[0].mxu0
      %1076 = vmatprep.mubr.f32.mxu0 0.0
      %1077 = vmatmul.mubr.f32.gmra.mrb[0].mxu0 %v283
      %v1078 = vpop.f32.mrb[0].mxu0
      %v1079 = vadd.f32 0.0, %v1078
      %v1080 = vpop.f32.mrb[0].mxu0
      %1081 = vmatprep.mubr.f32.mxu0 0.0
      %1082 = vmatmul.mubr.f32.gmra.mrb[0].mxu0 %v285
      %v1083 = vpop.f32.mrb[0].mxu0
      %v1084 = vadd.f32 0.0, %v1083
      %v1085 = vpop.f32.mrb[0].mxu0
      %1086 = vmatprep.mubr.f32.mxu0 0.0
      %1087 = vmatmul.mubr.f32.gmra.mrb[0].mxu0 %v286
      %v1088 = vpop.f32.mrb[0].mxu0
      %v1089 = vadd.f32 0.0, %v1088
      %v1090 = vpop.f32.mrb[0].mxu0
      %1091 = vdwg.mxu0
      %v1092 = vadd.f32 %v914, %v1014
      %v1093 = vadd.f32 %v915, %v1019
      %v1094 = vadd.f32 %v916, %v1024
      %v1095 = vadd.f32 %v917, %v1029
      %v1096 = vadd.f32 %v918, %v1034
      %v1097 = vadd.f32 %v919, %v1039
      %v1098 = vadd.f32 %v920, %v1044
      %v1099 = vadd.f32 %v921, %v1049
      %v1100 = vadd.f32 %v922, %v1054
      %v1101 = vadd.f32 %v923, %v1059
      %v1102 = vadd.f32 %v924, %v1064
      %v1103 = vadd.f32 %v925, %v1069
      %v1104 = vadd.f32 %v926, %v1074
      %v1105 = vadd.f32 %v927, %v1079
      %v1106 = vadd.f32 %v928, %v1084
      %v1107 = vadd.f32 %v929, %v1089
      %v1111 = vrot.slane %v285, 1
      %v1112 = vrot.slane %v286, 1
      %v1113 = vsel %vm331, %v1111, %v1112
      %v1114 = vrot.slane %v287, 1
      %v1115 = vsel %vm331, %v1112, %v1114
      %s1118 = scalar_lea.vmem %s1, 512
      %v1119 = vld [vmem:[%s1118] sm:$0xff]
      %v1120 = vld [vmem:[%s1118 + $0x8] sm:$0xff]
      %v1121 = vld [vmem:[%s1118 + $0x10] sm:$0xff]
      %v1122 = vld [vmem:[%s1118 + $0x18] sm:$0xff]
      %v1123 = vld [vmem:[%s1118 + $0x20] sm:$0xff]
      %v1124 = vld [vmem:[%s1118 + $0x28] sm:$0xff]
      %v1125 = vld [vmem:[%s1118 + $0x30] sm:$0xff]
      %v1126 = vld [vmem:[%s1118 + $0x38] sm:$0xff]
      %v1127 = vld [vmem:[%s1118 + $0x40] sm:$0xff]
      %v1128 = vld [vmem:[%s1118 + $0x48] sm:$0xff]
      %v1129 = vld [vmem:[%s1118 + $0x50] sm:$0xff]
      %v1130 = vld [vmem:[%s1118 + $0x58] sm:$0xff]
      %v1131 = vld [vmem:[%s1118 + $0x60] sm:$0xff]
      %v1132 = vld [vmem:[%s1118 + $0x68] sm:$0xff]
      %v1133 = vld [vmem:[%s1118 + $0x70] sm:$0xff]
      %v1134 = vld [vmem:[%s1118 + $0x78] sm:$0xff]
      %1135 = vmatprep.subr.mxu0 0.0
      %1136 = vmatpush1.msra.mxu0 %v1119
      %1137 = vmatprep.subr.mxu0 0.0
      %1138 = vmatpush1.msra.mxu0 %v1120
      %1139 = vmatprep.subr.mxu0 0.0
      %1140 = vmatpush1.msra.mxu0 %v1121
      %1141 = vmatprep.subr.mxu0 0.0
      %1142 = vmatpush1.msra.mxu0 %v1122
      %1143 = vmatprep.subr.mxu0 0.0
      %1144 = vmatpush1.msra.mxu0 %v1123
      %1145 = vmatprep.subr.mxu0 0.0
      %1146 = vmatpush1.msra.mxu0 %v1124
      %1147 = vmatprep.subr.mxu0 0.0
      %1148 = vmatpush1.msra.mxu0 %v1125
      %1149 = vmatprep.subr.mxu0 0.0
      %1150 = vmatpush1.msra.mxu0 %v1126
      %1151 = vmatprep.subr.mxu0 0.0
      %1152 = vmatpush1.msra.mxu0 %v1127
      %1153 = vmatprep.subr.mxu0 0.0
      %1154 = vmatpush1.msra.mxu0 %v1128
      %1155 = vmatprep.subr.mxu0 0.0
      %1156 = vmatpush1.msra.mxu0 %v1129
      %1157 = vmatprep.subr.mxu0 0.0
      %1158 = vmatpush1.msra.mxu0 %v1130
      %1159 = vmatprep.subr.mxu0 0.0
      %1160 = vmatpush1.msra.mxu0 %v1131
      %1161 = vmatprep.subr.mxu0 0.0
      %1162 = vmatpush1.msra.mxu0 %v1132
      %1163 = vmatprep.subr.mxu0 0.0
      %1164 = vmatpush1.msra.mxu0 %v1133
      %1165 = vmatprep.subr.mxu0 0.0
      %1166 = vmatpush1.msra.mxu0 %v1134
      %1167 = vmatprep.subr.mxu0 0.0
      %1168 = vmatpush1.msra.mxu0 0.0
      %1169 = vmatprep.subr.mxu0 0.0
      %1170 = vmatpush1.msra.mxu0 0.0
      %1171 = vmatprep.subr.mxu0 0.0
      %1172 = vmatpush1.msra.mxu0 0.0
      %1173 = vmatprep.subr.mxu0 0.0
      %1174 = vmatpush1.msra.mxu0 0.0
      %1175 = vmatprep.subr.mxu0 0.0
      %1176 = vmatpush1.msra.mxu0 0.0
      %1177 = vmatprep.subr.mxu0 0.0
      %1178 = vmatpush1.msra.mxu0 0.0
      %1179 = vmatprep.subr.mxu0 0.0
      %1180 = vmatpush1.msra.mxu0 0.0
      %1181 = vmatprep.subr.mxu0 0.0
      %1182 = vmatpush1.msra.mxu0 0.0
      %1183 = vmatprep.subr.mxu0 0.0
      %1184 = vmatpush1.msra.mxu0 0.0
      %1185 = vmatprep.subr.mxu0 0.0
      %1186 = vmatpush1.msra.mxu0 0.0
      %1187 = vmatprep.subr.mxu0 0.0
      %1188 = vmatpush1.msra.mxu0 0.0
      %1189 = vmatprep.subr.mxu0 0.0
      %1190 = vmatpush1.msra.mxu0 0.0
      %1191 = vmatprep.subr.mxu0 0.0
      %1192 = vmatpush1.msra.mxu0 0.0
      %1193 = vmatprep.subr.mxu0 0.0
      %1194 = vmatpush1.msra.mxu0 0.0
      %1195 = vmatprep.subr.mxu0 0.0
      %1196 = vmatpush1.msra.mxu0 0.0
      %1197 = vmatprep.subr.mxu0 0.0
      %1198 = vmatpush1.msra.mxu0 0.0
      %1199 = vmatprep.mubr.f32.mxu0 0.0
      %1200 = vmatmul.mubr.f32.gmra.mrb[0].mxu0 %v339
      %v1201 = vpop.f32.mrb[0].mxu0
      %v1202 = vadd.f32 0.0, %v1201
      %v1203 = vpop.f32.mrb[0].mxu0
      %1204 = vmatprep.mubr.f32.mxu0 0.0
      %1205 = vmatmul.mubr.f32.gmra.mrb[0].mxu0 %v341
      %v1206 = vpop.f32.mrb[0].mxu0
      %v1207 = vadd.f32 0.0, %v1206
      %v1208 = vpop.f32.mrb[0].mxu0
      %1209 = vmatprep.mubr.f32.mxu0 0.0
      %1210 = vmatmul.mubr.f32.gmra.mrb[0].mxu0 %v344
      %v1211 = vpop.f32.mrb[0].mxu0
      %v1212 = vadd.f32 0.0, %v1211
      %v1213 = vpop.f32.mrb[0].mxu0
      %1214 = vmatprep.mubr.f32.mxu0 0.0
      %1215 = vmatmul.mubr.f32.gmra.mrb[0].mxu0 %v346
      %v1216 = vpop.f32.mrb[0].mxu0
      %v1217 = vadd.f32 0.0, %v1216
      %v1218 = vpop.f32.mrb[0].mxu0
      %1219 = vmatprep.mubr.f32.mxu0 0.0
      %1220 = vmatmul.mubr.f32.gmra.mrb[0].mxu0 %v349
      %v1221 = vpop.f32.mrb[0].mxu0
      %v1222 = vadd.f32 0.0, %v1221
      %v1223 = vpop.f32.mrb[0].mxu0
      %1224 = vmatprep.mubr.f32.mxu0 0.0
      %1225 = vmatmul.mubr.f32.gmra.mrb[0].mxu0 %v351
      %v1226 = vpop.f32.mrb[0].mxu0
      %v1227 = vadd.f32 0.0, %v1226
      %v1228 = vpop.f32.mrb[0].mxu0
      %1229 = vmatprep.mubr.f32.mxu0 0.0
      %1230 = vmatmul.mubr.f32.gmra.mrb[0].mxu0 %v354
      %v1231 = vpop.f32.mrb[0].mxu0
      %v1232 = vadd.f32 0.0, %v1231
      %v1233 = vpop.f32.mrb[0].mxu0
      %1234 = vmatprep.mubr.f32.mxu0 0.0
      %1235 = vmatmul.mubr.f32.gmra.mrb[0].mxu0 %v356
      %v1236 = vpop.f32.mrb[0].mxu0
      %v1237 = vadd.f32 0.0, %v1236
      %v1238 = vpop.f32.mrb[0].mxu0
      %1239 = vmatprep.mubr.f32.mxu0 0.0
      %1240 = vmatmul.mubr.f32.gmra.mrb[0].mxu0 %v359
      %v1241 = vpop.f32.mrb[0].mxu0
      %v1242 = vadd.f32 0.0, %v1241
      %v1243 = vpop.f32.mrb[0].mxu0
      %1244 = vmatprep.mubr.f32.mxu0 0.0
      %1245 = vmatmul.mubr.f32.gmra.mrb[0].mxu0 %v361
      %v1246 = vpop.f32.mrb[0].mxu0
      %v1247 = vadd.f32 0.0, %v1246
      %v1248 = vpop.f32.mrb[0].mxu0
      %1249 = vmatprep.mubr.f32.mxu0 0.0
      %1250 = vmatmul.mubr.f32.gmra.mrb[0].mxu0 %v364
      %v1251 = vpop.f32.mrb[0].mxu0
      %v1252 = vadd.f32 0.0, %v1251
      %v1253 = vpop.f32.mrb[0].mxu0
      %1254 = vmatprep.mubr.f32.mxu0 0.0
      %1255 = vmatmul.mubr.f32.gmra.mrb[0].mxu0 %v366
      %v1256 = vpop.f32.mrb[0].mxu0
      %v1257 = vadd.f32 0.0, %v1256
      %v1258 = vpop.f32.mrb[0].mxu0
      %1259 = vmatprep.mubr.f32.mxu0 0.0
      %1260 = vmatmul.mubr.f32.gmra.mrb[0].mxu0 %v369
      %v1261 = vpop.f32.mrb[0].mxu0
      %v1262 = vadd.f32 0.0, %v1261
      %v1263 = vpop.f32.mrb[0].mxu0
      %1264 = vmatprep.mubr.f32.mxu0 0.0
      %1265 = vmatmul.mubr.f32.gmra.mrb[0].mxu0 %v371
      %v1266 = vpop.f32.mrb[0].mxu0
      %v1267 = vadd.f32 0.0, %v1266
      %v1268 = vpop.f32.mrb[0].mxu0
      %1269 = vmatprep.mubr.f32.mxu0 0.0
      %1270 = vmatmul.mubr.f32.gmra.mrb[0].mxu0 %v1113
      %v1271 = vpop.f32.mrb[0].mxu0
      %v1272 = vadd.f32 0.0, %v1271
      %v1273 = vpop.f32.mrb[0].mxu0
      %1274 = vmatprep.mubr.f32.mxu0 0.0
      %1275 = vmatmul.mubr.f32.gmra.mrb[0].mxu0 %v1115
      %v1276 = vpop.f32.mrb[0].mxu0
      %v1277 = vadd.f32 0.0, %v1276
      %v1278 = vpop.f32.mrb[0].mxu0
      %1279 = vdwg.mxu0
      %v1280 = vadd.f32 %v1092, %v1202
      %v1281 = vadd.f32 %v1093, %v1207
      %v1282 = vadd.f32 %v1094, %v1212
      %v1283 = vadd.f32 %v1095, %v1217
      %v1284 = vadd.f32 %v1096, %v1222
      %v1285 = vadd.f32 %v1097, %v1227
      %v1286 = vadd.f32 %v1098, %v1232
      %v1287 = vadd.f32 %v1099, %v1237
      %v1288 = vadd.f32 %v1100, %v1242
      %v1289 = vadd.f32 %v1101, %v1247
      %v1290 = vadd.f32 %v1102, %v1252
      %v1291 = vadd.f32 %v1103, %v1257
      %v1292 = vadd.f32 %v1104, %v1262
      %v1293 = vadd.f32 %v1105, %v1267
      %v1294 = vadd.f32 %v1106, %v1272
      %v1295 = vadd.f32 %v1107, %v1277
      %v1296 = vrot.slane %v285, 2
      %v1297 = vrot.slane %v286, 2
      %v1298 = vsel %vm695, %v1296, %v1297
      %v1299 = vrot.slane %v287, 2
      %v1300 = vsel %vm695, %v1297, %v1299
      %s1303 = scalar_lea.vmem %s1, 640
      %v1304 = vld [vmem:[%s1303] sm:$0xff]
      %v1305 = vld [vmem:[%s1303 + $0x8] sm:$0xff]
      %v1306 = vld [vmem:[%s1303 + $0x10] sm:$0xff]
      %v1307 = vld [vmem:[%s1303 + $0x18] sm:$0xff]
      %v1308 = vld [vmem:[%s1303 + $0x20] sm:$0xff]
      %v1309 = vld [vmem:[%s1303 + $0x28] sm:$0xff]
      %v1310 = vld [vmem:[%s1303 + $0x30] sm:$0xff]
      %v1311 = vld [vmem:[%s1303 + $0x38] sm:$0xff]
      %v1312 = vld [vmem:[%s1303 + $0x40] sm:$0xff]
      %v1313 = vld [vmem:[%s1303 + $0x48] sm:$0xff]
      %v1314 = vld [vmem:[%s1303 + $0x50] sm:$0xff]
      %v1315 = vld [vmem:[%s1303 + $0x58] sm:$0xff]
      %v1316 = vld [vmem:[%s1303 + $0x60] sm:$0xff]
      %v1317 = vld [vmem:[%s1303 + $0x68] sm:$0xff]
      %v1318 = vld [vmem:[%s1303 + $0x70] sm:$0xff]
      %v1319 = vld [vmem:[%s1303 + $0x78] sm:$0xff]
      %1320 = vmatprep.subr.mxu0 0.0
      %1321 = vmatpush1.msra.mxu0 %v1304
      %1322 = vmatprep.subr.mxu0 0.0
      %1323 = vmatpush1.msra.mxu0 %v1305
      %1324 = vmatprep.subr.mxu0 0.0
      %1325 = vmatpush1.msra.mxu0 %v1306
      %1326 = vmatprep.subr.mxu0 0.0
      %1327 = vmatpush1.msra.mxu0 %v1307
      %1328 = vmatprep.subr.mxu0 0.0
      %1329 = vmatpush1.msra.mxu0 %v1308
      %1330 = vmatprep.subr.mxu0 0.0
      %1331 = vmatpush1.msra.mxu0 %v1309
      %1332 = vmatprep.subr.mxu0 0.0
      %1333 = vmatpush1.msra.mxu0 %v1310
      %1334 = vmatprep.subr.mxu0 0.0
      %1335 = vmatpush1.msra.mxu0 %v1311
      %1336 = vmatprep.subr.mxu0 0.0
      %1337 = vmatpush1.msra.mxu0 %v1312
      %1338 = vmatprep.subr.mxu0 0.0
      %1339 = vmatpush1.msra.mxu0 %v1313
      %1340 = vmatprep.subr.mxu0 0.0
      %1341 = vmatpush1.msra.mxu0 %v1314
      %1342 = vmatprep.subr.mxu0 0.0
      %1343 = vmatpush1.msra.mxu0 %v1315
      %1344 = vmatprep.subr.mxu0 0.0
      %1345 = vmatpush1.msra.mxu0 %v1316
      %1346 = vmatprep.subr.mxu0 0.0
      %1347 = vmatpush1.msra.mxu0 %v1317
      %1348 = vmatprep.subr.mxu0 0.0
      %1349 = vmatpush1.msra.mxu0 %v1318
      %1350 = vmatprep.subr.mxu0 0.0
      %1351 = vmatpush1.msra.mxu0 %v1319
      %1352 = vmatprep.subr.mxu0 0.0
      %1353 = vmatpush1.msra.mxu0 0.0
      %1354 = vmatprep.subr.mxu0 0.0
      %1355 = vmatpush1.msra.mxu0 0.0
      %1356 = vmatprep.subr.mxu0 0.0
      %1357 = vmatpush1.msra.mxu0 0.0
      %1358 = vmatprep.subr.mxu0 0.0
      %1359 = vmatpush1.msra.mxu0 0.0
      %1360 = vmatprep.subr.mxu0 0.0
      %1361 = vmatpush1.msra.mxu0 0.0
      %1362 = vmatprep.subr.mxu0 0.0
      %1363 = vmatpush1.msra.mxu0 0.0
      %1364 = vmatprep.subr.mxu0 0.0
      %1365 = vmatpush1.msra.mxu0 0.0
      %1366 = vmatprep.subr.mxu0 0.0
      %1367 = vmatpush1.msra.mxu0 0.0
      %1368 = vmatprep.subr.mxu0 0.0
      %1369 = vmatpush1.msra.mxu0 0.0
      %1370 = vmatprep.subr.mxu0 0.0
      %1371 = vmatpush1.msra.mxu0 0.0
      %1372 = vmatprep.subr.mxu0 0.0
      %1373 = vmatpush1.msra.mxu0 0.0
      %1374 = vmatprep.subr.mxu0 0.0
      %1375 = vmatpush1.msra.mxu0 0.0
      %1376 = vmatprep.subr.mxu0 0.0
      %1377 = vmatpush1.msra.mxu0 0.0
      %1378 = vmatprep.subr.mxu0 0.0
      %1379 = vmatpush1.msra.mxu0 0.0
      %1380 = vmatprep.subr.mxu0 0.0
      %1381 = vmatpush1.msra.mxu0 0.0
      %1382 = vmatprep.subr.mxu0 0.0
      %1383 = vmatpush1.msra.mxu0 0.0
      %1384 = vmatprep.mubr.f32.mxu0 0.0
      %1385 = vmatmul.mubr.f32.gmra.mrb[0].mxu0 %v703
      %v1386 = vpop.f32.mrb[0].mxu0
      %v1387 = vadd.f32 0.0, %v1386
      %v1388 = vpop.f32.mrb[0].mxu0
      %1389 = vmatprep.mubr.f32.mxu0 0.0
      %1390 = vmatmul.mubr.f32.gmra.mrb[0].mxu0 %v705
      %v1391 = vpop.f32.mrb[0].mxu0
      %v1392 = vadd.f32 0.0, %v1391
      %v1393 = vpop.f32.mrb[0].mxu0
      %1394 = vmatprep.mubr.f32.mxu0 0.0
      %1395 = vmatmul.mubr.f32.gmra.mrb[0].mxu0 %v708
      %v1396 = vpop.f32.mrb[0].mxu0
      %v1397 = vadd.f32 0.0, %v1396
      %v1398 = vpop.f32.mrb[0].mxu0
      %1399 = vmatprep.mubr.f32.mxu0 0.0
      %1400 = vmatmul.mubr.f32.gmra.mrb[0].mxu0 %v710
      %v1401 = vpop.f32.mrb[0].mxu0
      %v1402 = vadd.f32 0.0, %v1401
      %v1403 = vpop.f32.mrb[0].mxu0
      %1404 = vmatprep.mubr.f32.mxu0 0.0
      %1405 = vmatmul.mubr.f32.gmra.mrb[0].mxu0 %v713
      %v1406 = vpop.f32.mrb[0].mxu0
      %v1407 = vadd.f32 0.0, %v1406
      %v1408 = vpop.f32.mrb[0].mxu0
      %1409 = vmatprep.mubr.f32.mxu0 0.0
      %1410 = vmatmul.mubr.f32.gmra.mrb[0].mxu0 %v715
      %v1411 = vpop.f32.mrb[0].mxu0
      %v1412 = vadd.f32 0.0, %v1411
      %v1413 = vpop.f32.mrb[0].mxu0
      %1414 = vmatprep.mubr.f32.mxu0 0.0
      %1415 = vmatmul.mubr.f32.gmra.mrb[0].mxu0 %v718
      %v1416 = vpop.f32.mrb[0].mxu0
      %v1417 = vadd.f32 0.0, %v1416
      %v1418 = vpop.f32.mrb[0].mxu0
      %1419 = vmatprep.mubr.f32.mxu0 0.0
      %1420 = vmatmul.mubr.f32.gmra.mrb[0].mxu0 %v720
      %v1421 = vpop.f32.mrb[0].mxu0
      %v1422 = vadd.f32 0.0, %v1421
      %v1423 = vpop.f32.mrb[0].mxu0
      %1424 = vmatprep.mubr.f32.mxu0 0.0
      %1425 = vmatmul.mubr.f32.gmra.mrb[0].mxu0 %v723
      %v1426 = vpop.f32.mrb[0].mxu0
      %v1427 = vadd.f32 0.0, %v1426
      %v1428 = vpop.f32.mrb[0].mxu0
      %1429 = vmatprep.mubr.f32.mxu0 0.0
      %1430 = vmatmul.mubr.f32.gmra.mrb[0].mxu0 %v725
      %v1431 = vpop.f32.mrb[0].mxu0
      %v1432 = vadd.f32 0.0, %v1431
      %v1433 = vpop.f32.mrb[0].mxu0
      %1434 = vmatprep.mubr.f32.mxu0 0.0
      %1435 = vmatmul.mubr.f32.gmra.mrb[0].mxu0 %v728
      %v1436 = vpop.f32.mrb[0].mxu0
      %v1437 = vadd.f32 0.0, %v1436
      %v1438 = vpop.f32.mrb[0].mxu0
      %1439 = vmatprep.mubr.f32.mxu0 0.0
      %1440 = vmatmul.mubr.f32.gmra.mrb[0].mxu0 %v730
      %v1441 = vpop.f32.mrb[0].mxu0
      %v1442 = vadd.f32 0.0, %v1441
      %v1443 = vpop.f32.mrb[0].mxu0
      %1444 = vmatprep.mubr.f32.mxu0 0.0
      %1445 = vmatmul.mubr.f32.gmra.mrb[0].mxu0 %v733
      %v1446 = vpop.f32.mrb[0].mxu0
      %v1447 = vadd.f32 0.0, %v1446
      %v1448 = vpop.f32.mrb[0].mxu0
      %1449 = vmatprep.mubr.f32.mxu0 0.0
      %1450 = vmatmul.mubr.f32.gmra.mrb[0].mxu0 %v735
      %v1451 = vpop.f32.mrb[0].mxu0
      %v1452 = vadd.f32 0.0, %v1451
      %v1453 = vpop.f32.mrb[0].mxu0
      %1454 = vmatprep.mubr.f32.mxu0 0.0
      %1455 = vmatmul.mubr.f32.gmra.mrb[0].mxu0 %v1298
      %v1456 = vpop.f32.mrb[0].mxu0
      %v1457 = vadd.f32 0.0, %v1456
      %v1458 = vpop.f32.mrb[0].mxu0
      %1459 = vmatprep.mubr.f32.mxu0 0.0
      %1460 = vmatmul.mubr.f32.gmra.mrb[0].mxu0 %v1300
      %v1461 = vpop.f32.mrb[0].mxu0
      %v1462 = vadd.f32 0.0, %v1461
      %v1463 = vpop.f32.mrb[0].mxu0
      %1464 = vdwg.mxu0
      %v1465 = vadd.f32 %v1280, %v1387
      %v1466 = vadd.f32 %v1281, %v1392
      %v1467 = vadd.f32 %v1282, %v1397
      %v1468 = vadd.f32 %v1283, %v1402
      %v1469 = vadd.f32 %v1284, %v1407
      %v1470 = vadd.f32 %v1285, %v1412
      %v1471 = vadd.f32 %v1286, %v1417
      %v1472 = vadd.f32 %v1287, %v1422
      %v1473 = vadd.f32 %v1288, %v1427
      %v1474 = vadd.f32 %v1289, %v1432
      %v1475 = vadd.f32 %v1290, %v1437
      %v1476 = vadd.f32 %v1291, %v1442
      %v1477 = vadd.f32 %v1292, %v1447
      %v1478 = vadd.f32 %v1293, %v1452
      %v1479 = vadd.f32 %v1294, %v1457
      %v1480 = vadd.f32 %v1295, %v1462
      %s1481 = scalar_lea.vmem %s1, 768
      %v1482 = vld [vmem:[%s1481] sm:$0xff]
      %v1483 = vld [vmem:[%s1481 + $0x8] sm:$0xff]
      %v1484 = vld [vmem:[%s1481 + $0x10] sm:$0xff]
      %v1485 = vld [vmem:[%s1481 + $0x18] sm:$0xff]
      %v1486 = vld [vmem:[%s1481 + $0x20] sm:$0xff]
      %v1487 = vld [vmem:[%s1481 + $0x28] sm:$0xff]
      %v1488 = vld [vmem:[%s1481 + $0x30] sm:$0xff]
      %v1489 = vld [vmem:[%s1481 + $0x38] sm:$0xff]
      %v1490 = vld [vmem:[%s1481 + $0x40] sm:$0xff]
      %v1491 = vld [vmem:[%s1481 + $0x48] sm:$0xff]
      %v1492 = vld [vmem:[%s1481 + $0x50] sm:$0xff]
      %v1493 = vld [vmem:[%s1481 + $0x58] sm:$0xff]
      %v1494 = vld [vmem:[%s1481 + $0x60] sm:$0xff]
      %v1495 = vld [vmem:[%s1481 + $0x68] sm:$0xff]
      %v1496 = vld [vmem:[%s1481 + $0x70] sm:$0xff]
      %v1497 = vld [vmem:[%s1481 + $0x78] sm:$0xff]
      %1498 = vmatprep.subr.mxu0 0.0
      %1499 = vmatpush1.msra.mxu0 %v1482
      %1500 = vmatprep.subr.mxu0 0.0
      %1501 = vmatpush1.msra.mxu0 %v1483
      %1502 = vmatprep.subr.mxu0 0.0
      %1503 = vmatpush1.msra.mxu0 %v1484
      %1504 = vmatprep.subr.mxu0 0.0
      %1505 = vmatpush1.msra.mxu0 %v1485
      %1506 = vmatprep.subr.mxu0 0.0
      %1507 = vmatpush1.msra.mxu0 %v1486
      %1508 = vmatprep.subr.mxu0 0.0
      %1509 = vmatpush1.msra.mxu0 %v1487
      %1510 = vmatprep.subr.mxu0 0.0
      %1511 = vmatpush1.msra.mxu0 %v1488
      %1512 = vmatprep.subr.mxu0 0.0
      %1513 = vmatpush1.msra.mxu0 %v1489
      %1514 = vmatprep.subr.mxu0 0.0
      %1515 = vmatpush1.msra.mxu0 %v1490
      %1516 = vmatprep.subr.mxu0 0.0
      %1517 = vmatpush1.msra.mxu0 %v1491
      %1518 = vmatprep.subr.mxu0 0.0
      %1519 = vmatpush1.msra.mxu0 %v1492
      %1520 = vmatprep.subr.mxu0 0.0
      %1521 = vmatpush1.msra.mxu0 %v1493
      %1522 = vmatprep.subr.mxu0 0.0
      %1523 = vmatpush1.msra.mxu0 %v1494
      %1524 = vmatprep.subr.mxu0 0.0
      %1525 = vmatpush1.msra.mxu0 %v1495
      %1526 = vmatprep.subr.mxu0 0.0
      %1527 = vmatpush1.msra.mxu0 %v1496
      %1528 = vmatprep.subr.mxu0 0.0
      %1529 = vmatpush1.msra.mxu0 %v1497
      %1530 = vmatprep.subr.mxu0 0.0
      %1531 = vmatpush1.msra.mxu0 0.0
      %1532 = vmatprep.subr.mxu0 0.0
      %1533 = vmatpush1.msra.mxu0 0.0
      %1534 = vmatprep.subr.mxu0 0.0
      %1535 = vmatpush1.msra.mxu0 0.0
      %1536 = vmatprep.subr.mxu0 0.0
      %1537 = vmatpush1.msra.mxu0 0.0
      %1538 = vmatprep.subr.mxu0 0.0
      %1539 = vmatpush1.msra.mxu0 0.0
      %1540 = vmatprep.subr.mxu0 0.0
      %1541 = vmatpush1.msra.mxu0 0.0
      %1542 = vmatprep.subr.mxu0 0.0
      %1543 = vmatpush1.msra.mxu0 0.0
      %1544 = vmatprep.subr.mxu0 0.0
      %1545 = vmatpush1.msra.mxu0 0.0
      %1546 = vmatprep.subr.mxu0 0.0
      %1547 = vmatpush1.msra.mxu0 0.0
      %1548 = vmatprep.subr.mxu0 0.0
      %1549 = vmatpush1.msra.mxu0 0.0
      %1550 = vmatprep.subr.mxu0 0.0
      %1551 = vmatpush1.msra.mxu0 0.0
      %1552 = vmatprep.subr.mxu0 0.0
      %1553 = vmatpush1.msra.mxu0 0.0
      %1554 = vmatprep.subr.mxu0 0.0
      %1555 = vmatpush1.msra.mxu0 0.0
      %1556 = vmatprep.subr.mxu0 0.0
      %1557 = vmatpush1.msra.mxu0 0.0
      %1558 = vmatprep.subr.mxu0 0.0
      %1559 = vmatpush1.msra.mxu0 0.0
      %1560 = vmatprep.subr.mxu0 0.0
      %1561 = vmatpush1.msra.mxu0 0.0
      %1562 = vmatprep.mubr.f32.mxu0 0.0
      %1563 = vmatmul.mubr.f32.gmra.mrb[0].mxu0 %v267
      %v1564 = vpop.f32.mrb[0].mxu0
      %v1565 = vadd.f32 0.0, %v1564
      %v1566 = vpop.f32.mrb[0].mxu0
      %1567 = vmatprep.mubr.f32.mxu0 0.0
      %1568 = vmatmul.mubr.f32.gmra.mrb[0].mxu0 %v268
      %v1569 = vpop.f32.mrb[0].mxu0
      %v1570 = vadd.f32 0.0, %v1569
      %v1571 = vpop.f32.mrb[0].mxu0
      %1572 = vmatprep.mubr.f32.mxu0 0.0
      %1573 = vmatmul.mubr.f32.gmra.mrb[0].mxu0 %v270
      %v1574 = vpop.f32.mrb[0].mxu0
      %v1575 = vadd.f32 0.0, %v1574
      %v1576 = vpop.f32.mrb[0].mxu0
      %1577 = vmatprep.mubr.f32.mxu0 0.0
      %1578 = vmatmul.mubr.f32.gmra.mrb[0].mxu0 %v271
      %v1579 = vpop.f32.mrb[0].mxu0
      %v1580 = vadd.f32 0.0, %v1579
      %v1581 = vpop.f32.mrb[0].mxu0
      %1582 = vmatprep.mubr.f32.mxu0 0.0
      %1583 = vmatmul.mubr.f32.gmra.mrb[0].mxu0 %v273
      %v1584 = vpop.f32.mrb[0].mxu0
      %v1585 = vadd.f32 0.0, %v1584
      %v1586 = vpop.f32.mrb[0].mxu0
      %1587 = vmatprep.mubr.f32.mxu0 0.0
      %1588 = vmatmul.mubr.f32.gmra.mrb[0].mxu0 %v274
      %v1589 = vpop.f32.mrb[0].mxu0
      %v1590 = vadd.f32 0.0, %v1589
      %v1591 = vpop.f32.mrb[0].mxu0
      %1592 = vmatprep.mubr.f32.mxu0 0.0
      %1593 = vmatmul.mubr.f32.gmra.mrb[0].mxu0 %v276
      %v1594 = vpop.f32.mrb[0].mxu0
      %v1595 = vadd.f32 0.0, %v1594
      %v1596 = vpop.f32.mrb[0].mxu0
      %1597 = vmatprep.mubr.f32.mxu0 0.0
      %1598 = vmatmul.mubr.f32.gmra.mrb[0].mxu0 %v277
      %v1599 = vpop.f32.mrb[0].mxu0
      %v1600 = vadd.f32 0.0, %v1599
      %v1601 = vpop.f32.mrb[0].mxu0
      %1602 = vmatprep.mubr.f32.mxu0 0.0
      %1603 = vmatmul.mubr.f32.gmra.mrb[0].mxu0 %v279
      %v1604 = vpop.f32.mrb[0].mxu0
      %v1605 = vadd.f32 0.0, %v1604
      %v1606 = vpop.f32.mrb[0].mxu0
      %1607 = vmatprep.mubr.f32.mxu0 0.0
      %1608 = vmatmul.mubr.f32.gmra.mrb[0].mxu0 %v280
      %v1609 = vpop.f32.mrb[0].mxu0
      %v1610 = vadd.f32 0.0, %v1609
      %v1611 = vpop.f32.mrb[0].mxu0
      %1612 = vmatprep.mubr.f32.mxu0 0.0
      %1613 = vmatmul.mubr.f32.gmra.mrb[0].mxu0 %v282
      %v1614 = vpop.f32.mrb[0].mxu0
      %v1615 = vadd.f32 0.0, %v1614
      %v1616 = vpop.f32.mrb[0].mxu0
      %1617 = vmatprep.mubr.f32.mxu0 0.0
      %1618 = vmatmul.mubr.f32.gmra.mrb[0].mxu0 %v283
      %v1619 = vpop.f32.mrb[0].mxu0
      %v1620 = vadd.f32 0.0, %v1619
      %v1621 = vpop.f32.mrb[0].mxu0
      %1622 = vmatprep.mubr.f32.mxu0 0.0
      %1623 = vmatmul.mubr.f32.gmra.mrb[0].mxu0 %v285
      %v1624 = vpop.f32.mrb[0].mxu0
      %v1625 = vadd.f32 0.0, %v1624
      %v1626 = vpop.f32.mrb[0].mxu0
      %1627 = vmatprep.mubr.f32.mxu0 0.0
      %1628 = vmatmul.mubr.f32.gmra.mrb[0].mxu0 %v286
      %v1629 = vpop.f32.mrb[0].mxu0
      %v1630 = vadd.f32 0.0, %v1629
      %v1631 = vpop.f32.mrb[0].mxu0
      %1632 = vmatprep.mubr.f32.mxu0 0.0
      %1633 = vmatmul.mubr.f32.gmra.mrb[0].mxu0 %v288
      %v1634 = vpop.f32.mrb[0].mxu0
      %v1635 = vadd.f32 0.0, %v1634
      %v1636 = vpop.f32.mrb[0].mxu0
      %1637 = vmatprep.mubr.f32.mxu0 0.0
      %1638 = vmatmul.mubr.f32.gmra.mrb[0].mxu0 %v289
      %v1639 = vpop.f32.mrb[0].mxu0
      %v1640 = vadd.f32 0.0, %v1639
      %v1641 = vpop.f32.mrb[0].mxu0
      %1642 = vdwg.mxu0
      %v1643 = vadd.f32 %v1465, %v1565
      %v1644 = vadd.f32 %v1466, %v1570
      %v1645 = vadd.f32 %v1467, %v1575
      %v1646 = vadd.f32 %v1468, %v1580
      %v1647 = vadd.f32 %v1469, %v1585
      %v1648 = vadd.f32 %v1470, %v1590
      %v1649 = vadd.f32 %v1471, %v1595
      %v1650 = vadd.f32 %v1472, %v1600
      %v1651 = vadd.f32 %v1473, %v1605
      %v1652 = vadd.f32 %v1474, %v1610
      %v1653 = vadd.f32 %v1475, %v1615
      %v1654 = vadd.f32 %v1476, %v1620
      %v1655 = vadd.f32 %v1477, %v1625
      %v1656 = vadd.f32 %v1478, %v1630
      %v1657 = vadd.f32 %v1479, %v1635
      %v1658 = vadd.f32 %v1480, %v1640
      %v1662 = vrot.slane %v288, 1
      %v1663 = vrot.slane %v289, 1
      %v1664 = vsel %vm331, %v1662, %v1663
      %v1665 = vrot.slane %v290, 1
      %v1666 = vsel %vm331, %v1663, %v1665
      %s1669 = scalar_lea.vmem %s1, 896
      %v1670 = vld [vmem:[%s1669] sm:$0xff]
      %v1671 = vld [vmem:[%s1669 + $0x8] sm:$0xff]
      %v1672 = vld [vmem:[%s1669 + $0x10] sm:$0xff]
      %v1673 = vld [vmem:[%s1669 + $0x18] sm:$0xff]
      %v1674 = vld [vmem:[%s1669 + $0x20] sm:$0xff]
      %v1675 = vld [vmem:[%s1669 + $0x28] sm:$0xff]
      %v1676 = vld [vmem:[%s1669 + $0x30] sm:$0xff]
      %v1677 = vld [vmem:[%s1669 + $0x38] sm:$0xff]
      %v1678 = vld [vmem:[%s1669 + $0x40] sm:$0xff]
      %v1679 = vld [vmem:[%s1669 + $0x48] sm:$0xff]
      %v1680 = vld [vmem:[%s1669 + $0x50] sm:$0xff]
      %v1681 = vld [vmem:[%s1669 + $0x58] sm:$0xff]
      %v1682 = vld [vmem:[%s1669 + $0x60] sm:$0xff]
      %v1683 = vld [vmem:[%s1669 + $0x68] sm:$0xff]
      %v1684 = vld [vmem:[%s1669 + $0x70] sm:$0xff]
      %v1685 = vld [vmem:[%s1669 + $0x78] sm:$0xff]
      %1686 = vmatprep.subr.mxu0 0.0
      %1687 = vmatpush1.msra.mxu0 %v1670
      %1688 = vmatprep.subr.mxu0 0.0
      %1689 = vmatpush1.msra.mxu0 %v1671
      %1690 = vmatprep.subr.mxu0 0.0
      %1691 = vmatpush1.msra.mxu0 %v1672
      %1692 = vmatprep.subr.mxu0 0.0
      %1693 = vmatpush1.msra.mxu0 %v1673
      %1694 = vmatprep.subr.mxu0 0.0
      %1695 = vmatpush1.msra.mxu0 %v1674
      %1696 = vmatprep.subr.mxu0 0.0
      %1697 = vmatpush1.msra.mxu0 %v1675
      %1698 = vmatprep.subr.mxu0 0.0
      %1699 = vmatpush1.msra.mxu0 %v1676
      %1700 = vmatprep.subr.mxu0 0.0
      %1701 = vmatpush1.msra.mxu0 %v1677
      %1702 = vmatprep.subr.mxu0 0.0
      %1703 = vmatpush1.msra.mxu0 %v1678
      %1704 = vmatprep.subr.mxu0 0.0
      %1705 = vmatpush1.msra.mxu0 %v1679
      %1706 = vmatprep.subr.mxu0 0.0
      %1707 = vmatpush1.msra.mxu0 %v1680
      %1708 = vmatprep.subr.mxu0 0.0
      %1709 = vmatpush1.msra.mxu0 %v1681
      %1710 = vmatprep.subr.mxu0 0.0
      %1711 = vmatpush1.msra.mxu0 %v1682
      %1712 = vmatprep.subr.mxu0 0.0
      %1713 = vmatpush1.msra.mxu0 %v1683
      %1714 = vmatprep.subr.mxu0 0.0
      %1715 = vmatpush1.msra.mxu0 %v1684
      %1716 = vmatprep.subr.mxu0 0.0
      %1717 = vmatpush1.msra.mxu0 %v1685
      %1718 = vmatprep.subr.mxu0 0.0
      %1719 = vmatpush1.msra.mxu0 0.0
      %1720 = vmatprep.subr.mxu0 0.0
      %1721 = vmatpush1.msra.mxu0 0.0
      %1722 = vmatprep.subr.mxu0 0.0
      %1723 = vmatpush1.msra.mxu0 0.0
      %1724 = vmatprep.subr.mxu0 0.0
      %1725 = vmatpush1.msra.mxu0 0.0
      %1726 = vmatprep.subr.mxu0 0.0
      %1727 = vmatpush1.msra.mxu0 0.0
      %1728 = vmatprep.subr.mxu0 0.0
      %1729 = vmatpush1.msra.mxu0 0.0
      %1730 = vmatprep.subr.mxu0 0.0
      %1731 = vmatpush1.msra.mxu0 0.0
      %1732 = vmatprep.subr.mxu0 0.0
      %1733 = vmatpush1.msra.mxu0 0.0
      %1734 = vmatprep.subr.mxu0 0.0
      %1735 = vmatpush1.msra.mxu0 0.0
      %1736 = vmatprep.subr.mxu0 0.0
      %1737 = vmatpush1.msra.mxu0 0.0
      %1738 = vmatprep.subr.mxu0 0.0
      %1739 = vmatpush1.msra.mxu0 0.0
      %1740 = vmatprep.subr.mxu0 0.0
      %1741 = vmatpush1.msra.mxu0 0.0
      %1742 = vmatprep.subr.mxu0 0.0
      %1743 = vmatpush1.msra.mxu0 0.0
      %1744 = vmatprep.subr.mxu0 0.0
      %1745 = vmatpush1.msra.mxu0 0.0
      %1746 = vmatprep.subr.mxu0 0.0
      %1747 = vmatpush1.msra.mxu0 0.0
      %1748 = vmatprep.subr.mxu0 0.0
      %1749 = vmatpush1.msra.mxu0 0.0
      %1750 = vmatprep.mubr.f32.mxu0 0.0
      %1751 = vmatmul.mubr.f32.gmra.mrb[0].mxu0 %v344
      %v1752 = vpop.f32.mrb[0].mxu0
      %v1753 = vadd.f32 0.0, %v1752
      %v1754 = vpop.f32.mrb[0].mxu0
      %1755 = vmatprep.mubr.f32.mxu0 0.0
      %1756 = vmatmul.mubr.f32.gmra.mrb[0].mxu0 %v346
      %v1757 = vpop.f32.mrb[0].mxu0
      %v1758 = vadd.f32 0.0, %v1757
      %v1759 = vpop.f32.mrb[0].mxu0
      %1760 = vmatprep.mubr.f32.mxu0 0.0
      %1761 = vmatmul.mubr.f32.gmra.mrb[0].mxu0 %v349
      %v1762 = vpop.f32.mrb[0].mxu0
      %v1763 = vadd.f32 0.0, %v1762
      %v1764 = vpop.f32.mrb[0].mxu0
      %1765 = vmatprep.mubr.f32.mxu0 0.0
      %1766 = vmatmul.mubr.f32.gmra.mrb[0].mxu0 %v351
      %v1767 = vpop.f32.mrb[0].mxu0
      %v1768 = vadd.f32 0.0, %v1767
      %v1769 = vpop.f32.mrb[0].mxu0
      %1770 = vmatprep.mubr.f32.mxu0 0.0
      %1771 = vmatmul.mubr.f32.gmra.mrb[0].mxu0 %v354
      %v1772 = vpop.f32.mrb[0].mxu0
      %v1773 = vadd.f32 0.0, %v1772
      %v1774 = vpop.f32.mrb[0].mxu0
      %1775 = vmatprep.mubr.f32.mxu0 0.0
      %1776 = vmatmul.mubr.f32.gmra.mrb[0].mxu0 %v356
      %v1777 = vpop.f32.mrb[0].mxu0
      %v1778 = vadd.f32 0.0, %v1777
      %v1779 = vpop.f32.mrb[0].mxu0
      %1780 = vmatprep.mubr.f32.mxu0 0.0
      %1781 = vmatmul.mubr.f32.gmra.mrb[0].mxu0 %v359
      %v1782 = vpop.f32.mrb[0].mxu0
      %v1783 = vadd.f32 0.0, %v1782
      %v1784 = vpop.f32.mrb[0].mxu0
      %1785 = vmatprep.mubr.f32.mxu0 0.0
      %1786 = vmatmul.mubr.f32.gmra.mrb[0].mxu0 %v361
      %v1787 = vpop.f32.mrb[0].mxu0
      %v1788 = vadd.f32 0.0, %v1787
      %v1789 = vpop.f32.mrb[0].mxu0
      %1790 = vmatprep.mubr.f32.mxu0 0.0
      %1791 = vmatmul.mubr.f32.gmra.mrb[0].mxu0 %v364
      %v1792 = vpop.f32.mrb[0].mxu0
      %v1793 = vadd.f32 0.0, %v1792
      %v1794 = vpop.f32.mrb[0].mxu0
      %1795 = vmatprep.mubr.f32.mxu0 0.0
      %1796 = vmatmul.mubr.f32.gmra.mrb[0].mxu0 %v366
      %v1797 = vpop.f32.mrb[0].mxu0
      %v1798 = vadd.f32 0.0, %v1797
      %v1799 = vpop.f32.mrb[0].mxu0
      %1800 = vmatprep.mubr.f32.mxu0 0.0
      %1801 = vmatmul.mubr.f32.gmra.mrb[0].mxu0 %v369
      %v1802 = vpop.f32.mrb[0].mxu0
      %v1803 = vadd.f32 0.0, %v1802
      %v1804 = vpop.f32.mrb[0].mxu0
      %1805 = vmatprep.mubr.f32.mxu0 0.0
      %1806 = vmatmul.mubr.f32.gmra.mrb[0].mxu0 %v371
      %v1807 = vpop.f32.mrb[0].mxu0
      %v1808 = vadd.f32 0.0, %v1807
      %v1809 = vpop.f32.mrb[0].mxu0
      %1810 = vmatprep.mubr.f32.mxu0 0.0
      %1811 = vmatmul.mubr.f32.gmra.mrb[0].mxu0 %v1113
      %v1812 = vpop.f32.mrb[0].mxu0
      %v1813 = vadd.f32 0.0, %v1812
      %v1814 = vpop.f32.mrb[0].mxu0
      %1815 = vmatprep.mubr.f32.mxu0 0.0
      %1816 = vmatmul.mubr.f32.gmra.mrb[0].mxu0 %v1115
      %v1817 = vpop.f32.mrb[0].mxu0
      %v1818 = vadd.f32 0.0, %v1817
      %v1819 = vpop.f32.mrb[0].mxu0
      %1820 = vmatprep.mubr.f32.mxu0 0.0
      %1821 = vmatmul.mubr.f32.gmra.mrb[0].mxu0 %v1664
      %v1822 = vpop.f32.mrb[0].mxu0
      %v1823 = vadd.f32 0.0, %v1822
      %v1824 = vpop.f32.mrb[0].mxu0
      %1825 = vmatprep.mubr.f32.mxu0 0.0
      %1826 = vmatmul.mubr.f32.gmra.mrb[0].mxu0 %v1666
      %v1827 = vpop.f32.mrb[0].mxu0
      %v1828 = vadd.f32 0.0, %v1827
      %v1829 = vpop.f32.mrb[0].mxu0
      %1830 = vdwg.mxu0
      %v1831 = vadd.f32 %v1643, %v1753
      %v1832 = vadd.f32 %v1644, %v1758
      %v1833 = vadd.f32 %v1645, %v1763
      %v1834 = vadd.f32 %v1646, %v1768
      %v1835 = vadd.f32 %v1647, %v1773
      %v1836 = vadd.f32 %v1648, %v1778
      %v1837 = vadd.f32 %v1649, %v1783
      %v1838 = vadd.f32 %v1650, %v1788
      %v1839 = vadd.f32 %v1651, %v1793
      %v1840 = vadd.f32 %v1652, %v1798
      %v1841 = vadd.f32 %v1653, %v1803
      %v1842 = vadd.f32 %v1654, %v1808
      %v1843 = vadd.f32 %v1655, %v1813
      %v1844 = vadd.f32 %v1656, %v1818
      %v1845 = vadd.f32 %v1657, %v1823
      %v1846 = vadd.f32 %v1658, %v1828
      %v1847 = vrot.slane %v288, 2
      %v1848 = vrot.slane %v289, 2
      %v1849 = vsel %vm695, %v1847, %v1848
      %v1850 = vrot.slane %v290, 2
      %v1851 = vsel %vm695, %v1848, %v1850
      %s1854 = scalar_lea.vmem %s1, 1024
      %v1855 = vld [vmem:[%s1854] sm:$0xff]
      %v1856 = vld [vmem:[%s1854 + $0x8] sm:$0xff]
      %v1857 = vld [vmem:[%s1854 + $0x10] sm:$0xff]
      %v1858 = vld [vmem:[%s1854 + $0x18] sm:$0xff]
      %v1859 = vld [vmem:[%s1854 + $0x20] sm:$0xff]
      %v1860 = vld [vmem:[%s1854 + $0x28] sm:$0xff]
      %v1861 = vld [vmem:[%s1854 + $0x30] sm:$0xff]
      %v1862 = vld [vmem:[%s1854 + $0x38] sm:$0xff]
      %v1863 = vld [vmem:[%s1854 + $0x40] sm:$0xff]
      %v1864 = vld [vmem:[%s1854 + $0x48] sm:$0xff]
      %v1865 = vld [vmem:[%s1854 + $0x50] sm:$0xff]
      %v1866 = vld [vmem:[%s1854 + $0x58] sm:$0xff]
      %v1867 = vld [vmem:[%s1854 + $0x60] sm:$0xff]
      %v1868 = vld [vmem:[%s1854 + $0x68] sm:$0xff]
      %v1869 = vld [vmem:[%s1854 + $0x70] sm:$0xff]
      %v1870 = vld [vmem:[%s1854 + $0x78] sm:$0xff]
      %1871 = vmatprep.subr.mxu0 0.0
      %1872 = vmatpush1.msra.mxu0 %v1855
      %1873 = vmatprep.subr.mxu0 0.0
      %1874 = vmatpush1.msra.mxu0 %v1856
      %1875 = vmatprep.subr.mxu0 0.0
      %1876 = vmatpush1.msra.mxu0 %v1857
      %1877 = vmatprep.subr.mxu0 0.0
      %1878 = vmatpush1.msra.mxu0 %v1858
      %1879 = vmatprep.subr.mxu0 0.0
      %1880 = vmatpush1.msra.mxu0 %v1859
      %1881 = vmatprep.subr.mxu0 0.0
      %1882 = vmatpush1.msra.mxu0 %v1860
      %1883 = vmatprep.subr.mxu0 0.0
      %1884 = vmatpush1.msra.mxu0 %v1861
      %1885 = vmatprep.subr.mxu0 0.0
      %1886 = vmatpush1.msra.mxu0 %v1862
      %1887 = vmatprep.subr.mxu0 0.0
      %1888 = vmatpush1.msra.mxu0 %v1863
      %1889 = vmatprep.subr.mxu0 0.0
      %1890 = vmatpush1.msra.mxu0 %v1864
      %1891 = vmatprep.subr.mxu0 0.0
      %1892 = vmatpush1.msra.mxu0 %v1865
      %1893 = vmatprep.subr.mxu0 0.0
      %1894 = vmatpush1.msra.mxu0 %v1866
      %1895 = vmatprep.subr.mxu0 0.0
      %1896 = vmatpush1.msra.mxu0 %v1867
      %1897 = vmatprep.subr.mxu0 0.0
      %1898 = vmatpush1.msra.mxu0 %v1868
      %1899 = vmatprep.subr.mxu0 0.0
      %1900 = vmatpush1.msra.mxu0 %v1869
      %1901 = vmatprep.subr.mxu0 0.0
      %1902 = vmatpush1.msra.mxu0 %v1870
      %1903 = vmatprep.subr.mxu0 0.0
      %1904 = vmatpush1.msra.mxu0 0.0
      %1905 = vmatprep.subr.mxu0 0.0
      %1906 = vmatpush1.msra.mxu0 0.0
      %1907 = vmatprep.subr.mxu0 0.0
      %1908 = vmatpush1.msra.mxu0 0.0
      %1909 = vmatprep.subr.mxu0 0.0
      %1910 = vmatpush1.msra.mxu0 0.0
      %1911 = vmatprep.subr.mxu0 0.0
      %1912 = vmatpush1.msra.mxu0 0.0
      %1913 = vmatprep.subr.mxu0 0.0
      %1914 = vmatpush1.msra.mxu0 0.0
      %1915 = vmatprep.subr.mxu0 0.0
      %1916 = vmatpush1.msra.mxu0 0.0
      %1917 = vmatprep.subr.mxu0 0.0
      %1918 = vmatpush1.msra.mxu0 0.0
      %1919 = vmatprep.subr.mxu0 0.0
      %1920 = vmatpush1.msra.mxu0 0.0
      %1921 = vmatprep.subr.mxu0 0.0
      %1922 = vmatpush1.msra.mxu0 0.0
      %1923 = vmatprep.subr.mxu0 0.0
      %1924 = vmatpush1.msra.mxu0 0.0
      %1925 = vmatprep.subr.mxu0 0.0
      %1926 = vmatpush1.msra.mxu0 0.0
      %1927 = vmatprep.subr.mxu0 0.0
      %1928 = vmatpush1.msra.mxu0 0.0
      %1929 = vmatprep.subr.mxu0 0.0
      %1930 = vmatpush1.msra.mxu0 0.0
      %1931 = vmatprep.subr.mxu0 0.0
      %1932 = vmatpush1.msra.mxu0 0.0
      %1933 = vmatprep.subr.mxu0 0.0
      %1934 = vmatpush1.msra.mxu0 0.0
      %1935 = vmatprep.mubr.f32.mxu0 0.0
      %1936 = vmatmul.mubr.f32.gmra.mrb[0].mxu0 %v708
      %v1937 = vpop.f32.mrb[0].mxu0
      %v1938 = vadd.f32 0.0, %v1937
      %v1939 = vpop.f32.mrb[0].mxu0
      %1940 = vmatprep.mubr.f32.mxu0 0.0
      %1941 = vmatmul.mubr.f32.gmra.mrb[0].mxu0 %v710
      %v1942 = vpop.f32.mrb[0].mxu0
      %v1943 = vadd.f32 0.0, %v1942
      %v1944 = vpop.f32.mrb[0].mxu0
      %1945 = vmatprep.mubr.f32.mxu0 0.0
      %1946 = vmatmul.mubr.f32.gmra.mrb[0].mxu0 %v713
      %v1947 = vpop.f32.mrb[0].mxu0
      %v1948 = vadd.f32 0.0, %v1947
      %v1949 = vpop.f32.mrb[0].mxu0
      %1950 = vmatprep.mubr.f32.mxu0 0.0
      %1951 = vmatmul.mubr.f32.gmra.mrb[0].mxu0 %v715
      %v1952 = vpop.f32.mrb[0].mxu0
      %v1953 = vadd.f32 0.0, %v1952
      %v1954 = vpop.f32.mrb[0].mxu0
      %1955 = vmatprep.mubr.f32.mxu0 0.0
      %1956 = vmatmul.mubr.f32.gmra.mrb[0].mxu0 %v718
      %v1957 = vpop.f32.mrb[0].mxu0
      %v1958 = vadd.f32 0.0, %v1957
      %v1959 = vpop.f32.mrb[0].mxu0
      %1960 = vmatprep.mubr.f32.mxu0 0.0
      %1961 = vmatmul.mubr.f32.gmra.mrb[0].mxu0 %v720
      %v1962 = vpop.f32.mrb[0].mxu0
      %v1963 = vadd.f32 0.0, %v1962
      %v1964 = vpop.f32.mrb[0].mxu0
      %1965 = vmatprep.mubr.f32.mxu0 0.0
      %1966 = vmatmul.mubr.f32.gmra.mrb[0].mxu0 %v723
      %v1967 = vpop.f32.mrb[0].mxu0
      %v1968 = vadd.f32 0.0, %v1967
      %v1969 = vpop.f32.mrb[0].mxu0
      %1970 = vmatprep.mubr.f32.mxu0 0.0
      %1971 = vmatmul.mubr.f32.gmra.mrb[0].mxu0 %v725
      %v1972 = vpop.f32.mrb[0].mxu0
      %v1973 = vadd.f32 0.0, %v1972
      %v1974 = vpop.f32.mrb[0].mxu0
      %1975 = vmatprep.mubr.f32.mxu0 0.0
      %1976 = vmatmul.mubr.f32.gmra.mrb[0].mxu0 %v728
      %v1977 = vpop.f32.mrb[0].mxu0
      %v1978 = vadd.f32 0.0, %v1977
      %v1979 = vpop.f32.mrb[0].mxu0
      %1980 = vmatprep.mubr.f32.mxu0 0.0
      %1981 = vmatmul.mubr.f32.gmra.mrb[0].mxu0 %v730
      %v1982 = vpop.f32.mrb[0].mxu0
      %v1983 = vadd.f32 0.0, %v1982
      %v1984 = vpop.f32.mrb[0].mxu0
      %1985 = vmatprep.mubr.f32.mxu0 0.0
      %1986 = vmatmul.mubr.f32.gmra.mrb[0].mxu0 %v733
      %v1987 = vpop.f32.mrb[0].mxu0
      %v1988 = vadd.f32 0.0, %v1987
      %v1989 = vpop.f32.mrb[0].mxu0
      %1990 = vmatprep.mubr.f32.mxu0 0.0
      %1991 = vmatmul.mubr.f32.gmra.mrb[0].mxu0 %v735
      %v1992 = vpop.f32.mrb[0].mxu0
      %v1993 = vadd.f32 0.0, %v1992
      %v1994 = vpop.f32.mrb[0].mxu0
      %1995 = vmatprep.mubr.f32.mxu0 0.0
      %1996 = vmatmul.mubr.f32.gmra.mrb[0].mxu0 %v1298
      %v1997 = vpop.f32.mrb[0].mxu0
      %v1998 = vadd.f32 0.0, %v1997
      %v1999 = vpop.f32.mrb[0].mxu0
      %2000 = vmatprep.mubr.f32.mxu0 0.0
      %2001 = vmatmul.mubr.f32.gmra.mrb[0].mxu0 %v1300
      %v2002 = vpop.f32.mrb[0].mxu0
      %v2003 = vadd.f32 0.0, %v2002
      %v2004 = vpop.f32.mrb[0].mxu0
      %2005 = vmatprep.mubr.f32.mxu0 0.0
      %2006 = vmatmul.mubr.f32.gmra.mrb[0].mxu0 %v1849
      %v2007 = vpop.f32.mrb[0].mxu0
      %v2008 = vadd.f32 0.0, %v2007
      %v2009 = vpop.f32.mrb[0].mxu0
      %2010 = vmatprep.mubr.f32.mxu0 0.0
      %2011 = vmatmul.mubr.f32.gmra.mrb[0].mxu0 %v1851
      %v2012 = vpop.f32.mrb[0].mxu0
      %v2013 = vadd.f32 0.0, %v2012
      %v2014 = vpop.f32.mrb[0].mxu0
      %2015 = vdwg.mxu0
      %v2016 = vadd.f32 %v1831, %v1938
      %v2017 = vadd.f32 %v1832, %v1943
      %v2018 = vadd.f32 %v1833, %v1948
      %v2019 = vadd.f32 %v1834, %v1953
      %v2020 = vadd.f32 %v1835, %v1958
      %v2021 = vadd.f32 %v1836, %v1963
      %v2022 = vadd.f32 %v1837, %v1968
      %v2023 = vadd.f32 %v1838, %v1973
      %v2024 = vadd.f32 %v1839, %v1978
      %v2025 = vadd.f32 %v1840, %v1983
      %v2026 = vadd.f32 %v1841, %v1988
      %v2027 = vadd.f32 %v1842, %v1993
      %v2028 = vadd.f32 %v1843, %v1998
      %v2029 = vadd.f32 %v1844, %v2003
      %v2030 = vadd.f32 %v1845, %v2008
      %v2031 = vadd.f32 %v1846, %v2013
      %2032 = vst [vmem:[%s221] sm:$0xff] %v2016
      %2033 = vst [vmem:[%s221 + $0x8] sm:$0xff] %v2017
      %2034 = vst [vmem:[%s221 + $0x10] sm:$0xff] %v2018
      %2035 = vst [vmem:[%s221 + $0x18] sm:$0xff] %v2019
      %2036 = vst [vmem:[%s221 + $0x20] sm:$0xff] %v2020
      %2037 = vst [vmem:[%s221 + $0x28] sm:$0xff] %v2021
      %2038 = vst [vmem:[%s221 + $0x30] sm:$0xff] %v2022
      %2039 = vst [vmem:[%s221 + $0x38] sm:$0xff] %v2023
      %2040 = vst [vmem:[%s221 + $0x40] sm:$0xff] %v2024
      %2041 = vst [vmem:[%s221 + $0x48] sm:$0xff] %v2025
      %2042 = vst [vmem:[%s221 + $0x50] sm:$0xff] %v2026
      %2043 = vst [vmem:[%s221 + $0x58] sm:$0xff] %v2027
      %2044 = vst [vmem:[%s221 + $0x60] sm:$0xff] %v2028
      %2045 = vst [vmem:[%s221 + $0x68] sm:$0xff] %v2029
      %2046 = vst [vmem:[%s221 + $0x70] sm:$0xff] %v2030
      %2047 = vst [vmem:[%s221 + $0x78] sm:$0xff] %v2031
      %v2048 = vadd.f32 %v2016, %v2017
      %v2049 = vadd.f32 %v2048, %v2018
      %v2050 = vadd.f32 %v2049, %v2019
      %v2051 = vadd.f32 %v2050, %v2020
      %v2052 = vadd.f32 %v2051, %v2021
      %v2053 = vadd.f32 %v2052, %v2022
      %v2054 = vadd.f32 %v2053, %v2023
      %v2055 = vadd.f32 %v2054, %v2024
      %v2056 = vadd.f32 %v2055, %v2025
      %v2057 = vadd.f32 %v2056, %v2026
      %v2058 = vadd.f32 %v2057, %v2027
      %v2059 = vadd.f32 %v2058, %v2028
      %v2060 = vadd.f32 %v2059, %v2029
      %v2061 = vadd.f32 %v2060, %v2030
      %v2062 = vadd.f32 %v2061, %v2031
      %v2063 = vrot.slane %v2062, 4
      %v2064 = vadd.f32 %v2062, %v2063
      %v2065 = vrot.slane %v2064, 2
      %v2066 = vadd.f32 %v2064, %v2065
      %v2067 = vrot.slane %v2066, 1
      %v2068 = vadd.f32 %v2066, %v2067
      %v2069 = vmul.f32 %v2016, %v2016
      %v2070 = vmul.f32 %v2017, %v2017
      %v2071 = vmul.f32 %v2018, %v2018
      %v2072 = vmul.f32 %v2019, %v2019
      %v2073 = vmul.f32 %v2020, %v2020
      %v2074 = vmul.f32 %v2021, %v2021
      %v2075 = vmul.f32 %v2022, %v2022
      %v2076 = vmul.f32 %v2023, %v2023
      %v2077 = vmul.f32 %v2024, %v2024
      %v2078 = vmul.f32 %v2025, %v2025
      %v2079 = vmul.f32 %v2026, %v2026
      %v2080 = vmul.f32 %v2027, %v2027
      %v2081 = vmul.f32 %v2028, %v2028
      %v2082 = vmul.f32 %v2029, %v2029
      %v2083 = vmul.f32 %v2030, %v2030
      %v2084 = vmul.f32 %v2031, %v2031
      %v2085 = vadd.f32 %v2069, %v2070
      %v2086 = vadd.f32 %v2085, %v2071
      %v2087 = vadd.f32 %v2086, %v2072
      %v2088 = vadd.f32 %v2087, %v2073
      %v2089 = vadd.f32 %v2088, %v2074
      %v2090 = vadd.f32 %v2089, %v2075
      %v2091 = vadd.f32 %v2090, %v2076
      %v2092 = vadd.f32 %v2091, %v2077
      %v2093 = vadd.f32 %v2092, %v2078
      %v2094 = vadd.f32 %v2093, %v2079
      %v2095 = vadd.f32 %v2094, %v2080
      %v2096 = vadd.f32 %v2095, %v2081
      %v2097 = vadd.f32 %v2096, %v2082
      %v2098 = vadd.f32 %v2097, %v2083
      %v2099 = vadd.f32 %v2098, %v2084
      %v2100 = vrot.slane %v2099, 4
      %v2101 = vadd.f32 %v2099, %v2100
      %v2102 = vrot.slane %v2101, 2
      %v2103 = vadd.f32 %v2101, %v2102
      %v2104 = vrot.slane %v2103, 1
      %v2105 = vadd.f32 %v2103, %v2104
      %vm2106 = vcmask 1040384
      %v2107 = vsel %vm2106, %v2068, %v2105
      %2108 = vst [vmem:[%s230] sm:$0x3] %v2107
      %s2109 = smul.u32 8, %s20
      %p2110 = scmp.lt.s32.totalorder %s19, 1
      %s2111 = scalar_select %p2110, %s19, 1
      %p2112 = scmp.lt.s32.totalorder %s2109, 15
      %s2113 = scalar_select %p2112, %s2109, 15
      %s2114 = smul.addr %s2113, 2
      %s2115 = smul.addr %s2111, 32
      %s2116 = sadd.s32 %s2114, %s2115
      %s2117 = smul.addr %s2116, 8
      %s2118 = scalar_lea.vmem %s2, %s2117
      %p2119 = scmp.lt.s32.totalorder %s19, 1
      %s2120 = scalar_select %p2119, %s19, 1
      %p2121 = scmp.lt.s32.totalorder %s20, 1
      %s2122 = scalar_select %p2121, %s20, 1
      %s2123 = smul.addr %s2120, 2
      %s2124 = sadd.s32 %s2122, %s2123
      %s2125 = smul.addr %s2124, 2
      %s2126 = scalar_lea.vmem %s3, %s2125
      // Predicated region
      $region29: #{resblock_forward.3} parent=27 // pred_check
        %p2127 = pneg %p96
      $region30: #{resblock_forward.3} parent=27 // pred_check_branch
        %2129 = sbr.rel (%p2127) target = $region32
      $region31: #{resblock_forward.3} parent=27 // pred_region
        %s2130 = smul.u32 8, %s20
      $region32: #{resblock_forward.3} parent=27 // pred_fallthru
        _
      // Predicated region
      $region33: #{resblock_forward.3} parent=27 // pred_check
        %p2131 = pneg %p124
      $region34: #{resblock_forward.3} parent=27 // pred_check_branch
        %2133 = sbr.rel (%p2131) target = $region36
      $region35: #{resblock_forward.3} parent=27 // pred_region
        _
      $region36: #{resblock_forward.3} parent=27 // pred_fallthru
        _
    $region28: #{resblock_forward.3} parent=5 // pred_fallthru
      _
    %p2134 = scmp.le.s32.totalorder 2, %s10
    // Predicated region
    $region37: #{resblock_forward.3} parent=5 // pred_check
      %p2135 = pneg %p2134
    $region38: #{resblock_forward.3} parent=5 // pred_check_branch
      %2137 = sbr.rel (%p2135) target = $region40
    $region39: #{resblock_forward.3} parent=5 // pred_region
      %s2138 = ssub.s32 %s10, 2
      // Predicated region
      $region41: #{resblock_forward.3} parent=39 // pred_check
        %p2139 = pneg %p102
      $region42: #{resblock_forward.3} parent=39 // pred_check_branch
        %2141 = sbr.rel (%p2139) target = $region44
      $region43: #{resblock_forward.3} parent=39 // pred_region
        %s2142 = smul.u32 8, %s22
        %p2143 = scmp.lt.s32.totalorder %s21, 1
        %s2144 = scalar_select %p2143, %s21, 1
        %p2145 = scmp.lt.s32.totalorder %s2142, 15
        %s2146 = scalar_select %p2145, %s2142, 15
        %s2147 = smul.addr %s2146, 2
        %s2148 = smul.addr %s2144, 32
        %s2149 = sadd.s32 %s2147, %s2148
        %s2150 = smul.addr %s2149, 8
        %s2151 = scalar_lea.vmem %s2, %s2150
      $region44: #{resblock_forward.3} parent=39 // pred_fallthru
        _
      // Predicated region
      $region45: #{resblock_forward.3} parent=39 // pred_check
        %p2152 = pneg %p130
      $region46: #{resblock_forward.3} parent=39 // pred_check_branch
        %2154 = sbr.rel (%p2152) target = $region48
      $region47: #{resblock_forward.3} parent=39 // pred_region
        %p2155 = scmp.lt.s32.totalorder %s21, 1
        %s2156 = scalar_select %p2155, %s21, 1
        %p2157 = scmp.lt.s32.totalorder %s22, 1
        %s2158 = scalar_select %p2157, %s22, 1
        %s2159 = smul.addr %s2156, 2
        %s2160 = sadd.s32 %s2158, %s2159
        %s2161 = smul.addr %s2160, 2
        %s2162 = scalar_lea.vmem %s3, %s2161
      $region48: #{resblock_forward.3} parent=39 // pred_fallthru
        _
    $region40: #{resblock_forward.3} parent=5 // pred_fallthru
      _
  $region6: #{resblock_forward.3} parent=0 // loop_footer
    %s14 = sadd.s32 1, %s10
  $region7: #{resblock_forward.3} parent=0 // loop_footer_branch
    %9 = sbr.rel target = $region3
  $region8: #{resblock_forward.3} parent=0 // loop_exit
    _

</llo_original>
